<compile_context>
chip_gen: v5e
topology: v5e:2x2
jax: 0.10.0
libtpu: 0.0.40
codegen_flags: <defaults>
</compile_context>

<pallas_src>
import jax
import jax.numpy as jnp
from jax import lax
from jax.experimental import pallas as pl
from jax.experimental.pallas import tpu as pltpu

LEAKY_SLOPE = 0.2
EPS = 1e-5  # PyTorch InstanceNorm2d default (affine=False, biased variance)
OFFSETS = [(dy, dx) for dy in (-1, 0, 1) for dx in (-1, 0, 1)]


def _round_up(n, m):
    return (n + m - 1) // m * m


def _pick_images_per_step(n, max_b=8):
    """Largest divisor of n (<= max_b) that still leaves >= 2 grid steps (so
    both v7x TensorCores get work); falls back to the largest divisor."""
    divisors = [b for b in range(1, min(n, max_b) + 1) if n % b == 0]
    two_step = [b for b in divisors if n // b >= 2]
    return max(two_step) if two_step else max(divisors)


def conv_block(x_nchw, w1_hwio, w2_hwio, images_per_step=None):
    """Fused (Conv3x3 -> InstanceNorm -> LeakyReLU -> Dropout2d[eval]) x 2.

    x: (N, Cin, H, W) f32; w1: (3,3,Cin,Cmid) HWIO; w2: (3,3,Cmid,Cout) HWIO.
    """
    N, Cin, H, W = x_nchw.shape
    Cmid = w1_hwio.shape[3]
    Cout = w2_hwio.shape[3]
    HW = H * W

    # Sublane-align channel counts so the 9-tap concat is pure copies.
    Cin_p, Cmid_p, Cout_p = (_round_up(c, 8) for c in (Cin, Cmid, Cout))

    B = images_per_step or _pick_images_per_step(N)
    assert N % B == 0
    steps = N // B
    BHW = B * HW
    assert BHW % 128 == 0, "B*H*W must be a multiple of 128 for lane-dense tiling"

    # Lane-dense activations: (Cin_p, N*HW), lane order (image, h, w).
    x_flat = jnp.pad(x_nchw.reshape(N, Cin, HW), ((0, 0), (0, Cin_p - Cin), (0, 0)))
    x_lane = jnp.transpose(x_flat, (1, 0, 2)).reshape(Cin_p, N * HW)

    # Weights: HWIO -> (Cout_p, 9*Cin_p); column order (dy, dx, cin) matches the
    # im2col row order built in the kernel. bf16 operands, f32 accumulation.
    def prep_w(w, cin_p, cout_p):
        kh, kw, ci, co = w.shape
        w = jnp.pad(w, ((0, 0), (0, 0), (0, cin_p - ci), (0, cout_p - co)))
        return jnp.transpose(w, (3, 0, 1, 2)).reshape(cout_p, 9 * cin_p).astype(jnp.bfloat16)

    w1_mat = prep_w(w1_hwio, Cin_p, Cmid_p)
    w2_mat = prep_w(w2_hwio, Cmid_p, Cout_p)

    # Precomputed "same"-padding validity masks (9, B*HW): VMEM-resident via a
    # constant index_map.  They also zero every cross-image tap introduced by
    # rolling over the batched lane axis.
    hh, ww = jnp.divmod(jnp.arange(HW, dtype=jnp.int32), W)
    rows = [((hh + dy >= 0) & (hh + dy < H) & (ww + dx >= 0) & (ww + dx < W))
            for (dy, dx) in OFFSETS]
    masks = jnp.tile(jnp.stack(rows).astype(jnp.float32), (1, B))       # (9, BHW)

    # Block-diagonal segment matrix: per-image reductions / broadcasts are done
    # on the (otherwise idle) MXU instead of XLU cross-lane reduces.
    img_id = jnp.arange(BHW, dtype=jnp.int32) // HW
    seg = (img_id[:, None] == jnp.arange(B, dtype=jnp.int32)[None, :]).astype(jnp.float32)
    seg_t = seg.T                                                       # (B, BHW)

    inv_hw = 1.0 / HW

    def kernel(x_ref, w1_ref, w2_ref, m_ref, seg_ref, segt_ref, o_ref):
        m = m_ref[...]          # (9, BHW)  f32 boundary masks
        sg = seg_ref[...]       # (BHW, B)  f32 segment matrix
        sgt = segt_ref[...]     # (B, BHW)  f32 segment matrix (transposed)

        def conv3x3(y, w_ref):
            # y: (C, BHW) f32. 3x3 "same" conv = 8 lane-rolls (XLU) + masks,
            # one sublane-aligned im2col concat, one MXU matmul in bf16.
            taps = []
            for t, (dy, dx) in enumerate(OFFSETS):
                k = dy * W + dx
                if k == 0:
                    taps.append(y)
                else:
                    shifted = pltpu.roll(y, shift=(-k) % BHW, axis=1)
                    taps.append(shifted * m[t:t + 1, :])
            patches = jnp.concatenate(taps, axis=0).astype(jnp.bfloat16)  # (9C, BHW)
            # TODO(synk): at production C/HW, replace the 9x im2col concat with
            # per-tap accumulation (or HW tiling) to stay under v7x's 64 MiB VMEM.
            return jnp.dot(w_ref[...], patches,
                           preferred_element_type=jnp.float32)            # (Co, BHW)

        def inorm_lrelu(y):
            # Per-image, per-channel stats via MXU segmented sums; two-pass
            # (y - mean)^2 variance (biased), matching PyTorch InstanceNorm2d.
            mean = jnp.dot(y, sg, preferred_element_type=jnp.float32) * inv_hw  # (C, B)
            mean_b = jnp.dot(mean, sgt, preferred_element_type=jnp.float32)     # (C, BHW)
            d = y - mean_b
            var = jnp.dot(d * d, sg, preferred_element_type=jnp.float32) * inv_hw
            inv_std = lax.rsqrt(var + EPS)                                      # (C, B)
            inv_std_b = jnp.dot(inv_std, sgt, preferred_element_type=jnp.float32)
            yn = d * inv_std_b
            return jnp.where(yn > 0, yn, LEAKY_SLOPE * yn)

        x = x_ref[...].astype(jnp.float32)                 # (Cin_p, BHW)
        y1 = inorm_lrelu(conv3x3(x, w1_ref))               # (Cmid_p, BHW)
        # TODO(synk): nn.Dropout2d is identity in eval mode; training-mode channel
        # dropout (pltpu.prng_seed / prng_random_bits) is not implemented here.
        y2 = inorm_lrelu(conv3x3(y1, w2_ref))              # (Cout_p, BHW)
        o_ref[...] = y2.astype(o_ref.dtype)                # lane-dense, unmasked store

    out = pl.pallas_call(
        kernel,
        out_shape=jax.ShapeDtypeStruct((Cout_p, N * HW), x_nchw.dtype),
        grid_spec=pltpu.PrefetchScalarGridSpec(
            num_scalar_prefetch=0,
            grid=(steps,),                    # >= 2 parallel steps: both v7x TCs used
            in_specs=[
                # If the per-step x DMA is ever exposed at large blocks, add
                # pipeline_mode=pl.Buffered(3) here; weight/mask/segment specs
                # have constant index_maps and stay VMEM-resident (no re-DMA).
                pl.BlockSpec((Cin_p, BHW), lambda i: (0, i)),
                pl.BlockSpec((Cmid_p, 9 * Cin_p), lambda i: (0, 0)),
                pl.BlockSpec((Cout_p, 9 * Cmid_p), lambda i: (0, 0)),
                pl.BlockSpec((9, BHW), lambda i: (0, 0)),
                pl.BlockSpec((BHW, B), lambda i: (0, 0)),
                pl.BlockSpec((B, BHW), lambda i: (0, 0)),
            ],
            out_specs=pl.BlockSpec((Cout_p, BHW), lambda i: (0, i)),
        ),
        # NOTE: set vmem_limit_bytes explicitly when scaling channels/spatial
        # size (the working set here is only a few hundred KB, defaults suffice).
        compiler_params=pltpu.CompilerParams(
            dimension_semantics=("parallel",)),
    )(x_lane, w1_mat, w2_mat, masks, seg, seg_t)

    # (Cout_p, N*HW) -> (N, Cout, H, W)
    out = jnp.transpose(out.reshape(Cout_p, N, HW), (1, 0, 2))[:, :Cout]
    return out.reshape(N, Cout, H, W)


def conv_block_reference(x_nchw, w1, w2):
    """Pure-JAX f32 reference matching the PyTorch module in eval mode."""
    x = jnp.transpose(x_nchw, (0, 2, 3, 1))

    def conv(v, w):
        return lax.conv_general_dilated(
            v, w, window_strides=(1, 1), padding="SAME",
            dimension_numbers=("NHWC", "HWIO", "NHWC"))

    def inorm_lrelu(y):
        mean = jnp.mean(y, axis=(1, 2), keepdims=True)
        var = jnp.mean((y - mean) ** 2, axis=(1, 2), keepdims=True)
        yn = (y - mean) / jnp.sqrt(var + EPS)
        return jnp.where(yn > 0, yn, LEAKY_SLOPE * yn)

    y = inorm_lrelu(conv(x, w1))
    y = inorm_lrelu(conv(y, w2))
    return jnp.transpose(y, (0, 3, 1, 2))


if __name__ == "__main__":
    # Small shapes consistent with ConvBlock(in_channels=4, out_channels=8,
    # drop_prob=0.0); N=8 so the batched-lane path (B=4, grid=2) is exercised.
    N, Cin, Cout, H, W = 8, 4, 8, 16, 16

    key = jax.random.PRNGKey(0)
    kx, k1, k2 = jax.random.split(key, 3)
    x = jax.random.normal(kx, (N, Cin, H, W), dtype=jnp.float32)
    # Deterministic synthetic weights (HWIO), kaiming-ish scale.
    w1 = jax.random.normal(k1, (3, 3, Cin, Cout), dtype=jnp.float32) * (2.0 / (9 * Cin)) ** 0.5
    w2 = jax.random.normal(k2, (3, 3, Cout, Cout), dtype=jnp.float32) * (2.0 / (9 * Cout)) ** 0.5

    out = jax.block_until_ready(conv_block(x, w1, w2))
    ref = jax.block_until_ready(conv_block_reference(x, w1, w2))

    assert out.shape == (N, Cout, H, W)
    # bf16 matmul operands loosen agreement with the f32 reference (per review);
    # stats/elementwise math stays f32, so errors remain small and bounded.
    err = jnp.abs(out - ref)
    max_err = float(jnp.max(err))
    mean_err = float(jnp.mean(err))
    assert max_err < 0.12 and mean_err < 0.02, (max_err, mean_err)

    print("KERNEL_OK")
</pallas_src>

<mosaic_0001>
module attributes {stable_mosaic.version = 11 : i64} {
  func.func @kernel(%arg0: i32, %arg1: memref<8x1024xf32, #tpu.memory_space<vmem>>, %arg2: memref<8x72xbf16, #tpu.memory_space<vmem>>, %arg3: memref<8x72xbf16, #tpu.memory_space<vmem>>, %arg4: memref<9x1024xf32, #tpu.memory_space<vmem>>, %arg5: memref<1024x4xf32, #tpu.memory_space<vmem>>, %arg6: memref<4x1024xf32, #tpu.memory_space<vmem>>, %arg7: memref<8x1024xf32, #tpu.memory_space<vmem>>) attributes {dimension_semantics = [#tpu.dimension_semantics<parallel>], iteration_bounds = array<i64: 2>, scalar_prefetch = 0 : i64, scratch_operands = 0 : i64, tpu.core_type = #tpu.core_type<tc>, window_params = [{transform_indices = @transform_0, window_bounds = array<i64: 8, 1024>}, {pipeline_mode = #tpu.pipeline_mode<synchronous>, transform_indices = @transform_1, window_bounds = array<i64: 8, 72>}, {pipeline_mode = #tpu.pipeline_mode<synchronous>, transform_indices = @transform_2, window_bounds = array<i64: 8, 72>}, {pipeline_mode = #tpu.pipeline_mode<synchronous>, transform_indices = @transform_3, window_bounds = array<i64: 9, 1024>}, {pipeline_mode = #tpu.pipeline_mode<synchronous>, transform_indices = @transform_4, window_bounds = array<i64: 1024, 4>}, {pipeline_mode = #tpu.pipeline_mode<synchronous>, transform_indices = @transform_5, window_bounds = array<i64: 4, 1024>}, {transform_indices = @transform_6, window_bounds = array<i64: 8, 1024>}]} {
    %c0 = arith.constant 0 : index
    %c0_0 = arith.constant 0 : index
    %0 = vector.load %arg4[%c0, %c0_0] : memref<9x1024xf32, #tpu.memory_space<vmem>>, vector<9x1024xf32>
    %c0_1 = arith.constant 0 : index
    %c0_2 = arith.constant 0 : index
    %1 = vector.load %arg5[%c0_1, %c0_2] : memref<1024x4xf32, #tpu.memory_space<vmem>>, vector<1024x4xf32>
    %c0_3 = arith.constant 0 : index
    %c0_4 = arith.constant 0 : index
    %2 = vector.load %arg6[%c0_3, %c0_4] : memref<4x1024xf32, #tpu.memory_space<vmem>>, vector<4x1024xf32>
    %c0_5 = arith.constant 0 : index
    %c0_6 = arith.constant 0 : index
    %3 = vector.load %arg1[%c0_5, %c0_6] : memref<8x1024xf32, #tpu.memory_space<vmem>>, vector<8x1024xf32>
    %c17_i32 = arith.constant 17 : i32
    %4 = tpu.dynamic_rotate %3 by %c17_i32 dim 1 : vector<8x1024xf32>, i32 -> vector<8x1024xf32>
    %5 = vector.extract_strided_slice %0 {offsets = [0, 0], sizes = [1, 1024], strides = [1, 1]} : vector<9x1024xf32> to vector<1x1024xf32>
    %6 = vector.broadcast %5 : vector<1x1024xf32> to vector<8x1024xf32>
    %7 = arith.mulf %4, %6 : vector<8x1024xf32>
    %c16_i32 = arith.constant 16 : i32
    %8 = tpu.dynamic_rotate %3 by %c16_i32 dim 1 : vector<8x1024xf32>, i32 -> vector<8x1024xf32>
    %9 = vector.extract_strided_slice %0 {offsets = [1, 0], sizes = [1, 1024], strides = [1, 1]} : vector<9x1024xf32> to vector<1x1024xf32>
    %10 = vector.broadcast %9 : vector<1x1024xf32> to vector<8x1024xf32>
    %11 = arith.mulf %8, %10 : vector<8x1024xf32>
    %c15_i32 = arith.constant 15 : i32
    %12 = tpu.dynamic_rotate %3 by %c15_i32 dim 1 : vector<8x1024xf32>, i32 -> vector<8x1024xf32>
    %13 = vector.extract_strided_slice %0 {offsets = [2, 0], sizes = [1, 1024], strides = [1, 1]} : vector<9x1024xf32> to vector<1x1024xf32>
    %14 = vector.broadcast %13 : vector<1x1024xf32> to vector<8x1024xf32>
    %15 = arith.mulf %12, %14 : vector<8x1024xf32>
    %c1_i32 = arith.constant 1 : i32
    %16 = tpu.dynamic_rotate %3 by %c1_i32 dim 1 : vector<8x1024xf32>, i32 -> vector<8x1024xf32>
    %17 = vector.extract_strided_slice %0 {offsets = [3, 0], sizes = [1, 1024], strides = [1, 1]} : vector<9x1024xf32> to vector<1x1024xf32>
    %18 = vector.broadcast %17 : vector<1x1024xf32> to vector<8x1024xf32>
    %19 = arith.mulf %16, %18 : vector<8x1024xf32>
    %c1023_i32 = arith.constant 1023 : i32
    %20 = tpu.dynamic_rotate %3 by %c1023_i32 dim 1 : vector<8x1024xf32>, i32 -> vector<8x1024xf32>
    %21 = vector.extract_strided_slice %0 {offsets = [5, 0], sizes = [1, 1024], strides = [1, 1]} : vector<9x1024xf32> to vector<1x1024xf32>
    %22 = vector.broadcast %21 : vector<1x1024xf32> to vector<8x1024xf32>
    %23 = arith.mulf %20, %22 : vector<8x1024xf32>
    %c1009_i32 = arith.constant 1009 : i32
    %24 = tpu.dynamic_rotate %3 by %c1009_i32 dim 1 : vector<8x1024xf32>, i32 -> vector<8x1024xf32>
    %25 = vector.extract_strided_slice %0 {offsets = [6, 0], sizes = [1, 1024], strides = [1, 1]} : vector<9x1024xf32> to vector<1x1024xf32>
    %26 = vector.broadcast %25 : vector<1x1024xf32> to vector<8x1024xf32>
    %27 = arith.mulf %24, %26 : vector<8x1024xf32>
    %c1008_i32 = arith.constant 1008 : i32
    %28 = tpu.dynamic_rotate %3 by %c1008_i32 dim 1 : vector<8x1024xf32>, i32 -> vector<8x1024xf32>
    %29 = vector.extract_strided_slice %0 {offsets = [7, 0], sizes = [1, 1024], strides = [1, 1]} : vector<9x1024xf32> to vector<1x1024xf32>
    %30 = vector.broadcast %29 : vector<1x1024xf32> to vector<8x1024xf32>
    %31 = arith.mulf %28, %30 : vector<8x1024xf32>
    %c1007_i32 = arith.constant 1007 : i32
    %32 = tpu.dynamic_rotate %3 by %c1007_i32 dim 1 : vector<8x1024xf32>, i32 -> vector<8x1024xf32>
    %33 = vector.extract_strided_slice %0 {offsets = [8, 0], sizes = [1, 1024], strides = [1, 1]} : vector<9x1024xf32> to vector<1x1024xf32>
    %34 = vector.broadcast %33 : vector<1x1024xf32> to vector<8x1024xf32>
    %35 = arith.mulf %32, %34 : vector<8x1024xf32>
    %36 = tpu.concatenate %7, %11, %15, %19, %3, %23, %27, %31, %35 in 0 : vector<8x1024xf32>, vector<8x1024xf32>, vector<8x1024xf32>, vector<8x1024xf32>, vector<8x1024xf32>, vector<8x1024xf32>, vector<8x1024xf32>, vector<8x1024xf32>, vector<8x1024xf32> -> vector<72x1024xf32>
    %37 = arith.truncf %36 : vector<72x1024xf32> to vector<72x1024xbf16>
    %c0_7 = arith.constant 0 : index
    %c0_8 = arith.constant 0 : index
    %38 = vector.load %arg2[%c0_7, %c0_8] : memref<8x72xbf16, #tpu.memory_space<vmem>>, vector<8x72xbf16>
    %cst = arith.constant dense<0.000000e+00> : vector<8x1024xf32>
    %39 = tpu.matmul %38, %37, %cst {dimension_numbers = #tpu.dot_dimension_numbers<[1], [0], [0], [1], [0, 0, 1, 1], [], []>} : vector<8x72xbf16>, vector<72x1024xbf16>, vector<8x1024xf32> -> vector<8x1024xf32>
    %cst_9 = arith.constant dense<0.000000e+00> : vector<8x4xf32>
    %40 = tpu.matmul %39, %1, %cst_9 {dimension_numbers = #tpu.dot_dimension_numbers<[1], [0], [0], [1], [0, 0, 1, 1], [], []>} : vector<8x1024xf32>, vector<1024x4xf32>, vector<8x4xf32> -> vector<8x4xf32>
    %cst_10 = arith.constant 3.906250e-03 : f32
    %41 = vector.broadcast %cst_10 : f32 to vector<8x4xf32>
    %42 = arith.mulf %40, %41 : vector<8x4xf32>
    %cst_11 = arith.constant dense<0.000000e+00> : vector<8x1024xf32>
    %43 = tpu.matmul %42, %2, %cst_11 {dimension_numbers = #tpu.dot_dimension_numbers<[1], [0], [0], [1], [0, 0, 1, 1], [], []>} : vector<8x4xf32>, vector<4x1024xf32>, vector<8x1024xf32> -> vector<8x1024xf32>
    %44 = arith.subf %39, %43 : vector<8x1024xf32>
    %45 = arith.mulf %44, %44 : vector<8x1024xf32>
    %cst_12 = arith.constant dense<0.000000e+00> : vector<8x4xf32>
    %46 = tpu.matmul %45, %1, %cst_12 {dimension_numbers = #tpu.dot_dimension_numbers<[1], [0], [0], [1], [0, 0, 1, 1], [], []>} : vector<8x1024xf32>, vector<1024x4xf32>, vector<8x4xf32> -> vector<8x4xf32>
    %cst_13 = arith.constant 3.906250e-03 : f32
    %47 = vector.broadcast %cst_13 : f32 to vector<8x4xf32>
    %48 = arith.mulf %46, %47 : vector<8x4xf32>
    %cst_14 = arith.constant 9.99999974E-6 : f32
    %49 = vector.broadcast %cst_14 : f32 to vector<8x4xf32>
    %50 = arith.addf %48, %49 : vector<8x4xf32>
    %51 = math.rsqrt %50 : vector<8x4xf32>
    %cst_15 = arith.constant dense<0.000000e+00> : vector<8x1024xf32>
    %52 = tpu.matmul %51, %2, %cst_15 {dimension_numbers = #tpu.dot_dimension_numbers<[1], [0], [0], [1], [0, 0, 1, 1], [], []>} : vector<8x4xf32>, vector<4x1024xf32>, vector<8x1024xf32> -> vector<8x1024xf32>
    %53 = arith.mulf %44, %52 : vector<8x1024xf32>
    %cst_16 = arith.constant 0.000000e+00 : f32
    %54 = vector.broadcast %cst_16 : f32 to vector<8x1024xf32>
    %55 = arith.cmpf ogt, %53, %54 : vector<8x1024xf32>
    %cst_17 = arith.constant 2.000000e-01 : f32
    %56 = vector.broadcast %cst_17 : f32 to vector<8x1024xf32>
    %57 = arith.mulf %56, %53 : vector<8x1024xf32>
    %58 = arith.select %55, %53, %57 : vector<8x1024xi1>, vector<8x1024xf32>
    %c17_i32_18 = arith.constant 17 : i32
    %59 = tpu.dynamic_rotate %58 by %c17_i32_18 dim 1 : vector<8x1024xf32>, i32 -> vector<8x1024xf32>
    %60 = vector.extract_strided_slice %0 {offsets = [0, 0], sizes = [1, 1024], strides = [1, 1]} : vector<9x1024xf32> to vector<1x1024xf32>
    %61 = vector.broadcast %60 : vector<1x1024xf32> to vector<8x1024xf32>
    %62 = arith.mulf %59, %61 : vector<8x1024xf32>
    %c16_i32_19 = arith.constant 16 : i32
    %63 = tpu.dynamic_rotate %58 by %c16_i32_19 dim 1 : vector<8x1024xf32>, i32 -> vector<8x1024xf32>
    %64 = vector.extract_strided_slice %0 {offsets = [1, 0], sizes = [1, 1024], strides = [1, 1]} : vector<9x1024xf32> to vector<1x1024xf32>
    %65 = vector.broadcast %64 : vector<1x1024xf32> to vector<8x1024xf32>
    %66 = arith.mulf %63, %65 : vector<8x1024xf32>
    %c15_i32_20 = arith.constant 15 : i32
    %67 = tpu.dynamic_rotate %58 by %c15_i32_20 dim 1 : vector<8x1024xf32>, i32 -> vector<8x1024xf32>
    %68 = vector.extract_strided_slice %0 {offsets = [2, 0], sizes = [1, 1024], strides = [1, 1]} : vector<9x1024xf32> to vector<1x1024xf32>
    %69 = vector.broadcast %68 : vector<1x1024xf32> to vector<8x1024xf32>
    %70 = arith.mulf %67, %69 : vector<8x1024xf32>
    %c1_i32_21 = arith.constant 1 : i32
    %71 = tpu.dynamic_rotate %58 by %c1_i32_21 dim 1 : vector<8x1024xf32>, i32 -> vector<8x1024xf32>
    %72 = vector.extract_strided_slice %0 {offsets = [3, 0], sizes = [1, 1024], strides = [1, 1]} : vector<9x1024xf32> to vector<1x1024xf32>
    %73 = vector.broadcast %72 : vector<1x1024xf32> to vector<8x1024xf32>
    %74 = arith.mulf %71, %73 : vector<8x1024xf32>
    %c1023_i32_22 = arith.constant 1023 : i32
    %75 = tpu.dynamic_rotate %58 by %c1023_i32_22 dim 1 : vector<8x1024xf32>, i32 -> vector<8x1024xf32>
    %76 = vector.extract_strided_slice %0 {offsets = [5, 0], sizes = [1, 1024], strides = [1, 1]} : vector<9x1024xf32> to vector<1x1024xf32>
    %77 = vector.broadcast %76 : vector<1x1024xf32> to vector<8x1024xf32>
    %78 = arith.mulf %75, %77 : vector<8x1024xf32>
    %c1009_i32_23 = arith.constant 1009 : i32
    %79 = tpu.dynamic_rotate %58 by %c1009_i32_23 dim 1 : vector<8x1024xf32>, i32 -> vector<8x1024xf32>
    %80 = vector.extract_strided_slice %0 {offsets = [6, 0], sizes = [1, 1024], strides = [1, 1]} : vector<9x1024xf32> to vector<1x1024xf32>
    %81 = vector.broadcast %80 : vector<1x1024xf32> to vector<8x1024xf32>
    %82 = arith.mulf %79, %81 : vector<8x1024xf32>
    %c1008_i32_24 = arith.constant 1008 : i32
    %83 = tpu.dynamic_rotate %58 by %c1008_i32_24 dim 1 : vector<8x1024xf32>, i32 -> vector<8x1024xf32>
    %84 = vector.extract_strided_slice %0 {offsets = [7, 0], sizes = [1, 1024], strides = [1, 1]} : vector<9x1024xf32> to vector<1x1024xf32>
    %85 = vector.broadcast %84 : vector<1x1024xf32> to vector<8x1024xf32>
    %86 = arith.mulf %83, %85 : vector<8x1024xf32>
    %c1007_i32_25 = arith.constant 1007 : i32
    %87 = tpu.dynamic_rotate %58 by %c1007_i32_25 dim 1 : vector<8x1024xf32>, i32 -> vector<8x1024xf32>
    %88 = vector.extract_strided_slice %0 {offsets = [8, 0], sizes = [1, 1024], strides = [1, 1]} : vector<9x1024xf32> to vector<1x1024xf32>
    %89 = vector.broadcast %88 : vector<1x1024xf32> to vector<8x1024xf32>
    %90 = arith.mulf %87, %89 : vector<8x1024xf32>
    %91 = tpu.concatenate %62, %66, %70, %74, %58, %78, %82, %86, %90 in 0 : vector<8x1024xf32>, vector<8x1024xf32>, vector<8x1024xf32>, vector<8x1024xf32>, vector<8x1024xf32>, vector<8x1024xf32>, vector<8x1024xf32>, vector<8x1024xf32>, vector<8x1024xf32> -> vector<72x1024xf32>
    %92 = arith.truncf %91 : vector<72x1024xf32> to vector<72x1024xbf16>
    %c0_26 = arith.constant 0 : index
    %c0_27 = arith.constant 0 : index
    %93 = vector.load %arg3[%c0_26, %c0_27] : memref<8x72xbf16, #tpu.memory_space<vmem>>, vector<8x72xbf16>
    %cst_28 = arith.constant dense<0.000000e+00> : vector<8x1024xf32>
    %94 = tpu.matmul %93, %92, %cst_28 {dimension_numbers = #tpu.dot_dimension_numbers<[1], [0], [0], [1], [0, 0, 1, 1], [], []>} : vector<8x72xbf16>, vector<72x1024xbf16>, vector<8x1024xf32> -> vector<8x1024xf32>
    %cst_29 = arith.constant dense<0.000000e+00> : vector<8x4xf32>
    %95 = tpu.matmul %94, %1, %cst_29 {dimension_numbers = #tpu.dot_dimension_numbers<[1], [0], [0], [1], [0, 0, 1, 1], [], []>} : vector<8x1024xf32>, vector<1024x4xf32>, vector<8x4xf32> -> vector<8x4xf32>
    %cst_30 = arith.constant 3.906250e-03 : f32
    %96 = vector.broadcast %cst_30 : f32 to vector<8x4xf32>
    %97 = arith.mulf %95, %96 : vector<8x4xf32>
    %cst_31 = arith.constant dense<0.000000e+00> : vector<8x1024xf32>
    %98 = tpu.matmul %97, %2, %cst_31 {dimension_numbers = #tpu.dot_dimension_numbers<[1], [0], [0], [1], [0, 0, 1, 1], [], []>} : vector<8x4xf32>, vector<4x1024xf32>, vector<8x1024xf32> -> vector<8x1024xf32>
    %99 = arith.subf %94, %98 : vector<8x1024xf32>
    %100 = arith.mulf %99, %99 : vector<8x1024xf32>
    %cst_32 = arith.constant dense<0.000000e+00> : vector<8x4xf32>
    %101 = tpu.matmul %100, %1, %cst_32 {dimension_numbers = #tpu.dot_dimension_numbers<[1], [0], [0], [1], [0, 0, 1, 1], [], []>} : vector<8x1024xf32>, vector<1024x4xf32>, vector<8x4xf32> -> vector<8x4xf32>
    %cst_33 = arith.constant 3.906250e-03 : f32
    %102 = vector.broadcast %cst_33 : f32 to vector<8x4xf32>
    %103 = arith.mulf %101, %102 : vector<8x4xf32>
    %cst_34 = arith.constant 9.99999974E-6 : f32
    %104 = vector.broadcast %cst_34 : f32 to vector<8x4xf32>
    %105 = arith.addf %103, %104 : vector<8x4xf32>
    %106 = math.rsqrt %105 : vector<8x4xf32>
    %cst_35 = arith.constant dense<0.000000e+00> : vector<8x1024xf32>
    %107 = tpu.matmul %106, %2, %cst_35 {dimension_numbers = #tpu.dot_dimension_numbers<[1], [0], [0], [1], [0, 0, 1, 1], [], []>} : vector<8x4xf32>, vector<4x1024xf32>, vector<8x1024xf32> -> vector<8x1024xf32>
    %108 = arith.mulf %99, %107 : vector<8x1024xf32>
    %cst_36 = arith.constant 0.000000e+00 : f32
    %109 = vector.broadcast %cst_36 : f32 to vector<8x1024xf32>
    %110 = arith.cmpf ogt, %108, %109 : vector<8x1024xf32>
    %cst_37 = arith.constant 2.000000e-01 : f32
    %111 = vector.broadcast %cst_37 : f32 to vector<8x1024xf32>
    %112 = arith.mulf %111, %108 : vector<8x1024xf32>
    %113 = arith.select %110, %108, %112 : vector<8x1024xi1>, vector<8x1024xf32>
    %c0_38 = arith.constant 0 : index
    %c0_39 = arith.constant 0 : index
    %114 = vector.load %arg7[%c0_38, %c0_39] : memref<8x1024xf32, #tpu.memory_space<vmem>>, vector<8x1024xf32>
    tpu.vector_store %arg7[%c0_38, %c0_39], %113 {strides = array<i32>} : memref<8x1024xf32, #tpu.memory_space<vmem>>, vector<8x1024xf32>,
    return
  }
  func.func @transform_0(%arg0: i32) -> (i32, i32) {
    %c0_i32 = arith.constant 0 : i32
    %c0_i32_0 = arith.constant 0 : i32
    return %c0_i32, %arg0 : i32, i32
  }
  func.func @transform_1(%arg0: i32) -> (i32, i32) {
    %c0_i32 = arith.constant 0 : i32
    %c0_i32_0 = arith.constant 0 : i32
    %c0_i32_1 = arith.constant 0 : i32
    return %c0_i32, %c0_i32_0 : i32, i32
  }
  func.func @transform_2(%arg0: i32) -> (i32, i32) {
    %c0_i32 = arith.constant 0 : i32
    %c0_i32_0 = arith.constant 0 : i32
    %c0_i32_1 = arith.constant 0 : i32
    return %c0_i32, %c0_i32_0 : i32, i32
  }
  func.func @transform_3(%arg0: i32) -> (i32, i32) {
    %c0_i32 = arith.constant 0 : i32
    %c0_i32_0 = arith.constant 0 : i32
    %c0_i32_1 = arith.constant 0 : i32
    return %c0_i32, %c0_i32_0 : i32, i32
  }
  func.func @transform_4(%arg0: i32) -> (i32, i32) {
    %c0_i32 = arith.constant 0 : i32
    %c0_i32_0 = arith.constant 0 : i32
    %c0_i32_1 = arith.constant 0 : i32
    return %c0_i32, %c0_i32_0 : i32, i32
  }
  func.func @transform_5(%arg0: i32) -> (i32, i32) {
    %c0_i32 = arith.constant 0 : i32
    %c0_i32_0 = arith.constant 0 : i32
    %c0_i32_1 = arith.constant 0 : i32
    return %c0_i32, %c0_i32_0 : i32, i32
  }
  func.func @transform_6(%arg0: i32) -> (i32, i32) {
    %c0_i32 = arith.constant 0 : i32
    %c0_i32_0 = arith.constant 0 : i32
    return %c0_i32, %arg0 : i32, i32
  }
}

</mosaic_0001>

<llo_original>
// kernel: tpu_custom_call.1
$region0: #{tpu_custom_call.1}
  #allocation0 [shape = 'u32[]', space=smem, size = 0x4, offset = 0x4, fixed_abs, tag = 'smem constant byte address 0x4 - core index']
  #allocation1 [shape = 'u32[72,128]{1,0:T(1,128)}', space=vmem, size = 0x9000, scoped, tag = 'internal scratch']
  %s0 = inlined_call_operand.vmem [shape: f32[8,2048], index: 0, kind: input, shape index: {}]
  %s1 = inlined_call_operand.vmem [shape: bf16[8,72], index: 1, kind: input, shape index: {}]
  %s2 = inlined_call_operand.vmem [shape: bf16[8,72], index: 2, kind: input, shape index: {}]
  %s3 = inlined_call_operand.vmem [shape: f32[9,1024], index: 3, kind: input, shape index: {}]
  %s4 = inlined_call_operand.vmem [shape: f32[1024,4], index: 4, kind: input, shape index: {}]
  %s5 = inlined_call_operand.vmem [shape: f32[4,1024], index: 5, kind: input, shape index: {}]
  %s6 = inlined_call_operand.hbm [shape: f32[8,2048], index: 6, kind: output, shape index: {}]
  %s7 = sld [smem:[#allocation0]]
  $region57: #{tpu_custom_call.1} parent=0
    _
  %s9 = ssub.s32 1, %s7
  %s10 = scalar_select 0, %s9, %s7
  $region1: #{tpu_custom_call.1} parent=0
    #allocation2 [shape = 'u8[65536]{0}', space=vmem, size = 0x10000, scoped, tag = 'output window, operand 0']
    #allocation3 [shape = 's32[2]{0}', space=sflag, size = 0x8, scoped, tag = 'scoped memory for tpu_custom_call.1']
    %11 = vsyncpa [#allocation3], 0
    %s12 = scalar_lea.sflag [#allocation3], 1
    %13 = vsyncpa %s12, 0
    loop: start=0, step=1, limit=4
    $region2: #{tpu_custom_call.1} parent=1 // loop_pre_header
      _
    $region3: #{tpu_custom_call.1} parent=1 // loop_header
      %s15 = sphi 0, %s19
      %p16 = scmp.ge.s32.totalorder %s15, 4
      %s25 = sphi 0, %s27
      %s28 = sphi 0, %s25
      %s29 = sphi 0, %s28
      %s45 = sphi 0, %s29
      %s49 = sphi 0, %s49
      %s51 = sphi 0, %s49
      %s52 = sphi 0, %s51
      %s66 = sphi 0, %s52
      %s70 = sphi 0, %s70
      %s72 = sphi 0, %s70
      %s73 = sphi 0, %s72
      %s87 = sphi 0, %s73
      %s91 = sphi 0, %s91
      %s93 = sphi 0, %s91
      %s94 = sphi 0, %s93
      %s108 = sphi 0, %s94
      %s112 = sphi 0, %s112
      %s114 = sphi 0, %s112
      %s115 = sphi 0, %s114
      %s129 = sphi 0, %s115
      %s133 = sphi 0, %s133
      %s135 = sphi 0, %s133
      %s136 = sphi 0, %s135
      %s150 = sphi 0, %s136
      %s156 = sphi 0, %s158
      %s159 = sphi 0, %s156
      %s160 = sphi 0, %s159
      %s176 = sphi 0, %s160
    $region4: #{tpu_custom_call.1} parent=1 // loop_header_branch
      %18 = sbr.rel (%p16) target = $region8
    $region5: #{tpu_custom_call.1} parent=1 // loop_body
      %s20 = ssub.s32 %s15, 1
      %s21 = ssub.s32 %s15, 2
      %s22 = sadd.s32 %s15, 1
      %s23 = ssub.s32 %s15, %s22
      %p24 = scmp.eq.s32.totalorder %s23, 0
      %s26 = sadd.s32 %s25, 1
      %s27 = scalar_select %p24, %s25, %s26
      %p30 = pneg %p24
      %p31 = scmp.eq.s32.totalorder %s15, 1
      %p32 = por %p30, %p31
      %p33 = scmp.ne.s32.totalorder %s25, %s28
      %p34 = scmp.eq.s32.totalorder %s15, 0
      %p35 = por %p33, %p34
      %p36 = scmp.ne.s32.totalorder %s25, %s28
      %p37 = scmp.eq.s32.totalorder %s20, 1
      %p38 = por %p36, %p37
      %p39 = scmp.ne.s32.totalorder %s28, %s29
      %p40 = scmp.eq.s32.totalorder %s20, 0
      %p41 = por %p39, %p40
      %p42 = scmp.ne.s32.totalorder %s28, %s29
      %p43 = scmp.eq.s32.totalorder %s21, 1
      %p44 = por %p42, %p43
      %p46 = scmp.ne.s32.totalorder %s29, %s45
      %p47 = scmp.eq.s32.totalorder %s21, 0
      %p48 = por %p46, %p47
      %s50 = sadd.s32 %s49, 1
      %p53 = scmp.eq.s32.totalorder %s15, 1
      %p54 = scmp.ne.s32.totalorder %s49, %s51
      %p55 = scmp.eq.s32.totalorder %s15, 0
      %p56 = por %p54, %p55
      %p57 = scmp.ne.s32.totalorder %s49, %s51
      %p58 = scmp.eq.s32.totalorder %s20, 1
      %p59 = por %p57, %p58
      %p60 = scmp.ne.s32.totalorder %s51, %s52
      %p61 = scmp.eq.s32.totalorder %s20, 0
      %p62 = por %p60, %p61
      %p63 = scmp.ne.s32.totalorder %s51, %s52
      %p64 = scmp.eq.s32.totalorder %s21, 1
      %p65 = por %p63, %p64
      %p67 = scmp.ne.s32.totalorder %s52, %s66
      %p68 = scmp.eq.s32.totalorder %s21, 0
      %p69 = por %p67, %p68
      %s71 = sadd.s32 %s70, 1
      %p74 = scmp.eq.s32.totalorder %s15, 1
      %p75 = scmp.ne.s32.totalorder %s70, %s72
      %p76 = scmp.eq.s32.totalorder %s15, 0
      %p77 = por %p75, %p76
      %p78 = scmp.ne.s32.totalorder %s70, %s72
      %p79 = scmp.eq.s32.totalorder %s20, 1
      %p80 = por %p78, %p79
      %p81 = scmp.ne.s32.totalorder %s72, %s73
      %p82 = scmp.eq.s32.totalorder %s20, 0
      %p83 = por %p81, %p82
      %p84 = scmp.ne.s32.totalorder %s72, %s73
      %p85 = scmp.eq.s32.totalorder %s21, 1
      %p86 = por %p84, %p85
      %p88 = scmp.ne.s32.totalorder %s73, %s87
      %p89 = scmp.eq.s32.totalorder %s21, 0
      %p90 = por %p88, %p89
      %s92 = sadd.s32 %s91, 1
      %p95 = scmp.eq.s32.totalorder %s15, 1
      %p96 = scmp.ne.s32.totalorder %s91, %s93
      %p97 = scmp.eq.s32.totalorder %s15, 0
      %p98 = por %p96, %p97
      %p99 = scmp.ne.s32.totalorder %s91, %s93
      %p100 = scmp.eq.s32.totalorder %s20, 1
      %p101 = por %p99, %p100
      %p102 = scmp.ne.s32.totalorder %s93, %s94
      %p103 = scmp.eq.s32.totalorder %s20, 0
      %p104 = por %p102, %p103
      %p105 = scmp.ne.s32.totalorder %s93, %s94
      %p106 = scmp.eq.s32.totalorder %s21, 1
      %p107 = por %p105, %p106
      %p109 = scmp.ne.s32.totalorder %s94, %s108
      %p110 = scmp.eq.s32.totalorder %s21, 0
      %p111 = por %p109, %p110
      %s113 = sadd.s32 %s112, 1
      %p116 = scmp.eq.s32.totalorder %s15, 1
      %p117 = scmp.ne.s32.totalorder %s112, %s114
      %p118 = scmp.eq.s32.totalorder %s15, 0
      %p119 = por %p117, %p118
      %p120 = scmp.ne.s32.totalorder %s112, %s114
      %p121 = scmp.eq.s32.totalorder %s20, 1
      %p122 = por %p120, %p121
      %p123 = scmp.ne.s32.totalorder %s114, %s115
      %p124 = scmp.eq.s32.totalorder %s20, 0
      %p125 = por %p123, %p124
      %p126 = scmp.ne.s32.totalorder %s114, %s115
      %p127 = scmp.eq.s32.totalorder %s21, 1
      %p128 = por %p126, %p127
      %p130 = scmp.ne.s32.totalorder %s115, %s129
      %p131 = scmp.eq.s32.totalorder %s21, 0
      %p132 = por %p130, %p131
      %s134 = sadd.s32 %s133, 1
      %p137 = scmp.eq.s32.totalorder %s15, 1
      %p138 = scmp.ne.s32.totalorder %s133, %s135
      %p139 = scmp.eq.s32.totalorder %s15, 0
      %p140 = por %p138, %p139
      %p141 = scmp.ne.s32.totalorder %s133, %s135
      %p142 = scmp.eq.s32.totalorder %s20, 1
      %p143 = por %p141, %p142
      %p144 = scmp.ne.s32.totalorder %s135, %s136
      %p145 = scmp.eq.s32.totalorder %s20, 0
      %p146 = por %p144, %p145
      %p147 = scmp.ne.s32.totalorder %s135, %s136
      %p148 = scmp.eq.s32.totalorder %s21, 1
      %p149 = por %p147, %p148
      %p151 = scmp.ne.s32.totalorder %s136, %s150
      %p152 = scmp.eq.s32.totalorder %s21, 0
      %p153 = por %p151, %p152
      %s154 = ssub.s32 %s15, %s22
      %p155 = scmp.eq.s32.totalorder %s154, 0
      %s157 = sadd.s32 %s156, 1
      %s158 = scalar_select %p155, %s156, %s157
      %p161 = pneg %p155
      %p162 = scmp.eq.s32.totalorder %s15, 1
      %p163 = por %p161, %p162
      %p164 = scmp.ne.s32.totalorder %s156, %s159
      %p165 = scmp.eq.s32.totalorder %s15, 0
      %p166 = por %p164, %p165
      %p167 = scmp.ne.s32.totalorder %s156, %s159
      %p168 = scmp.eq.s32.totalorder %s20, 1
      %p169 = por %p167, %p168
      %p170 = scmp.ne.s32.totalorder %s159, %s160
      %p171 = scmp.eq.s32.totalorder %s20, 0
      %p172 = por %p170, %p171
      %p173 = scmp.ne.s32.totalorder %s159, %s160
      %p174 = scmp.eq.s32.totalorder %s21, 1
      %p175 = por %p173, %p174
      %p177 = scmp.ne.s32.totalorder %s160, %s176
      %p178 = scmp.eq.s32.totalorder %s21, 0
      %p179 = por %p177, %p178
      %p180 = scmp.le.s32.totalorder 1, %s15
      %p181 = scmp.lt.s32.totalorder %s15, 3
      %p182 = pnand %p180, %p181
      %p183 = pneg %p182
      // Predicated region
      $region9: #{tpu_custom_call.1} parent=5 // pred_check
        _
      $region10: #{tpu_custom_call.1} parent=5 // pred_check_branch
        %185 = sbr.rel (%p182) target = $region12
      $region11: #{tpu_custom_call.1} parent=5 // pred_region
        %s186 = ssub.s32 %s15, 1
        // Predicated region
        $region13: #{tpu_custom_call.1} parent=11 // pred_check
          %p187 = pneg %p62
        $region14: #{tpu_custom_call.1} parent=11 // pred_check_branch
          %189 = sbr.rel (%p187) target = $region16
        $region15: #{tpu_custom_call.1} parent=11 // pred_region
          _
        $region16: #{tpu_custom_call.1} parent=11 // pred_fallthru
          _
        // Predicated region
        $region17: #{tpu_custom_call.1} parent=11 // pred_check
          %p190 = pneg %p83
        $region18: #{tpu_custom_call.1} parent=11 // pred_check_branch
          %192 = sbr.rel (%p190) target = $region20
        $region19: #{tpu_custom_call.1} parent=11 // pred_region
          _
        $region20: #{tpu_custom_call.1} parent=11 // pred_fallthru
          _
        // Predicated region
        $region21: #{tpu_custom_call.1} parent=11 // pred_check
          %p193 = pneg %p104
        $region22: #{tpu_custom_call.1} parent=11 // pred_check_branch
          %195 = sbr.rel (%p193) target = $region24
        $region23: #{tpu_custom_call.1} parent=11 // pred_region
          _
        $region24: #{tpu_custom_call.1} parent=11 // pred_fallthru
          _
        // Predicated region
        $region25: #{tpu_custom_call.1} parent=11 // pred_check
          %p196 = pneg %p125
        $region26: #{tpu_custom_call.1} parent=11 // pred_check_branch
          %198 = sbr.rel (%p196) target = $region28
        $region27: #{tpu_custom_call.1} parent=11 // pred_region
          _
        $region28: #{tpu_custom_call.1} parent=11 // pred_fallthru
          _
        // Predicated region
        $region29: #{tpu_custom_call.1} parent=11 // pred_check
          %p199 = pneg %p146
        $region30: #{tpu_custom_call.1} parent=11 // pred_check_branch
          %201 = sbr.rel (%p199) target = $region32
        $region31: #{tpu_custom_call.1} parent=11 // pred_region
          _
        $region32: #{tpu_custom_call.1} parent=11 // pred_fallthru
          _
      $region12: #{tpu_custom_call.1} parent=5 // pred_fallthru
        _
      %p202 = scmp.lt.s32.totalorder %s15, 2
      // Predicated region
      $region33: #{tpu_custom_call.1} parent=5 // pred_check
        %p203 = pneg %p202
      $region34: #{tpu_custom_call.1} parent=5 // pred_check_branch
        %205 = sbr.rel (%p203) target = $region36
      $region35: #{tpu_custom_call.1} parent=5 // pred_region
        // Predicated region
        $region37: #{tpu_custom_call.1} parent=35 // pred_check
          %p206 = pneg %p35
        $region38: #{tpu_custom_call.1} parent=35 // pred_check_branch
          %208 = sbr.rel (%p206) target = $region40
        $region39: #{tpu_custom_call.1} parent=35 // pred_region
          %s209 = smul.u32 8, %s15
          %p210 = scmp.lt.s32.totalorder %s209, 15
          %s211 = scalar_select %p210, %s209, 15
          %s212 = smul.addr %s211, 8
          %s213 = scalar_lea.vmem %s0, %s212
          %s214 = smul.u32 8, %s15
        $region40: #{tpu_custom_call.1} parent=35 // pred_fallthru
          _
      $region36: #{tpu_custom_call.1} parent=5 // pred_fallthru
        _
      %p215 = scmp.le.s32.totalorder 1, %s15
      %p216 = scmp.lt.s32.totalorder %s15, 3
      %p217 = pnand %p215, %p216
      %p218 = pneg %p217
      // Predicated region
      $region41: #{tpu_custom_call.1} parent=5 // pred_check
        _
      $region42: #{tpu_custom_call.1} parent=5 // pred_check_branch
        %220 = sbr.rel (%p217) target = $region44
      $region43: #{tpu_custom_call.1} parent=5 // pred_region
        %s221 = ssub.s32 %s15, 1
        %s222 = smul.u32 8, %s20
        %p223 = scmp.lt.s32.totalorder %s222, 15
        %s224 = scalar_select %p223, %s222, 15
        %s225 = smul.addr %s224, 8
        %s226 = scalar_lea.vmem %s0, %s225
        %p227 = pneg %p41
        %p228 = pneg %p38
        %p229 = pneg %p62
        %p230 = pneg %p59
        %p231 = pneg %p83
        %p232 = pneg %p80
        %p233 = pneg %p104
        %p234 = pneg %p101
        %p235 = pneg %p125
        %p236 = pneg %p122
        %p237 = pneg %p146
        %p238 = pneg %p143
        %p239 = pneg %p172
        %p240 = pneg %p169
        %s241 = sand.u32 %s159, 1
        %s242 = scalar_lea.sflag [#allocation3], %s241
        %s243 = sand.u32 %s159, 1
        %s244 = smul.addr %s243, 64
        %s245 = scalar_lea.vmem [#allocation2], %s244
        %s246 = smul.u32 8, %s20
        %p247 = scmp.lt.s32.totalorder %s246, 15
        %s248 = scalar_select %p247, %s246, 15
        %s249 = smul.addr %s248, 8
        %s250 = scalar_lea.vmem %s0, %s249
        %s251 = smul.u32 8, %s20
        %s252 = smul.u32 8, %s20
        %v254 = vld [vmem:[%s3] sm:$0xff]
        %v255 = vld [vmem:[%s3 + $0x8] sm:$0xff]
        %v256 = vld [vmem:[%s3 + $0x10] sm:$0xff]
        %v257 = vld [vmem:[%s3 + $0x18] sm:$0xff]
        %v258 = vld [vmem:[%s3 + $0x20] sm:$0xff]
        %v259 = vld [vmem:[%s3 + $0x28] sm:$0xff]
        %v260 = vld [vmem:[%s3 + $0x30] sm:$0xff]
        %v261 = vld [vmem:[%s3 + $0x38] sm:$0xff]
        %v262 = vld [vmem:[%s3 + $0x40] sm:$0x1]
        %v263 = vld [vmem:[%s3 + $0x48] sm:$0x1]
        %v264 = vld [vmem:[%s3 + $0x50] sm:$0x1]
        %v265 = vld [vmem:[%s3 + $0x58] sm:$0x1]
        %v266 = vld [vmem:[%s3 + $0x60] sm:$0x1]
        %v267 = vld [vmem:[%s3 + $0x68] sm:$0x1]
        %v268 = vld [vmem:[%s3 + $0x70] sm:$0x1]
        %v269 = vld [vmem:[%s3 + $0x78] sm:$0x1]
        %v270 = vld [vmem:[%s4] sm:$0xff]
        %v271 = vld [vmem:[%s4 + $0x8] sm:$0xff]
        %v272 = vld [vmem:[%s4 + $0x10] sm:$0xff]
        %v273 = vld [vmem:[%s4 + $0x18] sm:$0xff]
        %v274 = vld [vmem:[%s4 + $0x20] sm:$0xff]
        %v275 = vld [vmem:[%s4 + $0x28] sm:$0xff]
        %v276 = vld [vmem:[%s4 + $0x30] sm:$0xff]
        %v277 = vld [vmem:[%s4 + $0x38] sm:$0xff]
        %v278 = vld [vmem:[%s4 + $0x40] sm:$0xff]
        %v279 = vld [vmem:[%s4 + $0x48] sm:$0xff]
        %v280 = vld [vmem:[%s4 + $0x50] sm:$0xff]
        %v281 = vld [vmem:[%s4 + $0x58] sm:$0xff]
        %v282 = vld [vmem:[%s4 + $0x60] sm:$0xff]
        %v283 = vld [vmem:[%s4 + $0x68] sm:$0xff]
        %v284 = vld [vmem:[%s4 + $0x70] sm:$0xff]
        %v285 = vld [vmem:[%s4 + $0x78] sm:$0xff]
        %v286 = vld [vmem:[%s4 + $0x80] sm:$0xff]
        %v287 = vld [vmem:[%s4 + $0x88] sm:$0xff]
        %v288 = vld [vmem:[%s4 + $0x90] sm:$0xff]
        %v289 = vld [vmem:[%s4 + $0x98] sm:$0xff]
        %v290 = vld [vmem:[%s4 + $0xa0] sm:$0xff]
        %v291 = vld [vmem:[%s4 + $0xa8] sm:$0xff]
        %v292 = vld [vmem:[%s4 + $0xb0] sm:$0xff]
        %v293 = vld [vmem:[%s4 + $0xb8] sm:$0xff]
        %v294 = vld [vmem:[%s4 + $0xc0] sm:$0xff]
        %v295 = vld [vmem:[%s4 + $0xc8] sm:$0xff]
        %v296 = vld [vmem:[%s4 + $0xd0] sm:$0xff]
        %v297 = vld [vmem:[%s4 + $0xd8] sm:$0xff]
        %v298 = vld [vmem:[%s4 + $0xe0] sm:$0xff]
        %v299 = vld [vmem:[%s4 + $0xe8] sm:$0xff]
        %v300 = vld [vmem:[%s4 + $0xf0] sm:$0xff]
        %v301 = vld [vmem:[%s4 + $0xf8] sm:$0xff]
        %v302 = vld [vmem:[%s4 + $0x100] sm:$0xff]
        %v303 = vld [vmem:[%s4 + $0x108] sm:$0xff]
        %v304 = vld [vmem:[%s4 + $0x110] sm:$0xff]
        %v305 = vld [vmem:[%s4 + $0x118] sm:$0xff]
        %v306 = vld [vmem:[%s4 + $0x120] sm:$0xff]
        %v307 = vld [vmem:[%s4 + $0x128] sm:$0xff]
        %v308 = vld [vmem:[%s4 + $0x130] sm:$0xff]
        %v309 = vld [vmem:[%s4 + $0x138] sm:$0xff]
        %v310 = vld [vmem:[%s4 + $0x140] sm:$0xff]
        %v311 = vld [vmem:[%s4 + $0x148] sm:$0xff]
        %v312 = vld [vmem:[%s4 + $0x150] sm:$0xff]
        %v313 = vld [vmem:[%s4 + $0x158] sm:$0xff]
        %v314 = vld [vmem:[%s4 + $0x160] sm:$0xff]
        %v315 = vld [vmem:[%s4 + $0x168] sm:$0xff]
        %v316 = vld [vmem:[%s4 + $0x170] sm:$0xff]
        %v317 = vld [vmem:[%s4 + $0x178] sm:$0xff]
        %v318 = vld [vmem:[%s4 + $0x180] sm:$0xff]
        %v319 = vld [vmem:[%s4 + $0x188] sm:$0xff]
        %v320 = vld [vmem:[%s4 + $0x190] sm:$0xff]
        %v321 = vld [vmem:[%s4 + $0x198] sm:$0xff]
        %v322 = vld [vmem:[%s4 + $0x1a0] sm:$0xff]
        %v323 = vld [vmem:[%s4 + $0x1a8] sm:$0xff]
        %v324 = vld [vmem:[%s4 + $0x1b0] sm:$0xff]
        %v325 = vld [vmem:[%s4 + $0x1b8] sm:$0xff]
        %v326 = vld [vmem:[%s4 + $0x1c0] sm:$0xff]
        %v327 = vld [vmem:[%s4 + $0x1c8] sm:$0xff]
        %v328 = vld [vmem:[%s4 + $0x1d0] sm:$0xff]
        %v329 = vld [vmem:[%s4 + $0x1d8] sm:$0xff]
        %v330 = vld [vmem:[%s4 + $0x1e0] sm:$0xff]
        %v331 = vld [vmem:[%s4 + $0x1e8] sm:$0xff]
        %v332 = vld [vmem:[%s4 + $0x1f0] sm:$0xff]
        %v333 = vld [vmem:[%s4 + $0x1f8] sm:$0xff]
        %v334 = vld [vmem:[%s4 + $0x200] sm:$0xff]
        %v335 = vld [vmem:[%s4 + $0x208] sm:$0xff]
        %v336 = vld [vmem:[%s4 + $0x210] sm:$0xff]
        %v337 = vld [vmem:[%s4 + $0x218] sm:$0xff]
        %v338 = vld [vmem:[%s4 + $0x220] sm:$0xff]
        %v339 = vld [vmem:[%s4 + $0x228] sm:$0xff]
        %v340 = vld [vmem:[%s4 + $0x230] sm:$0xff]
        %v341 = vld [vmem:[%s4 + $0x238] sm:$0xff]
        %v342 = vld [vmem:[%s4 + $0x240] sm:$0xff]
        %v343 = vld [vmem:[%s4 + $0x248] sm:$0xff]
        %v344 = vld [vmem:[%s4 + $0x250] sm:$0xff]
        %v345 = vld [vmem:[%s4 + $0x258] sm:$0xff]
        %v346 = vld [vmem:[%s4 + $0x260] sm:$0xff]
        %v347 = vld [vmem:[%s4 + $0x268] sm:$0xff]
        %v348 = vld [vmem:[%s4 + $0x270] sm:$0xff]
        %v349 = vld [vmem:[%s4 + $0x278] sm:$0xff]
        %v350 = vld [vmem:[%s4 + $0x280] sm:$0xff]
        %v351 = vld [vmem:[%s4 + $0x288] sm:$0xff]
        %v352 = vld [vmem:[%s4 + $0x290] sm:$0xff]
        %v353 = vld [vmem:[%s4 + $0x298] sm:$0xff]
        %v354 = vld [vmem:[%s4 + $0x2a0] sm:$0xff]
        %v355 = vld [vmem:[%s4 + $0x2a8] sm:$0xff]
        %v356 = vld [vmem:[%s4 + $0x2b0] sm:$0xff]
        %v357 = vld [vmem:[%s4 + $0x2b8] sm:$0xff]
        %v358 = vld [vmem:[%s4 + $0x2c0] sm:$0xff]
        %v359 = vld [vmem:[%s4 + $0x2c8] sm:$0xff]
        %v360 = vld [vmem:[%s4 + $0x2d0] sm:$0xff]
        %v361 = vld [vmem:[%s4 + $0x2d8] sm:$0xff]
        %v362 = vld [vmem:[%s4 + $0x2e0] sm:$0xff]
        %v363 = vld [vmem:[%s4 + $0x2e8] sm:$0xff]
        %v364 = vld [vmem:[%s4 + $0x2f0] sm:$0xff]
        %v365 = vld [vmem:[%s4 + $0x2f8] sm:$0xff]
        %v366 = vld [vmem:[%s4 + $0x300] sm:$0xff]
        %v367 = vld [vmem:[%s4 + $0x308] sm:$0xff]
        %v368 = vld [vmem:[%s4 + $0x310] sm:$0xff]
        %v369 = vld [vmem:[%s4 + $0x318] sm:$0xff]
        %v370 = vld [vmem:[%s4 + $0x320] sm:$0xff]
        %v371 = vld [vmem:[%s4 + $0x328] sm:$0xff]
        %v372 = vld [vmem:[%s4 + $0x330] sm:$0xff]
        %v373 = vld [vmem:[%s4 + $0x338] sm:$0xff]
        %v374 = vld [vmem:[%s4 + $0x340] sm:$0xff]
        %v375 = vld [vmem:[%s4 + $0x348] sm:$0xff]
        %v376 = vld [vmem:[%s4 + $0x350] sm:$0xff]
        %v377 = vld [vmem:[%s4 + $0x358] sm:$0xff]
        %v378 = vld [vmem:[%s4 + $0x360] sm:$0xff]
        %v379 = vld [vmem:[%s4 + $0x368] sm:$0xff]
        %v380 = vld [vmem:[%s4 + $0x370] sm:$0xff]
        %v381 = vld [vmem:[%s4 + $0x378] sm:$0xff]
        %v382 = vld [vmem:[%s4 + $0x380] sm:$0xff]
        %v383 = vld [vmem:[%s4 + $0x388] sm:$0xff]
        %v384 = vld [vmem:[%s4 + $0x390] sm:$0xff]
        %v385 = vld [vmem:[%s4 + $0x398] sm:$0xff]
        %v386 = vld [vmem:[%s4 + $0x3a0] sm:$0xff]
        %v387 = vld [vmem:[%s4 + $0x3a8] sm:$0xff]
        %v388 = vld [vmem:[%s4 + $0x3b0] sm:$0xff]
        %v389 = vld [vmem:[%s4 + $0x3b8] sm:$0xff]
        %v390 = vld [vmem:[%s4 + $0x3c0] sm:$0xff]
        %v391 = vld [vmem:[%s4 + $0x3c8] sm:$0xff]
        %v392 = vld [vmem:[%s4 + $0x3d0] sm:$0xff]
        %v393 = vld [vmem:[%s4 + $0x3d8] sm:$0xff]
        %v394 = vld [vmem:[%s4 + $0x3e0] sm:$0xff]
        %v395 = vld [vmem:[%s4 + $0x3e8] sm:$0xff]
        %v396 = vld [vmem:[%s4 + $0x3f0] sm:$0xff]
        %v397 = vld [vmem:[%s4 + $0x3f8] sm:$0xff]
        %v398 = vld [vmem:[%s5] sm:$0xff]
        %v399 = vld [vmem:[%s5 + $0x8] sm:$0xff]
        %v400 = vld [vmem:[%s5 + $0x10] sm:$0xff]
        %v401 = vld [vmem:[%s5 + $0x18] sm:$0xff]
        %v402 = vld [vmem:[%s250] sm:$0xff]
        %v403 = vld [vmem:[%s250 + $0x8] sm:$0xff]
        %v404 = vld [vmem:[%s250 + $0x10] sm:$0xff]
        %v405 = vld [vmem:[%s250 + $0x18] sm:$0xff]
        %v406 = vld [vmem:[%s250 + $0x20] sm:$0xff]
        %v407 = vld [vmem:[%s250 + $0x28] sm:$0xff]
        %v408 = vld [vmem:[%s250 + $0x30] sm:$0xff]
        %v409 = vld [vmem:[%s250 + $0x38] sm:$0xff]
        %410 = vrot.lane.b32.xlu0 %v402, 17
        %v411 = vpop.permute.xlu0 %410
        %412 = vrot.lane.b32.xlu0 %v403, 17
        %v413 = vpop.permute.xlu0 %412
        %414 = vrot.lane.b32.xlu0 %v404, 17
        %v415 = vpop.permute.xlu0 %414
        %416 = vrot.lane.b32.xlu0 %v405, 17
        %v417 = vpop.permute.xlu0 %416
        %418 = vrot.lane.b32.xlu0 %v406, 17
        %v419 = vpop.permute.xlu0 %418
        %420 = vrot.lane.b32.xlu0 %v407, 17
        %v421 = vpop.permute.xlu0 %420
        %422 = vrot.lane.b32.xlu0 %v408, 17
        %v423 = vpop.permute.xlu0 %422
        %424 = vrot.lane.b32.xlu0 %v409, 17
        %v425 = vpop.permute.xlu0 %424
        %v426 = vlaneseq
        %v427 = vand.u32 %v426, 127
        %vm428 = vcmp.lt.s32.totalorder %v427, 17
        %v429 = vsel %vm428, %v423, %v425
        %v430 = vsel %vm428, %v421, %v423
        %v431 = vsel %vm428, %v419, %v421
        %v432 = vsel %vm428, %v417, %v419
        %v433 = vsel %vm428, %v415, %v417
        %v434 = vsel %vm428, %v413, %v415
        %v435 = vsel %vm428, %v411, %v413
        %v436 = vsel %vm428, %v425, %v411
        %v437 = vperm.slane %v254, 0
        %v438 = vperm.slane %v255, 0
        %v439 = vperm.slane %v256, 0
        %v440 = vperm.slane %v257, 0
        %v441 = vperm.slane %v258, 0
        %v442 = vperm.slane %v259, 0
        %v443 = vperm.slane %v260, 0
        %v444 = vperm.slane %v261, 0
        %v445 = vmul.f32 %v436, %v437
        %v446 = vmul.f32 %v435, %v438
        %v447 = vmul.f32 %v434, %v439
        %v448 = vmul.f32 %v433, %v440
        %v449 = vmul.f32 %v432, %v441
        %v450 = vmul.f32 %v431, %v442
        %v451 = vmul.f32 %v430, %v443
        %v452 = vmul.f32 %v429, %v444
        %453 = vrot.lane.b32.xlu0 %v402, 16
        %v454 = vpop.permute.xlu0 %453
        %455 = vrot.lane.b32.xlu0 %v403, 16
        %v456 = vpop.permute.xlu0 %455
        %457 = vrot.lane.b32.xlu0 %v404, 16
        %v458 = vpop.permute.xlu0 %457
        %459 = vrot.lane.b32.xlu0 %v405, 16
        %v460 = vpop.permute.xlu0 %459
        %461 = vrot.lane.b32.xlu0 %v406, 16
        %v462 = vpop.permute.xlu0 %461
        %463 = vrot.lane.b32.xlu0 %v407, 16
        %v464 = vpop.permute.xlu0 %463
        %465 = vrot.lane.b32.xlu0 %v408, 16
        %v466 = vpop.permute.xlu0 %465
        %467 = vrot.lane.b32.xlu0 %v409, 16
        %v468 = vpop.permute.xlu0 %467
        %vm469 = vcmp.lt.s32.totalorder %v427, 16
        %v470 = vsel %vm469, %v466, %v468
        %v471 = vsel %vm469, %v464, %v466
        %v472 = vsel %vm469, %v462, %v464
        %v473 = vsel %vm469, %v460, %v462
        %v474 = vsel %vm469, %v458, %v460
        %v475 = vsel %vm469, %v456, %v458
        %v476 = vsel %vm469, %v454, %v456
        %v477 = vsel %vm469, %v468, %v454
        %v478 = vperm.slane %v254, 1
        %v479 = vperm.slane %v255, 1
        %v480 = vperm.slane %v256, 1
        %v481 = vperm.slane %v257, 1
        %v482 = vperm.slane %v258, 1
        %v483 = vperm.slane %v259, 1
        %v484 = vperm.slane %v260, 1
        %v485 = vperm.slane %v261, 1
        %v486 = vmul.f32 %v477, %v478
        %v487 = vmul.f32 %v476, %v479
        %v488 = vmul.f32 %v475, %v480
        %v489 = vmul.f32 %v474, %v481
        %v490 = vmul.f32 %v473, %v482
        %v491 = vmul.f32 %v472, %v483
        %v492 = vmul.f32 %v471, %v484
        %v493 = vmul.f32 %v470, %v485
        %494 = vrot.lane.b32.xlu0 %v402, 15
        %v495 = vpop.permute.xlu0 %494
        %496 = vrot.lane.b32.xlu0 %v403, 15
        %v497 = vpop.permute.xlu0 %496
        %498 = vrot.lane.b32.xlu0 %v404, 15
        %v499 = vpop.permute.xlu0 %498
        %500 = vrot.lane.b32.xlu0 %v405, 15
        %v501 = vpop.permute.xlu0 %500
        %502 = vrot.lane.b32.xlu0 %v406, 15
        %v503 = vpop.permute.xlu0 %502
        %504 = vrot.lane.b32.xlu0 %v407, 15
        %v505 = vpop.permute.xlu0 %504
        %506 = vrot.lane.b32.xlu0 %v408, 15
        %v507 = vpop.permute.xlu0 %506
        %508 = vrot.lane.b32.xlu0 %v409, 15
        %v509 = vpop.permute.xlu0 %508
        %vm510 = vcmp.lt.s32.totalorder %v427, 15
        %v511 = vsel %vm510, %v507, %v509
        %v512 = vsel %vm510, %v505, %v507
        %v513 = vsel %vm510, %v503, %v505
        %v514 = vsel %vm510, %v501, %v503
        %v515 = vsel %vm510, %v499, %v501
        %v516 = vsel %vm510, %v497, %v499
        %v517 = vsel %vm510, %v495, %v497
        %v518 = vsel %vm510, %v509, %v495
        %v519 = vperm.slane %v254, 2
        %v520 = vperm.slane %v255, 2
        %v521 = vperm.slane %v256, 2
        %v522 = vperm.slane %v257, 2
        %v523 = vperm.slane %v258, 2
        %v524 = vperm.slane %v259, 2
        %v525 = vperm.slane %v260, 2
        %v526 = vperm.slane %v261, 2
        %v527 = vmul.f32 %v518, %v519
        %v528 = vmul.f32 %v517, %v520
        %v529 = vmul.f32 %v516, %v521
        %v530 = vmul.f32 %v515, %v522
        %v531 = vmul.f32 %v514, %v523
        %v532 = vmul.f32 %v513, %v524
        %v533 = vmul.f32 %v512, %v525
        %v534 = vmul.f32 %v511, %v526
        %535 = vrot.lane.b32.xlu0 %v402, 1
        %v536 = vpop.permute.xlu0 %535
        %537 = vrot.lane.b32.xlu0 %v403, 1
        %v538 = vpop.permute.xlu0 %537
        %539 = vrot.lane.b32.xlu0 %v404, 1
        %v540 = vpop.permute.xlu0 %539
        %541 = vrot.lane.b32.xlu0 %v405, 1
        %v542 = vpop.permute.xlu0 %541
        %543 = vrot.lane.b32.xlu0 %v406, 1
        %v544 = vpop.permute.xlu0 %543
        %545 = vrot.lane.b32.xlu0 %v407, 1
        %v546 = vpop.permute.xlu0 %545
        %547 = vrot.lane.b32.xlu0 %v408, 1
        %v548 = vpop.permute.xlu0 %547
        %549 = vrot.lane.b32.xlu0 %v409, 1
        %v550 = vpop.permute.xlu0 %549
        %vm551 = vcmp.lt.s32.totalorder %v427, 1
        %v552 = vsel %vm551, %v548, %v550
        %v553 = vsel %vm551, %v546, %v548
        %v554 = vsel %vm551, %v544, %v546
        %v555 = vsel %vm551, %v542, %v544
        %v556 = vsel %vm551, %v540, %v542
        %v557 = vsel %vm551, %v538, %v540
        %v558 = vsel %vm551, %v536, %v538
        %v559 = vsel %vm551, %v550, %v536
        %v560 = vperm.slane %v254, 3
        %v561 = vperm.slane %v255, 3
        %v562 = vperm.slane %v256, 3
        %v563 = vperm.slane %v257, 3
        %v564 = vperm.slane %v258, 3
        %v565 = vperm.slane %v259, 3
        %v566 = vperm.slane %v260, 3
        %v567 = vperm.slane %v261, 3
        %v568 = vmul.f32 %v559, %v560
        %v569 = vmul.f32 %v558, %v561
        %v570 = vmul.f32 %v557, %v562
        %v571 = vmul.f32 %v556, %v563
        %v572 = vmul.f32 %v555, %v564
        %v573 = vmul.f32 %v554, %v565
        %v574 = vmul.f32 %v553, %v566
        %v575 = vmul.f32 %v552, %v567
        %576 = vrot.lane.b32.xlu0 %v402, 127
        %v577 = vpop.permute.xlu0 %576
        %578 = vrot.lane.b32.xlu0 %v403, 127
        %v579 = vpop.permute.xlu0 %578
        %580 = vrot.lane.b32.xlu0 %v404, 127
        %v581 = vpop.permute.xlu0 %580
        %582 = vrot.lane.b32.xlu0 %v405, 127
        %v583 = vpop.permute.xlu0 %582
        %584 = vrot.lane.b32.xlu0 %v406, 127
        %v585 = vpop.permute.xlu0 %584
        %586 = vrot.lane.b32.xlu0 %v407, 127
        %v587 = vpop.permute.xlu0 %586
        %588 = vrot.lane.b32.xlu0 %v408, 127
        %v589 = vpop.permute.xlu0 %588
        %590 = vrot.lane.b32.xlu0 %v409, 127
        %v591 = vpop.permute.xlu0 %590
        %vm592 = vcmp.lt.s32.totalorder %v427, 127
        %v593 = vsel %vm592, %v589, %v591
        %v594 = vsel %vm592, %v587, %v589
        %v595 = vsel %vm592, %v585, %v587
        %v596 = vsel %vm592, %v583, %v585
        %v597 = vsel %vm592, %v581, %v583
        %v598 = vsel %vm592, %v579, %v581
        %v599 = vsel %vm592, %v577, %v579
        %v600 = vsel %vm592, %v591, %v577
        %v601 = vperm.slane %v254, 5
        %v602 = vperm.slane %v255, 5
        %v603 = vperm.slane %v256, 5
        %v604 = vperm.slane %v257, 5
        %v605 = vperm.slane %v258, 5
        %v606 = vperm.slane %v259, 5
        %v607 = vperm.slane %v260, 5
        %v608 = vperm.slane %v261, 5
        %v609 = vmul.f32 %v599, %v601
        %v610 = vmul.f32 %v598, %v602
        %v611 = vmul.f32 %v597, %v603
        %v612 = vmul.f32 %v596, %v604
        %v613 = vmul.f32 %v595, %v605
        %v614 = vmul.f32 %v594, %v606
        %v615 = vmul.f32 %v593, %v607
        %v616 = vmul.f32 %v600, %v608
        %617 = vrot.lane.b32.xlu0 %v402, 113
        %v618 = vpop.permute.xlu0 %617
        %619 = vrot.lane.b32.xlu0 %v403, 113
        %v620 = vpop.permute.xlu0 %619
        %621 = vrot.lane.b32.xlu0 %v404, 113
        %v622 = vpop.permute.xlu0 %621
        %623 = vrot.lane.b32.xlu0 %v405, 113
        %v624 = vpop.permute.xlu0 %623
        %625 = vrot.lane.b32.xlu0 %v406, 113
        %v626 = vpop.permute.xlu0 %625
        %627 = vrot.lane.b32.xlu0 %v407, 113
        %v628 = vpop.permute.xlu0 %627
        %629 = vrot.lane.b32.xlu0 %v408, 113
        %v630 = vpop.permute.xlu0 %629
        %631 = vrot.lane.b32.xlu0 %v409, 113
        %v632 = vpop.permute.xlu0 %631
        %vm633 = vcmp.lt.s32.totalorder %v427, 113
        %v634 = vsel %vm633, %v630, %v632
        %v635 = vsel %vm633, %v628, %v630
        %v636 = vsel %vm633, %v626, %v628
        %v637 = vsel %vm633, %v624, %v626
        %v638 = vsel %vm633, %v622, %v624
        %v639 = vsel %vm633, %v620, %v622
        %v640 = vsel %vm633, %v618, %v620
        %v641 = vsel %vm633, %v632, %v618
        %v642 = vperm.slane %v254, 6
        %v643 = vperm.slane %v255, 6
        %v644 = vperm.slane %v256, 6
        %v645 = vperm.slane %v257, 6
        %v646 = vperm.slane %v258, 6
        %v647 = vperm.slane %v259, 6
        %v648 = vperm.slane %v260, 6
        %v649 = vperm.slane %v261, 6
        %v650 = vmul.f32 %v640, %v642
        %v651 = vmul.f32 %v639, %v643
        %v652 = vmul.f32 %v638, %v644
        %v653 = vmul.f32 %v637, %v645
        %v654 = vmul.f32 %v636, %v646
        %v655 = vmul.f32 %v635, %v647
        %v656 = vmul.f32 %v634, %v648
        %v657 = vmul.f32 %v641, %v649
        %658 = vrot.lane.b32.xlu0 %v402, 112
        %v659 = vpop.permute.xlu0 %658
        %660 = vrot.lane.b32.xlu0 %v403, 112
        %v661 = vpop.permute.xlu0 %660
        %662 = vrot.lane.b32.xlu0 %v404, 112
        %v663 = vpop.permute.xlu0 %662
        %664 = vrot.lane.b32.xlu0 %v405, 112
        %v665 = vpop.permute.xlu0 %664
        %666 = vrot.lane.b32.xlu0 %v406, 112
        %v667 = vpop.permute.xlu0 %666
        %668 = vrot.lane.b32.xlu0 %v407, 112
        %v669 = vpop.permute.xlu0 %668
        %670 = vrot.lane.b32.xlu0 %v408, 112
        %v671 = vpop.permute.xlu0 %670
        %672 = vrot.lane.b32.xlu0 %v409, 112
        %v673 = vpop.permute.xlu0 %672
        %vm674 = vcmp.lt.s32.totalorder %v427, 112
        %v675 = vsel %vm674, %v671, %v673
        %v676 = vsel %vm674, %v669, %v671
        %v677 = vsel %vm674, %v667, %v669
        %v678 = vsel %vm674, %v665, %v667
        %v679 = vsel %vm674, %v663, %v665
        %v680 = vsel %vm674, %v661, %v663
        %v681 = vsel %vm674, %v659, %v661
        %v682 = vsel %vm674, %v673, %v659
        %v683 = vperm.slane %v254, 7
        %v684 = vperm.slane %v255, 7
        %v685 = vperm.slane %v256, 7
        %v686 = vperm.slane %v257, 7
        %v687 = vperm.slane %v258, 7
        %v688 = vperm.slane %v259, 7
        %v689 = vperm.slane %v260, 7
        %v690 = vperm.slane %v261, 7
        %v691 = vmul.f32 %v681, %v683
        %v692 = vmul.f32 %v680, %v684
        %v693 = vmul.f32 %v679, %v685
        %v694 = vmul.f32 %v678, %v686
        %v695 = vmul.f32 %v677, %v687
        %v696 = vmul.f32 %v676, %v688
        %v697 = vmul.f32 %v675, %v689
        %v698 = vmul.f32 %v682, %v690
        %699 = vrot.lane.b32.xlu0 %v402, 111
        %v700 = vpop.permute.xlu0 %699
        %701 = vrot.lane.b32.xlu0 %v403, 111
        %v702 = vpop.permute.xlu0 %701
        %703 = vrot.lane.b32.xlu0 %v404, 111
        %v704 = vpop.permute.xlu0 %703
        %705 = vrot.lane.b32.xlu0 %v405, 111
        %v706 = vpop.permute.xlu0 %705
        %707 = vrot.lane.b32.xlu0 %v406, 111
        %v708 = vpop.permute.xlu0 %707
        %709 = vrot.lane.b32.xlu0 %v407, 111
        %v710 = vpop.permute.xlu0 %709
        %711 = vrot.lane.b32.xlu0 %v408, 111
        %v712 = vpop.permute.xlu0 %711
        %713 = vrot.lane.b32.xlu0 %v409, 111
        %v714 = vpop.permute.xlu0 %713
        %vm715 = vcmp.lt.s32.totalorder %v427, 111
        %v716 = vsel %vm715, %v712, %v714
        %v717 = vsel %vm715, %v710, %v712
        %v718 = vsel %vm715, %v708, %v710
        %v719 = vsel %vm715, %v706, %v708
        %v720 = vsel %vm715, %v704, %v706
        %v721 = vsel %vm715, %v702, %v704
        %v722 = vsel %vm715, %v700, %v702
        %v723 = vsel %vm715, %v714, %v700
        %v724 = vperm.slane %v262, 0
        %v725 = vperm.slane %v263, 0
        %v726 = vperm.slane %v264, 0
        %v727 = vperm.slane %v265, 0
        %v728 = vperm.slane %v266, 0
        %v729 = vperm.slane %v267, 0
        %v730 = vperm.slane %v268, 0
        %v731 = vperm.slane %v269, 0
        %v732 = vmul.f32 %v722, %v724
        %v733 = vmul.f32 %v721, %v725
        %v734 = vmul.f32 %v720, %v726
        %v735 = vmul.f32 %v719, %v727
        %v736 = vmul.f32 %v718, %v728
        %v737 = vmul.f32 %v717, %v729
        %v738 = vmul.f32 %v716, %v730
        %v739 = vmul.f32 %v723, %v731
        %v740 = vpack.c.bf16 %v486, %v445
        %v741 = vpack.c.bf16 %v487, %v446
        %v742 = vpack.c.bf16 %v488, %v447
        %v743 = vpack.c.bf16 %v489, %v448
        %v744 = vpack.c.bf16 %v490, %v449
        %v745 = vpack.c.bf16 %v491, %v450
        %v746 = vpack.c.bf16 %v492, %v451
        %v747 = vpack.c.bf16 %v493, %v452
        %v748 = vpack.c.bf16 %v568, %v527
        %v749 = vpack.c.bf16 %v569, %v528
        %v750 = vpack.c.bf16 %v570, %v529
        %v751 = vpack.c.bf16 %v571, %v530
        %v752 = vpack.c.bf16 %v572, %v531
        %v753 = vpack.c.bf16 %v573, %v532
        %v754 = vpack.c.bf16 %v574, %v533
        %v755 = vpack.c.bf16 %v575, %v534
        %v756 = vpack.c.bf16 %v609, %v402
        %v757 = vpack.c.bf16 %v610, %v403
        %v758 = vpack.c.bf16 %v611, %v404
        %v759 = vpack.c.bf16 %v612, %v405
        %v760 = vpack.c.bf16 %v613, %v406
        %v761 = vpack.c.bf16 %v614, %v407
        %v762 = vpack.c.bf16 %v615, %v408
        %v763 = vpack.c.bf16 %v616, %v409
        %v764 = vpack.c.bf16 %v691, %v650
        %v765 = vpack.c.bf16 %v692, %v651
        %v766 = vpack.c.bf16 %v693, %v652
        %v767 = vpack.c.bf16 %v694, %v653
        %v768 = vpack.c.bf16 %v695, %v654
        %v769 = vpack.c.bf16 %v696, %v655
        %v770 = vpack.c.bf16 %v697, %v656
        %v771 = vpack.c.bf16 %v698, %v657
        %v772 = vpack.c.bf16 %v732, %v732
        %v773 = vpack.c.bf16 %v733, %v733
        %v774 = vpack.c.bf16 %v734, %v734
        %v775 = vpack.c.bf16 %v735, %v735
        %v776 = vpack.c.bf16 %v736, %v736
        %v777 = vpack.c.bf16 %v737, %v737
        %v778 = vpack.c.bf16 %v738, %v738
        %v779 = vpack.c.bf16 %v739, %v739
        %v780 = vld [vmem:[%s1] sm:$0xf]
        %vm781 = vcmask 588800
        %v783 = vsel %vm781, %v780, 0
        %vm785 = vcmask 1043456
        %v787 = vsel %vm785, %v772, 0
        %v790 = vsel %vm785, %v773, 0
        %v793 = vsel %vm785, %v774, 0
        %v796 = vsel %vm785, %v775, 0
        %v799 = vsel %vm785, %v776, 0
        %v802 = vsel %vm785, %v777, 0
        %v805 = vsel %vm785, %v778, 0
        %v808 = vsel %vm785, %v779, 0
        %810 = vmatpush.bf16.msra.mxu0 0
        %811 = vmatpush.bf16.msra.mxu0 0
        %812 = vmatpush.bf16.msra.mxu0 0
        %813 = vmatpush.bf16.msra.mxu0 %v787
        %814 = vmatpush.bf16.msra.mxu0 %v764
        %815 = vmatpush.bf16.msra.mxu0 %v756
        %816 = vmatpush.bf16.msra.mxu0 %v748
        %817 = vmatpush.bf16.msra.mxu0 %v740
        %818 = vmatmul.bf16.gmra.mxu0 %v783
        %v819 = vpop.f32.mrf.mxu0
        %v820 = vadd.f32 0.0, %v819
        %v821 = vpop.f32.mrf.mxu0
        %822 = vdwg.mxu0
        %823 = vmatpush.bf16.msra.mxu0 0
        %824 = vmatpush.bf16.msra.mxu0 0
        %825 = vmatpush.bf16.msra.mxu0 0
        %826 = vmatpush.bf16.msra.mxu0 %v790
        %827 = vmatpush.bf16.msra.mxu0 %v765
        %828 = vmatpush.bf16.msra.mxu0 %v757
        %829 = vmatpush.bf16.msra.mxu0 %v749
        %830 = vmatpush.bf16.msra.mxu0 %v741
        %831 = vmatmul.bf16.gmra.mxu0 %v783
        %v832 = vpop.f32.mrf.mxu0
        %v833 = vadd.f32 0.0, %v832
        %v834 = vpop.f32.mrf.mxu0
        %835 = vdwg.mxu0
        %836 = vmatpush.bf16.msra.mxu0 0
        %837 = vmatpush.bf16.msra.mxu0 0
        %838 = vmatpush.bf16.msra.mxu0 0
        %839 = vmatpush.bf16.msra.mxu0 %v793
        %840 = vmatpush.bf16.msra.mxu0 %v766
        %841 = vmatpush.bf16.msra.mxu0 %v758
        %842 = vmatpush.bf16.msra.mxu0 %v750
        %843 = vmatpush.bf16.msra.mxu0 %v742
        %844 = vmatmul.bf16.gmra.mxu0 %v783
        %v845 = vpop.f32.mrf.mxu0
        %v846 = vadd.f32 0.0, %v845
        %v847 = vpop.f32.mrf.mxu0
        %848 = vdwg.mxu0
        %849 = vmatpush.bf16.msra.mxu0 0
        %850 = vmatpush.bf16.msra.mxu0 0
        %851 = vmatpush.bf16.msra.mxu0 0
        %852 = vmatpush.bf16.msra.mxu0 %v796
        %853 = vmatpush.bf16.msra.mxu0 %v767
        %854 = vmatpush.bf16.msra.mxu0 %v759
        %855 = vmatpush.bf16.msra.mxu0 %v751
        %856 = vmatpush.bf16.msra.mxu0 %v743
        %857 = vmatmul.bf16.gmra.mxu0 %v783
        %v858 = vpop.f32.mrf.mxu0
        %v859 = vadd.f32 0.0, %v858
        %v860 = vpop.f32.mrf.mxu0
        %861 = vdwg.mxu0
        %862 = vmatpush.bf16.msra.mxu0 0
        %863 = vmatpush.bf16.msra.mxu0 0
        %864 = vmatpush.bf16.msra.mxu0 0
        %865 = vmatpush.bf16.msra.mxu0 %v799
        %866 = vmatpush.bf16.msra.mxu0 %v768
        %867 = vmatpush.bf16.msra.mxu0 %v760
        %868 = vmatpush.bf16.msra.mxu0 %v752
        %869 = vmatpush.bf16.msra.mxu0 %v744
        %870 = vmatmul.bf16.gmra.mxu0 %v783
        %v871 = vpop.f32.mrf.mxu0
        %v872 = vadd.f32 0.0, %v871
        %v873 = vpop.f32.mrf.mxu0
        %874 = vdwg.mxu0
        %875 = vmatpush.bf16.msra.mxu0 0
        %876 = vmatpush.bf16.msra.mxu0 0
        %877 = vmatpush.bf16.msra.mxu0 0
        %878 = vmatpush.bf16.msra.mxu0 %v802
        %879 = vmatpush.bf16.msra.mxu0 %v769
        %880 = vmatpush.bf16.msra.mxu0 %v761
        %881 = vmatpush.bf16.msra.mxu0 %v753
        %882 = vmatpush.bf16.msra.mxu0 %v745
        %883 = vmatmul.bf16.gmra.mxu0 %v783
        %v884 = vpop.f32.mrf.mxu0
        %v885 = vadd.f32 0.0, %v884
        %v886 = vpop.f32.mrf.mxu0
        %887 = vdwg.mxu0
        %888 = vmatpush.bf16.msra.mxu0 0
        %889 = vmatpush.bf16.msra.mxu0 0
        %890 = vmatpush.bf16.msra.mxu0 0
        %891 = vmatpush.bf16.msra.mxu0 %v805
        %892 = vmatpush.bf16.msra.mxu0 %v770
        %893 = vmatpush.bf16.msra.mxu0 %v762
        %894 = vmatpush.bf16.msra.mxu0 %v754
        %895 = vmatpush.bf16.msra.mxu0 %v746
        %896 = vmatmul.bf16.gmra.mxu0 %v783
        %v897 = vpop.f32.mrf.mxu0
        %v898 = vadd.f32 0.0, %v897
        %v899 = vpop.f32.mrf.mxu0
        %900 = vdwg.mxu0
        %901 = vmatpush.bf16.msra.mxu0 0
        %902 = vmatpush.bf16.msra.mxu0 0
        %903 = vmatpush.bf16.msra.mxu0 0
        %904 = vmatpush.bf16.msra.mxu0 %v808
        %905 = vmatpush.bf16.msra.mxu0 %v771
        %906 = vmatpush.bf16.msra.mxu0 %v763
        %907 = vmatpush.bf16.msra.mxu0 %v755
        %908 = vmatpush.bf16.msra.mxu0 %v747
        %909 = vmatmul.bf16.gmra.mxu0 %v783
        %v910 = vpop.f32.mrf.mxu0
        %v911 = vadd.f32 0.0, %v910
        %v912 = vpop.f32.mrf.mxu0
        %913 = vdwg.mxu0
        %914 = vmatpush.msra.mxu0 %v285
        %915 = vmatpush.msra.mxu0 %v284
        %916 = vmatpush.msra.mxu0 %v283
        %917 = vmatpush.msra.mxu0 %v282
        %918 = vmatpush.msra.mxu0 %v281
        %919 = vmatpush.msra.mxu0 %v280
        %920 = vmatpush.msra.mxu0 %v279
        %921 = vmatpush.msra.mxu0 %v278
        %922 = vmatpush.msra.mxu0 %v277
        %923 = vmatpush.msra.mxu0 %v276
        %924 = vmatpush.msra.mxu0 %v275
        %925 = vmatpush.msra.mxu0 %v274
        %926 = vmatpush.msra.mxu0 %v273
        %927 = vmatpush.msra.mxu0 %v272
        %928 = vmatpush.msra.mxu0 %v271
        %929 = vmatpush.msra.mxu0 %v270
        %930 = vmatmul.f32.gmra.mxu0 %v820
        %v931 = vpop.f32.mrf.mxu0
        %v932 = vadd.f32 0.0, %v931
        %933 = vdwg.mxu0
        %934 = vmatpush.msra.mxu0 %v301
        %935 = vmatpush.msra.mxu0 %v300
        %936 = vmatpush.msra.mxu0 %v299
        %937 = vmatpush.msra.mxu0 %v298
        %938 = vmatpush.msra.mxu0 %v297
        %939 = vmatpush.msra.mxu0 %v296
        %940 = vmatpush.msra.mxu0 %v295
        %941 = vmatpush.msra.mxu0 %v294
        %942 = vmatpush.msra.mxu0 %v293
        %943 = vmatpush.msra.mxu0 %v292
        %944 = vmatpush.msra.mxu0 %v291
        %945 = vmatpush.msra.mxu0 %v290
        %946 = vmatpush.msra.mxu0 %v289
        %947 = vmatpush.msra.mxu0 %v288
        %948 = vmatpush.msra.mxu0 %v287
        %949 = vmatpush.msra.mxu0 %v286
        %950 = vmatmul.f32.gmra.mxu0 %v833
        %v951 = vpop.f32.mrf.mxu0
        %v952 = vadd.f32 %v932, %v951
        %953 = vdwg.mxu0
        %954 = vmatpush.msra.mxu0 %v317
        %955 = vmatpush.msra.mxu0 %v316
        %956 = vmatpush.msra.mxu0 %v315
        %957 = vmatpush.msra.mxu0 %v314
        %958 = vmatpush.msra.mxu0 %v313
        %959 = vmatpush.msra.mxu0 %v312
        %960 = vmatpush.msra.mxu0 %v311
        %961 = vmatpush.msra.mxu0 %v310
        %962 = vmatpush.msra.mxu0 %v309
        %963 = vmatpush.msra.mxu0 %v308
        %964 = vmatpush.msra.mxu0 %v307
        %965 = vmatpush.msra.mxu0 %v306
        %966 = vmatpush.msra.mxu0 %v305
        %967 = vmatpush.msra.mxu0 %v304
        %968 = vmatpush.msra.mxu0 %v303
        %969 = vmatpush.msra.mxu0 %v302
        %970 = vmatmul.f32.gmra.mxu0 %v846
        %v971 = vpop.f32.mrf.mxu0
        %v972 = vadd.f32 %v952, %v971
        %973 = vdwg.mxu0
        %974 = vmatpush.msra.mxu0 %v333
        %975 = vmatpush.msra.mxu0 %v332
        %976 = vmatpush.msra.mxu0 %v331
        %977 = vmatpush.msra.mxu0 %v330
        %978 = vmatpush.msra.mxu0 %v329
        %979 = vmatpush.msra.mxu0 %v328
        %980 = vmatpush.msra.mxu0 %v327
        %981 = vmatpush.msra.mxu0 %v326
        %982 = vmatpush.msra.mxu0 %v325
        %983 = vmatpush.msra.mxu0 %v324
        %984 = vmatpush.msra.mxu0 %v323
        %985 = vmatpush.msra.mxu0 %v322
        %986 = vmatpush.msra.mxu0 %v321
        %987 = vmatpush.msra.mxu0 %v320
        %988 = vmatpush.msra.mxu0 %v319
        %989 = vmatpush.msra.mxu0 %v318
        %990 = vmatmul.f32.gmra.mxu0 %v859
        %v991 = vpop.f32.mrf.mxu0
        %v992 = vadd.f32 %v972, %v991
        %993 = vdwg.mxu0
        %994 = vmatpush.msra.mxu0 %v349
        %995 = vmatpush.msra.mxu0 %v348
        %996 = vmatpush.msra.mxu0 %v347
        %997 = vmatpush.msra.mxu0 %v346
        %998 = vmatpush.msra.mxu0 %v345
        %999 = vmatpush.msra.mxu0 %v344
        %1000 = vmatpush.msra.mxu0 %v343
        %1001 = vmatpush.msra.mxu0 %v342
        %1002 = vmatpush.msra.mxu0 %v341
        %1003 = vmatpush.msra.mxu0 %v340
        %1004 = vmatpush.msra.mxu0 %v339
        %1005 = vmatpush.msra.mxu0 %v338
        %1006 = vmatpush.msra.mxu0 %v337
        %1007 = vmatpush.msra.mxu0 %v336
        %1008 = vmatpush.msra.mxu0 %v335
        %1009 = vmatpush.msra.mxu0 %v334
        %1010 = vmatmul.f32.gmra.mxu0 %v872
        %v1011 = vpop.f32.mrf.mxu0
        %v1012 = vadd.f32 %v992, %v1011
        %1013 = vdwg.mxu0
        %1014 = vmatpush.msra.mxu0 %v365
        %1015 = vmatpush.msra.mxu0 %v364
        %1016 = vmatpush.msra.mxu0 %v363
        %1017 = vmatpush.msra.mxu0 %v362
        %1018 = vmatpush.msra.mxu0 %v361
        %1019 = vmatpush.msra.mxu0 %v360
        %1020 = vmatpush.msra.mxu0 %v359
        %1021 = vmatpush.msra.mxu0 %v358
        %1022 = vmatpush.msra.mxu0 %v357
        %1023 = vmatpush.msra.mxu0 %v356
        %1024 = vmatpush.msra.mxu0 %v355
        %1025 = vmatpush.msra.mxu0 %v354
        %1026 = vmatpush.msra.mxu0 %v353
        %1027 = vmatpush.msra.mxu0 %v352
        %1028 = vmatpush.msra.mxu0 %v351
        %1029 = vmatpush.msra.mxu0 %v350
        %1030 = vmatmul.f32.gmra.mxu0 %v885
        %v1031 = vpop.f32.mrf.mxu0
        %v1032 = vadd.f32 %v1012, %v1031
        %1033 = vdwg.mxu0
        %1034 = vmatpush.msra.mxu0 %v381
        %1035 = vmatpush.msra.mxu0 %v380
        %1036 = vmatpush.msra.mxu0 %v379
        %1037 = vmatpush.msra.mxu0 %v378
        %1038 = vmatpush.msra.mxu0 %v377
        %1039 = vmatpush.msra.mxu0 %v376
        %1040 = vmatpush.msra.mxu0 %v375
        %1041 = vmatpush.msra.mxu0 %v374
        %1042 = vmatpush.msra.mxu0 %v373
        %1043 = vmatpush.msra.mxu0 %v372
        %1044 = vmatpush.msra.mxu0 %v371
        %1045 = vmatpush.msra.mxu0 %v370
        %1046 = vmatpush.msra.mxu0 %v369
        %1047 = vmatpush.msra.mxu0 %v368
        %1048 = vmatpush.msra.mxu0 %v367
        %1049 = vmatpush.msra.mxu0 %v366
        %1050 = vmatmul.f32.gmra.mxu0 %v898
        %v1051 = vpop.f32.mrf.mxu0
        %v1052 = vadd.f32 %v1032, %v1051
        %1053 = vdwg.mxu0
        %1054 = vmatpush.msra.mxu0 %v397
        %1055 = vmatpush.msra.mxu0 %v396
        %1056 = vmatpush.msra.mxu0 %v395
        %1057 = vmatpush.msra.mxu0 %v394
        %1058 = vmatpush.msra.mxu0 %v393
        %1059 = vmatpush.msra.mxu0 %v392
        %1060 = vmatpush.msra.mxu0 %v391
        %1061 = vmatpush.msra.mxu0 %v390
        %1062 = vmatpush.msra.mxu0 %v389
        %1063 = vmatpush.msra.mxu0 %v388
        %1064 = vmatpush.msra.mxu0 %v387
        %1065 = vmatpush.msra.mxu0 %v386
        %1066 = vmatpush.msra.mxu0 %v385
        %1067 = vmatpush.msra.mxu0 %v384
        %1068 = vmatpush.msra.mxu0 %v383
        %1069 = vmatpush.msra.mxu0 %v382
        %1070 = vmatmul.f32.gmra.mxu0 %v911
        %v1071 = vpop.f32.mrf.mxu0
        %v1072 = vadd.f32 %v1052, %v1071
        %1073 = vdwg.mxu0
        %v1074 = vmul.f32 %v1072, 0.00390625
        %1079 = vst [vmem:[#allocation1] ss:$2 sm:$0xff] %v398
        %s1080 = scalar_lea.vmem [#allocation1], 16
        %1081 = vst [vmem:[%s1080] ss:$2 sm:$0xff] %v399
        %s1082 = scalar_lea.vmem [#allocation1], 32
        %1083 = vst [vmem:[%s1082] ss:$2 sm:$0xff] %v400
        %s1084 = scalar_lea.vmem [#allocation1], 48
        %1085 = vst [vmem:[%s1084] ss:$2 sm:$0xff] %v401
        %v1086 = vld.sshfl [vmem:[#allocation1] sm:$0xff pattern:$0x75316420]
        %v1087 = vld.sshfl [vmem:[#allocation1 + $0x8] sm:$0xff pattern:$0x75316420]
        %v1088 = vld.sshfl [vmem:[#allocation1 + $0x10] sm:$0xff pattern:$0x75316420]
        %v1089 = vld.sshfl [vmem:[#allocation1 + $0x18] sm:$0xff pattern:$0x75316420]
        %v1090 = vld.sshfl [vmem:[#allocation1 + $0x20] sm:$0xff pattern:$0x75316420]
        %v1091 = vld.sshfl [vmem:[#allocation1 + $0x28] sm:$0xff pattern:$0x75316420]
        %v1092 = vld.sshfl [vmem:[#allocation1 + $0x30] sm:$0xff pattern:$0x75316420]
        %v1093 = vld.sshfl [vmem:[#allocation1 + $0x38] sm:$0xff pattern:$0x75316420]
        %vm1094 = vcmask 31744
        %v1096 = vsel %vm1094, %v1074, 0
        %v1098 = vsel %vm785, %v1086, 0
        %v1100 = vsel %vm785, %v1087, 0
        %v1102 = vsel %vm785, %v1088, 0
        %v1104 = vsel %vm785, %v1089, 0
        %v1106 = vsel %vm785, %v1090, 0
        %v1108 = vsel %vm785, %v1091, 0
        %v1110 = vsel %vm785, %v1092, 0
        %v1112 = vsel %vm785, %v1093, 0
        %1114 = vmatpush.msra.mxu0 0.0
        %1115 = vmatpush.msra.mxu0 0.0
        %1116 = vmatpush.msra.mxu0 0.0
        %1117 = vmatpush.msra.mxu0 0.0
        %1118 = vmatpush.msra.mxu0 0.0
        %1119 = vmatpush.msra.mxu0 0.0
        %1120 = vmatpush.msra.mxu0 0.0
        %1121 = vmatpush.msra.mxu0 0.0
        %1122 = vmatpush.msra.mxu0 0.0
        %1123 = vmatpush.msra.mxu0 0.0
        %1124 = vmatpush.msra.mxu0 0.0
        %1125 = vmatpush.msra.mxu0 0.0
        %1126 = vmatpush.msra.mxu0 0.0
        %1127 = vmatpush.msra.mxu0 0.0
        %1128 = vmatpush.msra.mxu0 0.0
        %1129 = vmatpush.msra.mxu0 %v1098
        %1130 = vmatmul.f32.gmra.mxu0 %v1096
        %v1131 = vpop.f32.mrf.mxu0
        %v1132 = vadd.f32 0.0, %v1131
        %1133 = vdwg.mxu0
        %1134 = vmatpush.msra.mxu0 0.0
        %1135 = vmatpush.msra.mxu0 0.0
        %1136 = vmatpush.msra.mxu0 0.0
        %1137 = vmatpush.msra.mxu0 0.0
        %1138 = vmatpush.msra.mxu0 0.0
        %1139 = vmatpush.msra.mxu0 0.0
        %1140 = vmatpush.msra.mxu0 0.0
        %1141 = vmatpush.msra.mxu0 0.0
        %1142 = vmatpush.msra.mxu0 0.0
        %1143 = vmatpush.msra.mxu0 0.0
        %1144 = vmatpush.msra.mxu0 0.0
        %1145 = vmatpush.msra.mxu0 0.0
        %1146 = vmatpush.msra.mxu0 0.0
        %1147 = vmatpush.msra.mxu0 0.0
        %1148 = vmatpush.msra.mxu0 0.0
        %1149 = vmatpush.msra.mxu0 %v1100
        %1150 = vmatmul.f32.gmra.mxu0 %v1096
        %v1151 = vpop.f32.mrf.mxu0
        %v1152 = vadd.f32 0.0, %v1151
        %1153 = vdwg.mxu0
        %1154 = vmatpush.msra.mxu0 0.0
        %1155 = vmatpush.msra.mxu0 0.0
        %1156 = vmatpush.msra.mxu0 0.0
        %1157 = vmatpush.msra.mxu0 0.0
        %1158 = vmatpush.msra.mxu0 0.0
        %1159 = vmatpush.msra.mxu0 0.0
        %1160 = vmatpush.msra.mxu0 0.0
        %1161 = vmatpush.msra.mxu0 0.0
        %1162 = vmatpush.msra.mxu0 0.0
        %1163 = vmatpush.msra.mxu0 0.0
        %1164 = vmatpush.msra.mxu0 0.0
        %1165 = vmatpush.msra.mxu0 0.0
        %1166 = vmatpush.msra.mxu0 0.0
        %1167 = vmatpush.msra.mxu0 0.0
        %1168 = vmatpush.msra.mxu0 0.0
        %1169 = vmatpush.msra.mxu0 %v1102
        %1170 = vmatmul.f32.gmra.mxu0 %v1096
        %v1171 = vpop.f32.mrf.mxu0
        %v1172 = vadd.f32 0.0, %v1171
        %1173 = vdwg.mxu0
        %1174 = vmatpush.msra.mxu0 0.0
        %1175 = vmatpush.msra.mxu0 0.0
        %1176 = vmatpush.msra.mxu0 0.0
        %1177 = vmatpush.msra.mxu0 0.0
        %1178 = vmatpush.msra.mxu0 0.0
        %1179 = vmatpush.msra.mxu0 0.0
        %1180 = vmatpush.msra.mxu0 0.0
        %1181 = vmatpush.msra.mxu0 0.0
        %1182 = vmatpush.msra.mxu0 0.0
        %1183 = vmatpush.msra.mxu0 0.0
        %1184 = vmatpush.msra.mxu0 0.0
        %1185 = vmatpush.msra.mxu0 0.0
        %1186 = vmatpush.msra.mxu0 0.0
        %1187 = vmatpush.msra.mxu0 0.0
        %1188 = vmatpush.msra.mxu0 0.0
        %1189 = vmatpush.msra.mxu0 %v1104
        %1190 = vmatmul.f32.gmra.mxu0 %v1096
        %v1191 = vpop.f32.mrf.mxu0
        %v1192 = vadd.f32 0.0, %v1191
        %1193 = vdwg.mxu0
        %1194 = vmatpush.msra.mxu0 0.0
        %1195 = vmatpush.msra.mxu0 0.0
        %1196 = vmatpush.msra.mxu0 0.0
        %1197 = vmatpush.msra.mxu0 0.0
        %1198 = vmatpush.msra.mxu0 0.0
        %1199 = vmatpush.msra.mxu0 0.0
        %1200 = vmatpush.msra.mxu0 0.0
        %1201 = vmatpush.msra.mxu0 0.0
        %1202 = vmatpush.msra.mxu0 0.0
        %1203 = vmatpush.msra.mxu0 0.0
        %1204 = vmatpush.msra.mxu0 0.0
        %1205 = vmatpush.msra.mxu0 0.0
        %1206 = vmatpush.msra.mxu0 0.0
        %1207 = vmatpush.msra.mxu0 0.0
        %1208 = vmatpush.msra.mxu0 0.0
        %1209 = vmatpush.msra.mxu0 %v1106
        %1210 = vmatmul.f32.gmra.mxu0 %v1096
        %v1211 = vpop.f32.mrf.mxu0
        %v1212 = vadd.f32 0.0, %v1211
        %1213 = vdwg.mxu0
        %1214 = vmatpush.msra.mxu0 0.0
        %1215 = vmatpush.msra.mxu0 0.0
        %1216 = vmatpush.msra.mxu0 0.0
        %1217 = vmatpush.msra.mxu0 0.0
        %1218 = vmatpush.msra.mxu0 0.0
        %1219 = vmatpush.msra.mxu0 0.0
        %1220 = vmatpush.msra.mxu0 0.0
        %1221 = vmatpush.msra.mxu0 0.0
        %1222 = vmatpush.msra.mxu0 0.0
        %1223 = vmatpush.msra.mxu0 0.0
        %1224 = vmatpush.msra.mxu0 0.0
        %1225 = vmatpush.msra.mxu0 0.0
        %1226 = vmatpush.msra.mxu0 0.0
        %1227 = vmatpush.msra.mxu0 0.0
        %1228 = vmatpush.msra.mxu0 0.0
        %1229 = vmatpush.msra.mxu0 %v1108
        %1230 = vmatmul.f32.gmra.mxu0 %v1096
        %v1231 = vpop.f32.mrf.mxu0
        %v1232 = vadd.f32 0.0, %v1231
        %1233 = vdwg.mxu0
        %1234 = vmatpush.msra.mxu0 0.0
        %1235 = vmatpush.msra.mxu0 0.0
        %1236 = vmatpush.msra.mxu0 0.0
        %1237 = vmatpush.msra.mxu0 0.0
        %1238 = vmatpush.msra.mxu0 0.0
        %1239 = vmatpush.msra.mxu0 0.0
        %1240 = vmatpush.msra.mxu0 0.0
        %1241 = vmatpush.msra.mxu0 0.0
        %1242 = vmatpush.msra.mxu0 0.0
        %1243 = vmatpush.msra.mxu0 0.0
        %1244 = vmatpush.msra.mxu0 0.0
        %1245 = vmatpush.msra.mxu0 0.0
        %1246 = vmatpush.msra.mxu0 0.0
        %1247 = vmatpush.msra.mxu0 0.0
        %1248 = vmatpush.msra.mxu0 0.0
        %1249 = vmatpush.msra.mxu0 %v1110
        %1250 = vmatmul.f32.gmra.mxu0 %v1096
        %v1251 = vpop.f32.mrf.mxu0
        %v1252 = vadd.f32 0.0, %v1251
        %1253 = vdwg.mxu0
        %1254 = vmatpush.msra.mxu0 0.0
        %1255 = vmatpush.msra.mxu0 0.0
        %1256 = vmatpush.msra.mxu0 0.0
        %1257 = vmatpush.msra.mxu0 0.0
        %1258 = vmatpush.msra.mxu0 0.0
        %1259 = vmatpush.msra.mxu0 0.0
        %1260 = vmatpush.msra.mxu0 0.0
        %1261 = vmatpush.msra.mxu0 0.0
        %1262 = vmatpush.msra.mxu0 0.0
        %1263 = vmatpush.msra.mxu0 0.0
        %1264 = vmatpush.msra.mxu0 0.0
        %1265 = vmatpush.msra.mxu0 0.0
        %1266 = vmatpush.msra.mxu0 0.0
        %1267 = vmatpush.msra.mxu0 0.0
        %1268 = vmatpush.msra.mxu0 0.0
        %1269 = vmatpush.msra.mxu0 %v1112
        %1270 = vmatmul.f32.gmra.mxu0 %v1096
        %v1271 = vpop.f32.mrf.mxu0
        %v1272 = vadd.f32 0.0, %v1271
        %1273 = vdwg.mxu0
        %v1274 = vsub.f32 %v820, %v1132
        %v1275 = vsub.f32 %v833, %v1152
        %v1276 = vsub.f32 %v846, %v1172
        %v1277 = vsub.f32 %v859, %v1192
        %v1278 = vsub.f32 %v872, %v1212
        %v1279 = vsub.f32 %v885, %v1232
        %v1280 = vsub.f32 %v898, %v1252
        %v1281 = vsub.f32 %v911, %v1272
        %v1282 = vmul.f32 %v1274, %v1274
        %v1283 = vmul.f32 %v1275, %v1275
        %v1284 = vmul.f32 %v1276, %v1276
        %v1285 = vmul.f32 %v1277, %v1277
        %v1286 = vmul.f32 %v1278, %v1278
        %v1287 = vmul.f32 %v1279, %v1279
        %v1288 = vmul.f32 %v1280, %v1280
        %v1289 = vmul.f32 %v1281, %v1281
        %1290 = vmatpush.msra.mxu0 %v285
        %1291 = vmatpush.msra.mxu0 %v284
        %1292 = vmatpush.msra.mxu0 %v283
        %1293 = vmatpush.msra.mxu0 %v282
        %1294 = vmatpush.msra.mxu0 %v281
        %1295 = vmatpush.msra.mxu0 %v280
        %1296 = vmatpush.msra.mxu0 %v279
        %1297 = vmatpush.msra.mxu0 %v278
        %1298 = vmatpush.msra.mxu0 %v277
        %1299 = vmatpush.msra.mxu0 %v276
        %1300 = vmatpush.msra.mxu0 %v275
        %1301 = vmatpush.msra.mxu0 %v274
        %1302 = vmatpush.msra.mxu0 %v273
        %1303 = vmatpush.msra.mxu0 %v272
        %1304 = vmatpush.msra.mxu0 %v271
        %1305 = vmatpush.msra.mxu0 %v270
        %1306 = vmatmul.f32.gmra.mxu0 %v1282
        %v1307 = vpop.f32.mrf.mxu0
        %v1308 = vadd.f32 0.0, %v1307
        %1309 = vdwg.mxu0
        %1310 = vmatpush.msra.mxu0 %v301
        %1311 = vmatpush.msra.mxu0 %v300
        %1312 = vmatpush.msra.mxu0 %v299
        %1313 = vmatpush.msra.mxu0 %v298
        %1314 = vmatpush.msra.mxu0 %v297
        %1315 = vmatpush.msra.mxu0 %v296
        %1316 = vmatpush.msra.mxu0 %v295
        %1317 = vmatpush.msra.mxu0 %v294
        %1318 = vmatpush.msra.mxu0 %v293
        %1319 = vmatpush.msra.mxu0 %v292
        %1320 = vmatpush.msra.mxu0 %v291
        %1321 = vmatpush.msra.mxu0 %v290
        %1322 = vmatpush.msra.mxu0 %v289
        %1323 = vmatpush.msra.mxu0 %v288
        %1324 = vmatpush.msra.mxu0 %v287
        %1325 = vmatpush.msra.mxu0 %v286
        %1326 = vmatmul.f32.gmra.mxu0 %v1283
        %v1327 = vpop.f32.mrf.mxu0
        %v1328 = vadd.f32 %v1308, %v1327
        %1329 = vdwg.mxu0
        %1330 = vmatpush.msra.mxu0 %v317
        %1331 = vmatpush.msra.mxu0 %v316
        %1332 = vmatpush.msra.mxu0 %v315
        %1333 = vmatpush.msra.mxu0 %v314
        %1334 = vmatpush.msra.mxu0 %v313
        %1335 = vmatpush.msra.mxu0 %v312
        %1336 = vmatpush.msra.mxu0 %v311
        %1337 = vmatpush.msra.mxu0 %v310
        %1338 = vmatpush.msra.mxu0 %v309
        %1339 = vmatpush.msra.mxu0 %v308
        %1340 = vmatpush.msra.mxu0 %v307
        %1341 = vmatpush.msra.mxu0 %v306
        %1342 = vmatpush.msra.mxu0 %v305
        %1343 = vmatpush.msra.mxu0 %v304
        %1344 = vmatpush.msra.mxu0 %v303
        %1345 = vmatpush.msra.mxu0 %v302
        %1346 = vmatmul.f32.gmra.mxu0 %v1284
        %v1347 = vpop.f32.mrf.mxu0
        %v1348 = vadd.f32 %v1328, %v1347
        %1349 = vdwg.mxu0
        %1350 = vmatpush.msra.mxu0 %v333
        %1351 = vmatpush.msra.mxu0 %v332
        %1352 = vmatpush.msra.mxu0 %v331
        %1353 = vmatpush.msra.mxu0 %v330
        %1354 = vmatpush.msra.mxu0 %v329
        %1355 = vmatpush.msra.mxu0 %v328
        %1356 = vmatpush.msra.mxu0 %v327
        %1357 = vmatpush.msra.mxu0 %v326
        %1358 = vmatpush.msra.mxu0 %v325
        %1359 = vmatpush.msra.mxu0 %v324
        %1360 = vmatpush.msra.mxu0 %v323
        %1361 = vmatpush.msra.mxu0 %v322
        %1362 = vmatpush.msra.mxu0 %v321
        %1363 = vmatpush.msra.mxu0 %v320
        %1364 = vmatpush.msra.mxu0 %v319
        %1365 = vmatpush.msra.mxu0 %v318
        %1366 = vmatmul.f32.gmra.mxu0 %v1285
        %v1367 = vpop.f32.mrf.mxu0
        %v1368 = vadd.f32 %v1348, %v1367
        %1369 = vdwg.mxu0
        %1370 = vmatpush.msra.mxu0 %v349
        %1371 = vmatpush.msra.mxu0 %v348
        %1372 = vmatpush.msra.mxu0 %v347
        %1373 = vmatpush.msra.mxu0 %v346
        %1374 = vmatpush.msra.mxu0 %v345
        %1375 = vmatpush.msra.mxu0 %v344
        %1376 = vmatpush.msra.mxu0 %v343
        %1377 = vmatpush.msra.mxu0 %v342
        %1378 = vmatpush.msra.mxu0 %v341
        %1379 = vmatpush.msra.mxu0 %v340
        %1380 = vmatpush.msra.mxu0 %v339
        %1381 = vmatpush.msra.mxu0 %v338
        %1382 = vmatpush.msra.mxu0 %v337
        %1383 = vmatpush.msra.mxu0 %v336
        %1384 = vmatpush.msra.mxu0 %v335
        %1385 = vmatpush.msra.mxu0 %v334
        %1386 = vmatmul.f32.gmra.mxu0 %v1286
        %v1387 = vpop.f32.mrf.mxu0
        %v1388 = vadd.f32 %v1368, %v1387
        %1389 = vdwg.mxu0
        %1390 = vmatpush.msra.mxu0 %v365
        %1391 = vmatpush.msra.mxu0 %v364
        %1392 = vmatpush.msra.mxu0 %v363
        %1393 = vmatpush.msra.mxu0 %v362
        %1394 = vmatpush.msra.mxu0 %v361
        %1395 = vmatpush.msra.mxu0 %v360
        %1396 = vmatpush.msra.mxu0 %v359
        %1397 = vmatpush.msra.mxu0 %v358
        %1398 = vmatpush.msra.mxu0 %v357
        %1399 = vmatpush.msra.mxu0 %v356
        %1400 = vmatpush.msra.mxu0 %v355
        %1401 = vmatpush.msra.mxu0 %v354
        %1402 = vmatpush.msra.mxu0 %v353
        %1403 = vmatpush.msra.mxu0 %v352
        %1404 = vmatpush.msra.mxu0 %v351
        %1405 = vmatpush.msra.mxu0 %v350
        %1406 = vmatmul.f32.gmra.mxu0 %v1287
        %v1407 = vpop.f32.mrf.mxu0
        %v1408 = vadd.f32 %v1388, %v1407
        %1409 = vdwg.mxu0
        %1410 = vmatpush.msra.mxu0 %v381
        %1411 = vmatpush.msra.mxu0 %v380
        %1412 = vmatpush.msra.mxu0 %v379
        %1413 = vmatpush.msra.mxu0 %v378
        %1414 = vmatpush.msra.mxu0 %v377
        %1415 = vmatpush.msra.mxu0 %v376
        %1416 = vmatpush.msra.mxu0 %v375
        %1417 = vmatpush.msra.mxu0 %v374
        %1418 = vmatpush.msra.mxu0 %v373
        %1419 = vmatpush.msra.mxu0 %v372
        %1420 = vmatpush.msra.mxu0 %v371
        %1421 = vmatpush.msra.mxu0 %v370
        %1422 = vmatpush.msra.mxu0 %v369
        %1423 = vmatpush.msra.mxu0 %v368
        %1424 = vmatpush.msra.mxu0 %v367
        %1425 = vmatpush.msra.mxu0 %v366
        %1426 = vmatmul.f32.gmra.mxu0 %v1288
        %v1427 = vpop.f32.mrf.mxu0
        %v1428 = vadd.f32 %v1408, %v1427
        %1429 = vdwg.mxu0
        %1430 = vmatpush.msra.mxu0 %v397
        %1431 = vmatpush.msra.mxu0 %v396
        %1432 = vmatpush.msra.mxu0 %v395
        %1433 = vmatpush.msra.mxu0 %v394
        %1434 = vmatpush.msra.mxu0 %v393
        %1435 = vmatpush.msra.mxu0 %v392
        %1436 = vmatpush.msra.mxu0 %v391
        %1437 = vmatpush.msra.mxu0 %v390
        %1438 = vmatpush.msra.mxu0 %v389
        %1439 = vmatpush.msra.mxu0 %v388
        %1440 = vmatpush.msra.mxu0 %v387
        %1441 = vmatpush.msra.mxu0 %v386
        %1442 = vmatpush.msra.mxu0 %v385
        %1443 = vmatpush.msra.mxu0 %v384
        %1444 = vmatpush.msra.mxu0 %v383
        %1445 = vmatpush.msra.mxu0 %v382
        %1446 = vmatmul.f32.gmra.mxu0 %v1289
        %v1447 = vpop.f32.mrf.mxu0
        %v1448 = vadd.f32 %v1428, %v1447
        %1449 = vdwg.mxu0
        %v1450 = vmul.f32 %v1448, 0.00390625
        %v1451 = vadd.f32 %v1450, 1e-05
        %v1452 = vrsqrt.pop %v1451
        %v1453 = vmul.f32 %v1452, %v1451
        %v1454 = vmul.f32 %v1453, %v1452
        %v1455 = vmul.f32 0.5, %v1454
        %v1456 = vsub.f32 1.5, %v1455
        %v1457 = vmul.f32 %v1452, %v1456
        %vm1458 = vweird.f32 %v1451
        %vm1459 = vweird.f32 %v1452
        %vm1460 = vmor %vm1458, %vm1459
        %v1461 = vsel %vm1460, %v1452, %v1457
        %1462 = vst [vmem:[#allocation1] ss:$2 sm:$0xff] %v398
        %s1463 = scalar_lea.vmem [#allocation1], 16
        %1464 = vst [vmem:[%s1463] ss:$2 sm:$0xff] %v399
        %s1465 = scalar_lea.vmem [#allocation1], 32
        %1466 = vst [vmem:[%s1465] ss:$2 sm:$0xff] %v400
        %s1467 = scalar_lea.vmem [#allocation1], 48
        %1468 = vst [vmem:[%s1467] ss:$2 sm:$0xff] %v401
        %v1469 = vld.sshfl [vmem:[#allocation1] sm:$0xff pattern:$0x75316420]
        %v1470 = vld.sshfl [vmem:[#allocation1 + $0x8] sm:$0xff pattern:$0x75316420]
        %v1471 = vld.sshfl [vmem:[#allocation1 + $0x10] sm:$0xff pattern:$0x75316420]
        %v1472 = vld.sshfl [vmem:[#allocation1 + $0x18] sm:$0xff pattern:$0x75316420]
        %v1473 = vld.sshfl [vmem:[#allocation1 + $0x20] sm:$0xff pattern:$0x75316420]
        %v1474 = vld.sshfl [vmem:[#allocation1 + $0x28] sm:$0xff pattern:$0x75316420]
        %v1475 = vld.sshfl [vmem:[#allocation1 + $0x30] sm:$0xff pattern:$0x75316420]
        %v1476 = vld.sshfl [vmem:[#allocation1 + $0x38] sm:$0xff pattern:$0x75316420]
        %v1478 = vsel %vm1094, %v1461, 0
        %v1480 = vsel %vm785, %v1469, 0
        %v1482 = vsel %vm785, %v1470, 0
        %v1484 = vsel %vm785, %v1471, 0
        %v1486 = vsel %vm785, %v1472, 0
        %v1488 = vsel %vm785, %v1473, 0
        %v1490 = vsel %vm785, %v1474, 0
        %v1492 = vsel %vm785, %v1475, 0
        %v1494 = vsel %vm785, %v1476, 0
        %1496 = vmatpush.msra.mxu0 0.0
        %1497 = vmatpush.msra.mxu0 0.0
        %1498 = vmatpush.msra.mxu0 0.0
        %1499 = vmatpush.msra.mxu0 0.0
        %1500 = vmatpush.msra.mxu0 0.0
        %1501 = vmatpush.msra.mxu0 0.0
        %1502 = vmatpush.msra.mxu0 0.0
        %1503 = vmatpush.msra.mxu0 0.0
        %1504 = vmatpush.msra.mxu0 0.0
        %1505 = vmatpush.msra.mxu0 0.0
        %1506 = vmatpush.msra.mxu0 0.0
        %1507 = vmatpush.msra.mxu0 0.0
        %1508 = vmatpush.msra.mxu0 0.0
        %1509 = vmatpush.msra.mxu0 0.0
        %1510 = vmatpush.msra.mxu0 0.0
        %1511 = vmatpush.msra.mxu0 %v1480
        %1512 = vmatmul.f32.gmra.mxu0 %v1478
        %v1513 = vpop.f32.mrf.mxu0
        %v1514 = vadd.f32 0.0, %v1513
        %1515 = vdwg.mxu0
        %1516 = vmatpush.msra.mxu0 0.0
        %1517 = vmatpush.msra.mxu0 0.0
        %1518 = vmatpush.msra.mxu0 0.0
        %1519 = vmatpush.msra.mxu0 0.0
        %1520 = vmatpush.msra.mxu0 0.0
        %1521 = vmatpush.msra.mxu0 0.0
        %1522 = vmatpush.msra.mxu0 0.0
        %1523 = vmatpush.msra.mxu0 0.0
        %1524 = vmatpush.msra.mxu0 0.0
        %1525 = vmatpush.msra.mxu0 0.0
        %1526 = vmatpush.msra.mxu0 0.0
        %1527 = vmatpush.msra.mxu0 0.0
        %1528 = vmatpush.msra.mxu0 0.0
        %1529 = vmatpush.msra.mxu0 0.0
        %1530 = vmatpush.msra.mxu0 0.0
        %1531 = vmatpush.msra.mxu0 %v1482
        %1532 = vmatmul.f32.gmra.mxu0 %v1478
        %v1533 = vpop.f32.mrf.mxu0
        %v1534 = vadd.f32 0.0, %v1533
        %1535 = vdwg.mxu0
        %1536 = vmatpush.msra.mxu0 0.0
        %1537 = vmatpush.msra.mxu0 0.0
        %1538 = vmatpush.msra.mxu0 0.0
        %1539 = vmatpush.msra.mxu0 0.0
        %1540 = vmatpush.msra.mxu0 0.0
        %1541 = vmatpush.msra.mxu0 0.0
        %1542 = vmatpush.msra.mxu0 0.0
        %1543 = vmatpush.msra.mxu0 0.0
        %1544 = vmatpush.msra.mxu0 0.0
        %1545 = vmatpush.msra.mxu0 0.0
        %1546 = vmatpush.msra.mxu0 0.0
        %1547 = vmatpush.msra.mxu0 0.0
        %1548 = vmatpush.msra.mxu0 0.0
        %1549 = vmatpush.msra.mxu0 0.0
        %1550 = vmatpush.msra.mxu0 0.0
        %1551 = vmatpush.msra.mxu0 %v1484
        %1552 = vmatmul.f32.gmra.mxu0 %v1478
        %v1553 = vpop.f32.mrf.mxu0
        %v1554 = vadd.f32 0.0, %v1553
        %1555 = vdwg.mxu0
        %1556 = vmatpush.msra.mxu0 0.0
        %1557 = vmatpush.msra.mxu0 0.0
        %1558 = vmatpush.msra.mxu0 0.0
        %1559 = vmatpush.msra.mxu0 0.0
        %1560 = vmatpush.msra.mxu0 0.0
        %1561 = vmatpush.msra.mxu0 0.0
        %1562 = vmatpush.msra.mxu0 0.0
        %1563 = vmatpush.msra.mxu0 0.0
        %1564 = vmatpush.msra.mxu0 0.0
        %1565 = vmatpush.msra.mxu0 0.0
        %1566 = vmatpush.msra.mxu0 0.0
        %1567 = vmatpush.msra.mxu0 0.0
        %1568 = vmatpush.msra.mxu0 0.0
        %1569 = vmatpush.msra.mxu0 0.0
        %1570 = vmatpush.msra.mxu0 0.0
        %1571 = vmatpush.msra.mxu0 %v1486
        %1572 = vmatmul.f32.gmra.mxu0 %v1478
        %v1573 = vpop.f32.mrf.mxu0
        %v1574 = vadd.f32 0.0, %v1573
        %1575 = vdwg.mxu0
        %1576 = vmatpush.msra.mxu0 0.0
        %1577 = vmatpush.msra.mxu0 0.0
        %1578 = vmatpush.msra.mxu0 0.0
        %1579 = vmatpush.msra.mxu0 0.0
        %1580 = vmatpush.msra.mxu0 0.0
        %1581 = vmatpush.msra.mxu0 0.0
        %1582 = vmatpush.msra.mxu0 0.0
        %1583 = vmatpush.msra.mxu0 0.0
        %1584 = vmatpush.msra.mxu0 0.0
        %1585 = vmatpush.msra.mxu0 0.0
        %1586 = vmatpush.msra.mxu0 0.0
        %1587 = vmatpush.msra.mxu0 0.0
        %1588 = vmatpush.msra.mxu0 0.0
        %1589 = vmatpush.msra.mxu0 0.0
        %1590 = vmatpush.msra.mxu0 0.0
        %1591 = vmatpush.msra.mxu0 %v1488
        %1592 = vmatmul.f32.gmra.mxu0 %v1478
        %v1593 = vpop.f32.mrf.mxu0
        %v1594 = vadd.f32 0.0, %v1593
        %1595 = vdwg.mxu0
        %1596 = vmatpush.msra.mxu0 0.0
        %1597 = vmatpush.msra.mxu0 0.0
        %1598 = vmatpush.msra.mxu0 0.0
        %1599 = vmatpush.msra.mxu0 0.0
        %1600 = vmatpush.msra.mxu0 0.0
        %1601 = vmatpush.msra.mxu0 0.0
        %1602 = vmatpush.msra.mxu0 0.0
        %1603 = vmatpush.msra.mxu0 0.0
        %1604 = vmatpush.msra.mxu0 0.0
        %1605 = vmatpush.msra.mxu0 0.0
        %1606 = vmatpush.msra.mxu0 0.0
        %1607 = vmatpush.msra.mxu0 0.0
        %1608 = vmatpush.msra.mxu0 0.0
        %1609 = vmatpush.msra.mxu0 0.0
        %1610 = vmatpush.msra.mxu0 0.0
        %1611 = vmatpush.msra.mxu0 %v1490
        %1612 = vmatmul.f32.gmra.mxu0 %v1478
        %v1613 = vpop.f32.mrf.mxu0
        %v1614 = vadd.f32 0.0, %v1613
        %1615 = vdwg.mxu0
        %1616 = vmatpush.msra.mxu0 0.0
        %1617 = vmatpush.msra.mxu0 0.0
        %1618 = vmatpush.msra.mxu0 0.0
        %1619 = vmatpush.msra.mxu0 0.0
        %1620 = vmatpush.msra.mxu0 0.0
        %1621 = vmatpush.msra.mxu0 0.0
        %1622 = vmatpush.msra.mxu0 0.0
        %1623 = vmatpush.msra.mxu0 0.0
        %1624 = vmatpush.msra.mxu0 0.0
        %1625 = vmatpush.msra.mxu0 0.0
        %1626 = vmatpush.msra.mxu0 0.0
        %1627 = vmatpush.msra.mxu0 0.0
        %1628 = vmatpush.msra.mxu0 0.0
        %1629 = vmatpush.msra.mxu0 0.0
        %1630 = vmatpush.msra.mxu0 0.0
        %1631 = vmatpush.msra.mxu0 %v1492
        %1632 = vmatmul.f32.gmra.mxu0 %v1478
        %v1633 = vpop.f32.mrf.mxu0
        %v1634 = vadd.f32 0.0, %v1633
        %1635 = vdwg.mxu0
        %1636 = vmatpush.msra.mxu0 0.0
        %1637 = vmatpush.msra.mxu0 0.0
        %1638 = vmatpush.msra.mxu0 0.0
        %1639 = vmatpush.msra.mxu0 0.0
        %1640 = vmatpush.msra.mxu0 0.0
        %1641 = vmatpush.msra.mxu0 0.0
        %1642 = vmatpush.msra.mxu0 0.0
        %1643 = vmatpush.msra.mxu0 0.0
        %1644 = vmatpush.msra.mxu0 0.0
        %1645 = vmatpush.msra.mxu0 0.0
        %1646 = vmatpush.msra.mxu0 0.0
        %1647 = vmatpush.msra.mxu0 0.0
        %1648 = vmatpush.msra.mxu0 0.0
        %1649 = vmatpush.msra.mxu0 0.0
        %1650 = vmatpush.msra.mxu0 0.0
        %1651 = vmatpush.msra.mxu0 %v1494
        %1652 = vmatmul.f32.gmra.mxu0 %v1478
        %v1653 = vpop.f32.mrf.mxu0
        %v1654 = vadd.f32 0.0, %v1653
        %1655 = vdwg.mxu0
        %v1656 = vmul.f32 %v1274, %v1514
        %v1657 = vmul.f32 %v1275, %v1534
        %v1658 = vmul.f32 %v1276, %v1554
        %v1659 = vmul.f32 %v1277, %v1574
        %v1660 = vmul.f32 %v1278, %v1594
        %v1661 = vmul.f32 %v1279, %v1614
        %v1662 = vmul.f32 %v1280, %v1634
        %v1663 = vmul.f32 %v1281, %v1654
        %vm1664 = vcmp.gt.f32.partialorder %v1656, 0.0
        %vm1665 = vcmp.gt.f32.partialorder %v1657, 0.0
        %vm1666 = vcmp.gt.f32.partialorder %v1658, 0.0
        %vm1667 = vcmp.gt.f32.partialorder %v1659, 0.0
        %vm1668 = vcmp.gt.f32.partialorder %v1660, 0.0
        %vm1669 = vcmp.gt.f32.partialorder %v1661, 0.0
        %vm1670 = vcmp.gt.f32.partialorder %v1662, 0.0
        %vm1671 = vcmp.gt.f32.partialorder %v1663, 0.0
        %v1672 = vmul.f32 %v1656, 0.2
        %v1673 = vmul.f32 %v1657, 0.2
        %v1674 = vmul.f32 %v1658, 0.2
        %v1675 = vmul.f32 %v1659, 0.2
        %v1676 = vmul.f32 %v1660, 0.2
        %v1677 = vmul.f32 %v1661, 0.2
        %v1678 = vmul.f32 %v1662, 0.2
        %v1679 = vmul.f32 %v1663, 0.2
        %v1680 = vsel %vm1664, %v1656, %v1672
        %v1681 = vsel %vm1665, %v1657, %v1673
        %v1682 = vsel %vm1666, %v1658, %v1674
        %v1683 = vsel %vm1667, %v1659, %v1675
        %v1684 = vsel %vm1668, %v1660, %v1676
        %v1685 = vsel %vm1669, %v1661, %v1677
        %v1686 = vsel %vm1670, %v1662, %v1678
        %v1687 = vsel %vm1671, %v1663, %v1679
        %1688 = vrot.lane.b32.xlu0 %v1680, 17
        %v1689 = vpop.permute.xlu0 %1688
        %1690 = vrot.lane.b32.xlu0 %v1681, 17
        %v1691 = vpop.permute.xlu0 %1690
        %1692 = vrot.lane.b32.xlu0 %v1682, 17
        %v1693 = vpop.permute.xlu0 %1692
        %1694 = vrot.lane.b32.xlu0 %v1683, 17
        %v1695 = vpop.permute.xlu0 %1694
        %1696 = vrot.lane.b32.xlu0 %v1684, 17
        %v1697 = vpop.permute.xlu0 %1696
        %1698 = vrot.lane.b32.xlu0 %v1685, 17
        %v1699 = vpop.permute.xlu0 %1698
        %1700 = vrot.lane.b32.xlu0 %v1686, 17
        %v1701 = vpop.permute.xlu0 %1700
        %1702 = vrot.lane.b32.xlu0 %v1687, 17
        %v1703 = vpop.permute.xlu0 %1702
        %v1704 = vsel %vm428, %v1701, %v1703
        %v1705 = vsel %vm428, %v1699, %v1701
        %v1706 = vsel %vm428, %v1697, %v1699
        %v1707 = vsel %vm428, %v1695, %v1697
        %v1708 = vsel %vm428, %v1693, %v1695
        %v1709 = vsel %vm428, %v1691, %v1693
        %v1710 = vsel %vm428, %v1689, %v1691
        %v1711 = vsel %vm428, %v1703, %v1689
        %v1712 = vmul.f32 %v1711, %v437
        %v1713 = vmul.f32 %v1710, %v438
        %v1714 = vmul.f32 %v1709, %v439
        %v1715 = vmul.f32 %v1708, %v440
        %v1716 = vmul.f32 %v1707, %v441
        %v1717 = vmul.f32 %v1706, %v442
        %v1718 = vmul.f32 %v1705, %v443
        %v1719 = vmul.f32 %v1704, %v444
        %1720 = vrot.lane.b32.xlu0 %v1680, 16
        %v1721 = vpop.permute.xlu0 %1720
        %1722 = vrot.lane.b32.xlu0 %v1681, 16
        %v1723 = vpop.permute.xlu0 %1722
        %1724 = vrot.lane.b32.xlu0 %v1682, 16
        %v1725 = vpop.permute.xlu0 %1724
        %1726 = vrot.lane.b32.xlu0 %v1683, 16
        %v1727 = vpop.permute.xlu0 %1726
        %1728 = vrot.lane.b32.xlu0 %v1684, 16
        %v1729 = vpop.permute.xlu0 %1728
        %1730 = vrot.lane.b32.xlu0 %v1685, 16
        %v1731 = vpop.permute.xlu0 %1730
        %1732 = vrot.lane.b32.xlu0 %v1686, 16
        %v1733 = vpop.permute.xlu0 %1732
        %1734 = vrot.lane.b32.xlu0 %v1687, 16
        %v1735 = vpop.permute.xlu0 %1734
        %v1736 = vsel %vm469, %v1733, %v1735
        %v1737 = vsel %vm469, %v1731, %v1733
        %v1738 = vsel %vm469, %v1729, %v1731
        %v1739 = vsel %vm469, %v1727, %v1729
        %v1740 = vsel %vm469, %v1725, %v1727
        %v1741 = vsel %vm469, %v1723, %v1725
        %v1742 = vsel %vm469, %v1721, %v1723
        %v1743 = vsel %vm469, %v1735, %v1721
        %v1744 = vmul.f32 %v1743, %v478
        %v1745 = vmul.f32 %v1742, %v479
        %v1746 = vmul.f32 %v1741, %v480
        %v1747 = vmul.f32 %v1740, %v481
        %v1748 = vmul.f32 %v1739, %v482
        %v1749 = vmul.f32 %v1738, %v483
        %v1750 = vmul.f32 %v1737, %v484
        %v1751 = vmul.f32 %v1736, %v485
        %1752 = vrot.lane.b32.xlu0 %v1680, 15
        %v1753 = vpop.permute.xlu0 %1752
        %1754 = vrot.lane.b32.xlu0 %v1681, 15
        %v1755 = vpop.permute.xlu0 %1754
        %1756 = vrot.lane.b32.xlu0 %v1682, 15
        %v1757 = vpop.permute.xlu0 %1756
        %1758 = vrot.lane.b32.xlu0 %v1683, 15
        %v1759 = vpop.permute.xlu0 %1758
        %1760 = vrot.lane.b32.xlu0 %v1684, 15
        %v1761 = vpop.permute.xlu0 %1760
        %1762 = vrot.lane.b32.xlu0 %v1685, 15
        %v1763 = vpop.permute.xlu0 %1762
        %1764 = vrot.lane.b32.xlu0 %v1686, 15
        %v1765 = vpop.permute.xlu0 %1764
        %1766 = vrot.lane.b32.xlu0 %v1687, 15
        %v1767 = vpop.permute.xlu0 %1766
        %v1768 = vsel %vm510, %v1765, %v1767
        %v1769 = vsel %vm510, %v1763, %v1765
        %v1770 = vsel %vm510, %v1761, %v1763
        %v1771 = vsel %vm510, %v1759, %v1761
        %v1772 = vsel %vm510, %v1757, %v1759
        %v1773 = vsel %vm510, %v1755, %v1757
        %v1774 = vsel %vm510, %v1753, %v1755
        %v1775 = vsel %vm510, %v1767, %v1753
        %v1776 = vmul.f32 %v1775, %v519
        %v1777 = vmul.f32 %v1774, %v520
        %v1778 = vmul.f32 %v1773, %v521
        %v1779 = vmul.f32 %v1772, %v522
        %v1780 = vmul.f32 %v1771, %v523
        %v1781 = vmul.f32 %v1770, %v524
        %v1782 = vmul.f32 %v1769, %v525
        %v1783 = vmul.f32 %v1768, %v526
        %1784 = vrot.lane.b32.xlu0 %v1680, 1
        %v1785 = vpop.permute.xlu0 %1784
        %1786 = vrot.lane.b32.xlu0 %v1681, 1
        %v1787 = vpop.permute.xlu0 %1786
        %1788 = vrot.lane.b32.xlu0 %v1682, 1
        %v1789 = vpop.permute.xlu0 %1788
        %1790 = vrot.lane.b32.xlu0 %v1683, 1
        %v1791 = vpop.permute.xlu0 %1790
        %1792 = vrot.lane.b32.xlu0 %v1684, 1
        %v1793 = vpop.permute.xlu0 %1792
        %1794 = vrot.lane.b32.xlu0 %v1685, 1
        %v1795 = vpop.permute.xlu0 %1794
        %1796 = vrot.lane.b32.xlu0 %v1686, 1
        %v1797 = vpop.permute.xlu0 %1796
        %1798 = vrot.lane.b32.xlu0 %v1687, 1
        %v1799 = vpop.permute.xlu0 %1798
        %v1800 = vsel %vm551, %v1797, %v1799
        %v1801 = vsel %vm551, %v1795, %v1797
        %v1802 = vsel %vm551, %v1793, %v1795
        %v1803 = vsel %vm551, %v1791, %v1793
        %v1804 = vsel %vm551, %v1789, %v1791
        %v1805 = vsel %vm551, %v1787, %v1789
        %v1806 = vsel %vm551, %v1785, %v1787
        %v1807 = vsel %vm551, %v1799, %v1785
        %v1808 = vmul.f32 %v1807, %v560
        %v1809 = vmul.f32 %v1806, %v561
        %v1810 = vmul.f32 %v1805, %v562
        %v1811 = vmul.f32 %v1804, %v563
        %v1812 = vmul.f32 %v1803, %v564
        %v1813 = vmul.f32 %v1802, %v565
        %v1814 = vmul.f32 %v1801, %v566
        %v1815 = vmul.f32 %v1800, %v567
        %1816 = vrot.lane.b32.xlu0 %v1680, 127
        %v1817 = vpop.permute.xlu0 %1816
        %1818 = vrot.lane.b32.xlu0 %v1681, 127
        %v1819 = vpop.permute.xlu0 %1818
        %1820 = vrot.lane.b32.xlu0 %v1682, 127
        %v1821 = vpop.permute.xlu0 %1820
        %1822 = vrot.lane.b32.xlu0 %v1683, 127
        %v1823 = vpop.permute.xlu0 %1822
        %1824 = vrot.lane.b32.xlu0 %v1684, 127
        %v1825 = vpop.permute.xlu0 %1824
        %1826 = vrot.lane.b32.xlu0 %v1685, 127
        %v1827 = vpop.permute.xlu0 %1826
        %1828 = vrot.lane.b32.xlu0 %v1686, 127
        %v1829 = vpop.permute.xlu0 %1828
        %1830 = vrot.lane.b32.xlu0 %v1687, 127
        %v1831 = vpop.permute.xlu0 %1830
        %v1832 = vsel %vm592, %v1829, %v1831
        %v1833 = vsel %vm592, %v1827, %v1829
        %v1834 = vsel %vm592, %v1825, %v1827
        %v1835 = vsel %vm592, %v1823, %v1825
        %v1836 = vsel %vm592, %v1821, %v1823
        %v1837 = vsel %vm592, %v1819, %v1821
        %v1838 = vsel %vm592, %v1817, %v1819
        %v1839 = vsel %vm592, %v1831, %v1817
        %v1840 = vmul.f32 %v1838, %v601
        %v1841 = vmul.f32 %v1837, %v602
        %v1842 = vmul.f32 %v1836, %v603
        %v1843 = vmul.f32 %v1835, %v604
        %v1844 = vmul.f32 %v1834, %v605
        %v1845 = vmul.f32 %v1833, %v606
        %v1846 = vmul.f32 %v1832, %v607
        %v1847 = vmul.f32 %v1839, %v608
        %1848 = vrot.lane.b32.xlu0 %v1680, 113
        %v1849 = vpop.permute.xlu0 %1848
        %1850 = vrot.lane.b32.xlu0 %v1681, 113
        %v1851 = vpop.permute.xlu0 %1850
        %1852 = vrot.lane.b32.xlu0 %v1682, 113
        %v1853 = vpop.permute.xlu0 %1852
        %1854 = vrot.lane.b32.xlu0 %v1683, 113
        %v1855 = vpop.permute.xlu0 %1854
        %1856 = vrot.lane.b32.xlu0 %v1684, 113
        %v1857 = vpop.permute.xlu0 %1856
        %1858 = vrot.lane.b32.xlu0 %v1685, 113
        %v1859 = vpop.permute.xlu0 %1858
        %1860 = vrot.lane.b32.xlu0 %v1686, 113
        %v1861 = vpop.permute.xlu0 %1860
        %1862 = vrot.lane.b32.xlu0 %v1687, 113
        %v1863 = vpop.permute.xlu0 %1862
        %v1864 = vsel %vm633, %v1861, %v1863
        %v1865 = vsel %vm633, %v1859, %v1861
        %v1866 = vsel %vm633, %v1857, %v1859
        %v1867 = vsel %vm633, %v1855, %v1857
        %v1868 = vsel %vm633, %v1853, %v1855
        %v1869 = vsel %vm633, %v1851, %v1853
        %v1870 = vsel %vm633, %v1849, %v1851
        %v1871 = vsel %vm633, %v1863, %v1849
        %v1872 = vmul.f32 %v1870, %v642
        %v1873 = vmul.f32 %v1869, %v643
        %v1874 = vmul.f32 %v1868, %v644
        %v1875 = vmul.f32 %v1867, %v645
        %v1876 = vmul.f32 %v1866, %v646
        %v1877 = vmul.f32 %v1865, %v647
        %v1878 = vmul.f32 %v1864, %v648
        %v1879 = vmul.f32 %v1871, %v649
        %1880 = vrot.lane.b32.xlu0 %v1680, 112
        %v1881 = vpop.permute.xlu0 %1880
        %1882 = vrot.lane.b32.xlu0 %v1681, 112
        %v1883 = vpop.permute.xlu0 %1882
        %1884 = vrot.lane.b32.xlu0 %v1682, 112
        %v1885 = vpop.permute.xlu0 %1884
        %1886 = vrot.lane.b32.xlu0 %v1683, 112
        %v1887 = vpop.permute.xlu0 %1886
        %1888 = vrot.lane.b32.xlu0 %v1684, 112
        %v1889 = vpop.permute.xlu0 %1888
        %1890 = vrot.lane.b32.xlu0 %v1685, 112
        %v1891 = vpop.permute.xlu0 %1890
        %1892 = vrot.lane.b32.xlu0 %v1686, 112
        %v1893 = vpop.permute.xlu0 %1892
        %1894 = vrot.lane.b32.xlu0 %v1687, 112
        %v1895 = vpop.permute.xlu0 %1894
        %v1896 = vsel %vm674, %v1893, %v1895
        %v1897 = vsel %vm674, %v1891, %v1893
        %v1898 = vsel %vm674, %v1889, %v1891
        %v1899 = vsel %vm674, %v1887, %v1889
        %v1900 = vsel %vm674, %v1885, %v1887
        %v1901 = vsel %vm674, %v1883, %v1885
        %v1902 = vsel %vm674, %v1881, %v1883
        %v1903 = vsel %vm674, %v1895, %v1881
        %v1904 = vmul.f32 %v1902, %v683
        %v1905 = vmul.f32 %v1901, %v684
        %v1906 = vmul.f32 %v1900, %v685
        %v1907 = vmul.f32 %v1899, %v686
        %v1908 = vmul.f32 %v1898, %v687
        %v1909 = vmul.f32 %v1897, %v688
        %v1910 = vmul.f32 %v1896, %v689
        %v1911 = vmul.f32 %v1903, %v690
        %1912 = vrot.lane.b32.xlu0 %v1680, 111
        %v1913 = vpop.permute.xlu0 %1912
        %1914 = vrot.lane.b32.xlu0 %v1681, 111
        %v1915 = vpop.permute.xlu0 %1914
        %1916 = vrot.lane.b32.xlu0 %v1682, 111
        %v1917 = vpop.permute.xlu0 %1916
        %1918 = vrot.lane.b32.xlu0 %v1683, 111
        %v1919 = vpop.permute.xlu0 %1918
        %1920 = vrot.lane.b32.xlu0 %v1684, 111
        %v1921 = vpop.permute.xlu0 %1920
        %1922 = vrot.lane.b32.xlu0 %v1685, 111
        %v1923 = vpop.permute.xlu0 %1922
        %1924 = vrot.lane.b32.xlu0 %v1686, 111
        %v1925 = vpop.permute.xlu0 %1924
        %1926 = vrot.lane.b32.xlu0 %v1687, 111
        %v1927 = vpop.permute.xlu0 %1926
        %v1928 = vsel %vm715, %v1925, %v1927
        %v1929 = vsel %vm715, %v1923, %v1925
        %v1930 = vsel %vm715, %v1921, %v1923
        %v1931 = vsel %vm715, %v1919, %v1921
        %v1932 = vsel %vm715, %v1917, %v1919
        %v1933 = vsel %vm715, %v1915, %v1917
        %v1934 = vsel %vm715, %v1913, %v1915
        %v1935 = vsel %vm715, %v1927, %v1913
        %v1936 = vmul.f32 %v1934, %v724
        %v1937 = vmul.f32 %v1933, %v725
        %v1938 = vmul.f32 %v1932, %v726
        %v1939 = vmul.f32 %v1931, %v727
        %v1940 = vmul.f32 %v1930, %v728
        %v1941 = vmul.f32 %v1929, %v729
        %v1942 = vmul.f32 %v1928, %v730
        %v1943 = vmul.f32 %v1935, %v731
        %v1944 = vpack.c.bf16 %v1744, %v1712
        %v1945 = vpack.c.bf16 %v1745, %v1713
        %v1946 = vpack.c.bf16 %v1746, %v1714
        %v1947 = vpack.c.bf16 %v1747, %v1715
        %v1948 = vpack.c.bf16 %v1748, %v1716
        %v1949 = vpack.c.bf16 %v1749, %v1717
        %v1950 = vpack.c.bf16 %v1750, %v1718
        %v1951 = vpack.c.bf16 %v1751, %v1719
        %v1952 = vpack.c.bf16 %v1808, %v1776
        %v1953 = vpack.c.bf16 %v1809, %v1777
        %v1954 = vpack.c.bf16 %v1810, %v1778
        %v1955 = vpack.c.bf16 %v1811, %v1779
        %v1956 = vpack.c.bf16 %v1812, %v1780
        %v1957 = vpack.c.bf16 %v1813, %v1781
        %v1958 = vpack.c.bf16 %v1814, %v1782
        %v1959 = vpack.c.bf16 %v1815, %v1783
        %v1960 = vpack.c.bf16 %v1840, %v1680
        %v1961 = vpack.c.bf16 %v1841, %v1681
        %v1962 = vpack.c.bf16 %v1842, %v1682
        %v1963 = vpack.c.bf16 %v1843, %v1683
        %v1964 = vpack.c.bf16 %v1844, %v1684
        %v1965 = vpack.c.bf16 %v1845, %v1685
        %v1966 = vpack.c.bf16 %v1846, %v1686
        %v1967 = vpack.c.bf16 %v1847, %v1687
        %v1968 = vpack.c.bf16 %v1904, %v1872
        %v1969 = vpack.c.bf16 %v1905, %v1873
        %v1970 = vpack.c.bf16 %v1906, %v1874
        %v1971 = vpack.c.bf16 %v1907, %v1875
        %v1972 = vpack.c.bf16 %v1908, %v1876
        %v1973 = vpack.c.bf16 %v1909, %v1877
        %v1974 = vpack.c.bf16 %v1910, %v1878
        %v1975 = vpack.c.bf16 %v1911, %v1879
        %v1976 = vpack.c.bf16 %v1936, %v1936
        %v1977 = vpack.c.bf16 %v1937, %v1937
        %v1978 = vpack.c.bf16 %v1938, %v1938
        %v1979 = vpack.c.bf16 %v1939, %v1939
        %v1980 = vpack.c.bf16 %v1940, %v1940
        %v1981 = vpack.c.bf16 %v1941, %v1941
        %v1982 = vpack.c.bf16 %v1942, %v1942
        %v1983 = vpack.c.bf16 %v1943, %v1943
        %v1984 = vld [vmem:[%s2] sm:$0xf]
        %v1986 = vsel %vm781, %v1984, 0
        %v1989 = vsel %vm785, %v1976, 0
        %v1992 = vsel %vm785, %v1977, 0
        %v1995 = vsel %vm785, %v1978, 0
        %v1998 = vsel %vm785, %v1979, 0
        %v2001 = vsel %vm785, %v1980, 0
        %v2004 = vsel %vm785, %v1981, 0
        %v2007 = vsel %vm785, %v1982, 0
        %v2010 = vsel %vm785, %v1983, 0
        %2012 = vmatpush.bf16.msra.mxu0 0
        %2013 = vmatpush.bf16.msra.mxu0 0
        %2014 = vmatpush.bf16.msra.mxu0 0
        %2015 = vmatpush.bf16.msra.mxu0 %v1989
        %2016 = vmatpush.bf16.msra.mxu0 %v1968
        %2017 = vmatpush.bf16.msra.mxu0 %v1960
        %2018 = vmatpush.bf16.msra.mxu0 %v1952
        %2019 = vmatpush.bf16.msra.mxu0 %v1944
        %2020 = vmatmul.bf16.gmra.mxu0 %v1986
        %v2021 = vpop.f32.mrf.mxu0
        %v2022 = vadd.f32 0.0, %v2021
        %v2023 = vpop.f32.mrf.mxu0
        %2024 = vdwg.mxu0
        %2025 = vmatpush.bf16.msra.mxu0 0
        %2026 = vmatpush.bf16.msra.mxu0 0
        %2027 = vmatpush.bf16.msra.mxu0 0
        %2028 = vmatpush.bf16.msra.mxu0 %v1992
        %2029 = vmatpush.bf16.msra.mxu0 %v1969
        %2030 = vmatpush.bf16.msra.mxu0 %v1961
        %2031 = vmatpush.bf16.msra.mxu0 %v1953
        %2032 = vmatpush.bf16.msra.mxu0 %v1945
        %2033 = vmatmul.bf16.gmra.mxu0 %v1986
        %v2034 = vpop.f32.mrf.mxu0
        %v2035 = vadd.f32 0.0, %v2034
        %v2036 = vpop.f32.mrf.mxu0
        %2037 = vdwg.mxu0
        %2038 = vmatpush.bf16.msra.mxu0 0
        %2039 = vmatpush.bf16.msra.mxu0 0
        %2040 = vmatpush.bf16.msra.mxu0 0
        %2041 = vmatpush.bf16.msra.mxu0 %v1995
        %2042 = vmatpush.bf16.msra.mxu0 %v1970
        %2043 = vmatpush.bf16.msra.mxu0 %v1962
        %2044 = vmatpush.bf16.msra.mxu0 %v1954
        %2045 = vmatpush.bf16.msra.mxu0 %v1946
        %2046 = vmatmul.bf16.gmra.mxu0 %v1986
        %v2047 = vpop.f32.mrf.mxu0
        %v2048 = vadd.f32 0.0, %v2047
        %v2049 = vpop.f32.mrf.mxu0
        %2050 = vdwg.mxu0
        %2051 = vmatpush.bf16.msra.mxu0 0
        %2052 = vmatpush.bf16.msra.mxu0 0
        %2053 = vmatpush.bf16.msra.mxu0 0
        %2054 = vmatpush.bf16.msra.mxu0 %v1998
        %2055 = vmatpush.bf16.msra.mxu0 %v1971
        %2056 = vmatpush.bf16.msra.mxu0 %v1963
        %2057 = vmatpush.bf16.msra.mxu0 %v1955
        %2058 = vmatpush.bf16.msra.mxu0 %v1947
        %2059 = vmatmul.bf16.gmra.mxu0 %v1986
        %v2060 = vpop.f32.mrf.mxu0
        %v2061 = vadd.f32 0.0, %v2060
        %v2062 = vpop.f32.mrf.mxu0
        %2063 = vdwg.mxu0
        %2064 = vmatpush.bf16.msra.mxu0 0
        %2065 = vmatpush.bf16.msra.mxu0 0
        %2066 = vmatpush.bf16.msra.mxu0 0
        %2067 = vmatpush.bf16.msra.mxu0 %v2001
        %2068 = vmatpush.bf16.msra.mxu0 %v1972
        %2069 = vmatpush.bf16.msra.mxu0 %v1964
        %2070 = vmatpush.bf16.msra.mxu0 %v1956
        %2071 = vmatpush.bf16.msra.mxu0 %v1948
        %2072 = vmatmul.bf16.gmra.mxu0 %v1986
        %v2073 = vpop.f32.mrf.mxu0
        %v2074 = vadd.f32 0.0, %v2073
        %v2075 = vpop.f32.mrf.mxu0
        %2076 = vdwg.mxu0
        %2077 = vmatpush.bf16.msra.mxu0 0
        %2078 = vmatpush.bf16.msra.mxu0 0
        %2079 = vmatpush.bf16.msra.mxu0 0
        %2080 = vmatpush.bf16.msra.mxu0 %v2004
        %2081 = vmatpush.bf16.msra.mxu0 %v1973
        %2082 = vmatpush.bf16.msra.mxu0 %v1965
        %2083 = vmatpush.bf16.msra.mxu0 %v1957
        %2084 = vmatpush.bf16.msra.mxu0 %v1949
        %2085 = vmatmul.bf16.gmra.mxu0 %v1986
        %v2086 = vpop.f32.mrf.mxu0
        %v2087 = vadd.f32 0.0, %v2086
        %v2088 = vpop.f32.mrf.mxu0
        %2089 = vdwg.mxu0
        %2090 = vmatpush.bf16.msra.mxu0 0
        %2091 = vmatpush.bf16.msra.mxu0 0
        %2092 = vmatpush.bf16.msra.mxu0 0
        %2093 = vmatpush.bf16.msra.mxu0 %v2007
        %2094 = vmatpush.bf16.msra.mxu0 %v1974
        %2095 = vmatpush.bf16.msra.mxu0 %v1966
        %2096 = vmatpush.bf16.msra.mxu0 %v1958
        %2097 = vmatpush.bf16.msra.mxu0 %v1950
        %2098 = vmatmul.bf16.gmra.mxu0 %v1986
        %v2099 = vpop.f32.mrf.mxu0
        %v2100 = vadd.f32 0.0, %v2099
        %v2101 = vpop.f32.mrf.mxu0
        %2102 = vdwg.mxu0
        %2103 = vmatpush.bf16.msra.mxu0 0
        %2104 = vmatpush.bf16.msra.mxu0 0
        %2105 = vmatpush.bf16.msra.mxu0 0
        %2106 = vmatpush.bf16.msra.mxu0 %v2010
        %2107 = vmatpush.bf16.msra.mxu0 %v1975
        %2108 = vmatpush.bf16.msra.mxu0 %v1967
        %2109 = vmatpush.bf16.msra.mxu0 %v1959
        %2110 = vmatpush.bf16.msra.mxu0 %v1951
        %2111 = vmatmul.bf16.gmra.mxu0 %v1986
        %v2112 = vpop.f32.mrf.mxu0
        %v2113 = vadd.f32 0.0, %v2112
        %v2114 = vpop.f32.mrf.mxu0
        %2115 = vdwg.mxu0
        %2116 = vmatpush.msra.mxu0 %v285
        %2117 = vmatpush.msra.mxu0 %v284
        %2118 = vmatpush.msra.mxu0 %v283
        %2119 = vmatpush.msra.mxu0 %v282
        %2120 = vmatpush.msra.mxu0 %v281
        %2121 = vmatpush.msra.mxu0 %v280
        %2122 = vmatpush.msra.mxu0 %v279
        %2123 = vmatpush.msra.mxu0 %v278
        %2124 = vmatpush.msra.mxu0 %v277
        %2125 = vmatpush.msra.mxu0 %v276
        %2126 = vmatpush.msra.mxu0 %v275
        %2127 = vmatpush.msra.mxu0 %v274
        %2128 = vmatpush.msra.mxu0 %v273
        %2129 = vmatpush.msra.mxu0 %v272
        %2130 = vmatpush.msra.mxu0 %v271
        %2131 = vmatpush.msra.mxu0 %v270
        %2132 = vmatmul.f32.gmra.mxu0 %v2022
        %v2133 = vpop.f32.mrf.mxu0
        %v2134 = vadd.f32 0.0, %v2133
        %2135 = vdwg.mxu0
        %2136 = vmatpush.msra.mxu0 %v301
        %2137 = vmatpush.msra.mxu0 %v300
        %2138 = vmatpush.msra.mxu0 %v299
        %2139 = vmatpush.msra.mxu0 %v298
        %2140 = vmatpush.msra.mxu0 %v297
        %2141 = vmatpush.msra.mxu0 %v296
        %2142 = vmatpush.msra.mxu0 %v295
        %2143 = vmatpush.msra.mxu0 %v294
        %2144 = vmatpush.msra.mxu0 %v293
        %2145 = vmatpush.msra.mxu0 %v292
        %2146 = vmatpush.msra.mxu0 %v291
        %2147 = vmatpush.msra.mxu0 %v290
        %2148 = vmatpush.msra.mxu0 %v289
        %2149 = vmatpush.msra.mxu0 %v288
        %2150 = vmatpush.msra.mxu0 %v287
        %2151 = vmatpush.msra.mxu0 %v286
        %2152 = vmatmul.f32.gmra.mxu0 %v2035
        %v2153 = vpop.f32.mrf.mxu0
        %v2154 = vadd.f32 %v2134, %v2153
        %2155 = vdwg.mxu0
        %2156 = vmatpush.msra.mxu0 %v317
        %2157 = vmatpush.msra.mxu0 %v316
        %2158 = vmatpush.msra.mxu0 %v315
        %2159 = vmatpush.msra.mxu0 %v314
        %2160 = vmatpush.msra.mxu0 %v313
        %2161 = vmatpush.msra.mxu0 %v312
        %2162 = vmatpush.msra.mxu0 %v311
        %2163 = vmatpush.msra.mxu0 %v310
        %2164 = vmatpush.msra.mxu0 %v309
        %2165 = vmatpush.msra.mxu0 %v308
        %2166 = vmatpush.msra.mxu0 %v307
        %2167 = vmatpush.msra.mxu0 %v306
        %2168 = vmatpush.msra.mxu0 %v305
        %2169 = vmatpush.msra.mxu0 %v304
        %2170 = vmatpush.msra.mxu0 %v303
        %2171 = vmatpush.msra.mxu0 %v302
        %2172 = vmatmul.f32.gmra.mxu0 %v2048
        %v2173 = vpop.f32.mrf.mxu0
        %v2174 = vadd.f32 %v2154, %v2173
        %2175 = vdwg.mxu0
        %2176 = vmatpush.msra.mxu0 %v333
        %2177 = vmatpush.msra.mxu0 %v332
        %2178 = vmatpush.msra.mxu0 %v331
        %2179 = vmatpush.msra.mxu0 %v330
        %2180 = vmatpush.msra.mxu0 %v329
        %2181 = vmatpush.msra.mxu0 %v328
        %2182 = vmatpush.msra.mxu0 %v327
        %2183 = vmatpush.msra.mxu0 %v326
        %2184 = vmatpush.msra.mxu0 %v325
        %2185 = vmatpush.msra.mxu0 %v324
        %2186 = vmatpush.msra.mxu0 %v323
        %2187 = vmatpush.msra.mxu0 %v322
        %2188 = vmatpush.msra.mxu0 %v321
        %2189 = vmatpush.msra.mxu0 %v320
        %2190 = vmatpush.msra.mxu0 %v319
        %2191 = vmatpush.msra.mxu0 %v318
        %2192 = vmatmul.f32.gmra.mxu0 %v2061
        %v2193 = vpop.f32.mrf.mxu0
        %v2194 = vadd.f32 %v2174, %v2193
        %2195 = vdwg.mxu0
        %2196 = vmatpush.msra.mxu0 %v349
        %2197 = vmatpush.msra.mxu0 %v348
        %2198 = vmatpush.msra.mxu0 %v347
        %2199 = vmatpush.msra.mxu0 %v346
        %2200 = vmatpush.msra.mxu0 %v345
        %2201 = vmatpush.msra.mxu0 %v344
        %2202 = vmatpush.msra.mxu0 %v343
        %2203 = vmatpush.msra.mxu0 %v342
        %2204 = vmatpush.msra.mxu0 %v341
        %2205 = vmatpush.msra.mxu0 %v340
        %2206 = vmatpush.msra.mxu0 %v339
        %2207 = vmatpush.msra.mxu0 %v338
        %2208 = vmatpush.msra.mxu0 %v337
        %2209 = vmatpush.msra.mxu0 %v336
        %2210 = vmatpush.msra.mxu0 %v335
        %2211 = vmatpush.msra.mxu0 %v334
        %2212 = vmatmul.f32.gmra.mxu0 %v2074
        %v2213 = vpop.f32.mrf.mxu0
        %v2214 = vadd.f32 %v2194, %v2213
        %2215 = vdwg.mxu0
        %2216 = vmatpush.msra.mxu0 %v365
        %2217 = vmatpush.msra.mxu0 %v364
        %2218 = vmatpush.msra.mxu0 %v363
        %2219 = vmatpush.msra.mxu0 %v362
        %2220 = vmatpush.msra.mxu0 %v361
        %2221 = vmatpush.msra.mxu0 %v360
        %2222 = vmatpush.msra.mxu0 %v359
        %2223 = vmatpush.msra.mxu0 %v358
        %2224 = vmatpush.msra.mxu0 %v357
        %2225 = vmatpush.msra.mxu0 %v356
        %2226 = vmatpush.msra.mxu0 %v355
        %2227 = vmatpush.msra.mxu0 %v354
        %2228 = vmatpush.msra.mxu0 %v353
        %2229 = vmatpush.msra.mxu0 %v352
        %2230 = vmatpush.msra.mxu0 %v351
        %2231 = vmatpush.msra.mxu0 %v350
        %2232 = vmatmul.f32.gmra.mxu0 %v2087
        %v2233 = vpop.f32.mrf.mxu0
        %v2234 = vadd.f32 %v2214, %v2233
        %2235 = vdwg.mxu0
        %2236 = vmatpush.msra.mxu0 %v381
        %2237 = vmatpush.msra.mxu0 %v380
        %2238 = vmatpush.msra.mxu0 %v379
        %2239 = vmatpush.msra.mxu0 %v378
        %2240 = vmatpush.msra.mxu0 %v377
        %2241 = vmatpush.msra.mxu0 %v376
        %2242 = vmatpush.msra.mxu0 %v375
        %2243 = vmatpush.msra.mxu0 %v374
        %2244 = vmatpush.msra.mxu0 %v373
        %2245 = vmatpush.msra.mxu0 %v372
        %2246 = vmatpush.msra.mxu0 %v371
        %2247 = vmatpush.msra.mxu0 %v370
        %2248 = vmatpush.msra.mxu0 %v369
        %2249 = vmatpush.msra.mxu0 %v368
        %2250 = vmatpush.msra.mxu0 %v367
        %2251 = vmatpush.msra.mxu0 %v366
        %2252 = vmatmul.f32.gmra.mxu0 %v2100
        %v2253 = vpop.f32.mrf.mxu0
        %v2254 = vadd.f32 %v2234, %v2253
        %2255 = vdwg.mxu0
        %2256 = vmatpush.msra.mxu0 %v397
        %2257 = vmatpush.msra.mxu0 %v396
        %2258 = vmatpush.msra.mxu0 %v395
        %2259 = vmatpush.msra.mxu0 %v394
        %2260 = vmatpush.msra.mxu0 %v393
        %2261 = vmatpush.msra.mxu0 %v392
        %2262 = vmatpush.msra.mxu0 %v391
        %2263 = vmatpush.msra.mxu0 %v390
        %2264 = vmatpush.msra.mxu0 %v389
        %2265 = vmatpush.msra.mxu0 %v388
        %2266 = vmatpush.msra.mxu0 %v387
        %2267 = vmatpush.msra.mxu0 %v386
        %2268 = vmatpush.msra.mxu0 %v385
        %2269 = vmatpush.msra.mxu0 %v384
        %2270 = vmatpush.msra.mxu0 %v383
        %2271 = vmatpush.msra.mxu0 %v382
        %2272 = vmatmul.f32.gmra.mxu0 %v2113
        %v2273 = vpop.f32.mrf.mxu0
        %v2274 = vadd.f32 %v2254, %v2273
        %2275 = vdwg.mxu0
        %v2276 = vmul.f32 %v2274, 0.00390625
        %2277 = vst [vmem:[#allocation1] ss:$2 sm:$0xff] %v398
        %s2278 = scalar_lea.vmem [#allocation1], 16
        %2279 = vst [vmem:[%s2278] ss:$2 sm:$0xff] %v399
        %s2280 = scalar_lea.vmem [#allocation1], 32
        %2281 = vst [vmem:[%s2280] ss:$2 sm:$0xff] %v400
        %s2282 = scalar_lea.vmem [#allocation1], 48
        %2283 = vst [vmem:[%s2282] ss:$2 sm:$0xff] %v401
        %v2284 = vld.sshfl [vmem:[#allocation1] sm:$0xff pattern:$0x75316420]
        %v2285 = vld.sshfl [vmem:[#allocation1 + $0x8] sm:$0xff pattern:$0x75316420]
        %v2286 = vld.sshfl [vmem:[#allocation1 + $0x10] sm:$0xff pattern:$0x75316420]
        %v2287 = vld.sshfl [vmem:[#allocation1 + $0x18] sm:$0xff pattern:$0x75316420]
        %v2288 = vld.sshfl [vmem:[#allocation1 + $0x20] sm:$0xff pattern:$0x75316420]
        %v2289 = vld.sshfl [vmem:[#allocation1 + $0x28] sm:$0xff pattern:$0x75316420]
        %v2290 = vld.sshfl [vmem:[#allocation1 + $0x30] sm:$0xff pattern:$0x75316420]
        %v2291 = vld.sshfl [vmem:[#allocation1 + $0x38] sm:$0xff pattern:$0x75316420]
        %v2293 = vsel %vm1094, %v2276, 0
        %v2295 = vsel %vm785, %v2284, 0
        %v2297 = vsel %vm785, %v2285, 0
        %v2299 = vsel %vm785, %v2286, 0
        %v2301 = vsel %vm785, %v2287, 0
        %v2303 = vsel %vm785, %v2288, 0
        %v2305 = vsel %vm785, %v2289, 0
        %v2307 = vsel %vm785, %v2290, 0
        %v2309 = vsel %vm785, %v2291, 0
        %2311 = vmatpush.msra.mxu0 0.0
        %2312 = vmatpush.msra.mxu0 0.0
        %2313 = vmatpush.msra.mxu0 0.0
        %2314 = vmatpush.msra.mxu0 0.0
        %2315 = vmatpush.msra.mxu0 0.0
        %2316 = vmatpush.msra.mxu0 0.0
        %2317 = vmatpush.msra.mxu0 0.0
        %2318 = vmatpush.msra.mxu0 0.0
        %2319 = vmatpush.msra.mxu0 0.0
        %2320 = vmatpush.msra.mxu0 0.0
        %2321 = vmatpush.msra.mxu0 0.0
        %2322 = vmatpush.msra.mxu0 0.0
        %2323 = vmatpush.msra.mxu0 0.0
        %2324 = vmatpush.msra.mxu0 0.0
        %2325 = vmatpush.msra.mxu0 0.0
        %2326 = vmatpush.msra.mxu0 %v2295
        %2327 = vmatmul.f32.gmra.mxu0 %v2293
        %v2328 = vpop.f32.mrf.mxu0
        %v2329 = vadd.f32 0.0, %v2328
        %2330 = vdwg.mxu0
        %2331 = vmatpush.msra.mxu0 0.0
        %2332 = vmatpush.msra.mxu0 0.0
        %2333 = vmatpush.msra.mxu0 0.0
        %2334 = vmatpush.msra.mxu0 0.0
        %2335 = vmatpush.msra.mxu0 0.0
        %2336 = vmatpush.msra.mxu0 0.0
        %2337 = vmatpush.msra.mxu0 0.0
        %2338 = vmatpush.msra.mxu0 0.0
        %2339 = vmatpush.msra.mxu0 0.0
        %2340 = vmatpush.msra.mxu0 0.0
        %2341 = vmatpush.msra.mxu0 0.0
        %2342 = vmatpush.msra.mxu0 0.0
        %2343 = vmatpush.msra.mxu0 0.0
        %2344 = vmatpush.msra.mxu0 0.0
        %2345 = vmatpush.msra.mxu0 0.0
        %2346 = vmatpush.msra.mxu0 %v2297
        %2347 = vmatmul.f32.gmra.mxu0 %v2293
        %v2348 = vpop.f32.mrf.mxu0
        %v2349 = vadd.f32 0.0, %v2348
        %2350 = vdwg.mxu0
        %2351 = vmatpush.msra.mxu0 0.0
        %2352 = vmatpush.msra.mxu0 0.0
        %2353 = vmatpush.msra.mxu0 0.0
        %2354 = vmatpush.msra.mxu0 0.0
        %2355 = vmatpush.msra.mxu0 0.0
        %2356 = vmatpush.msra.mxu0 0.0
        %2357 = vmatpush.msra.mxu0 0.0
        %2358 = vmatpush.msra.mxu0 0.0
        %2359 = vmatpush.msra.mxu0 0.0
        %2360 = vmatpush.msra.mxu0 0.0
        %2361 = vmatpush.msra.mxu0 0.0
        %2362 = vmatpush.msra.mxu0 0.0
        %2363 = vmatpush.msra.mxu0 0.0
        %2364 = vmatpush.msra.mxu0 0.0
        %2365 = vmatpush.msra.mxu0 0.0
        %2366 = vmatpush.msra.mxu0 %v2299
        %2367 = vmatmul.f32.gmra.mxu0 %v2293
        %v2368 = vpop.f32.mrf.mxu0
        %v2369 = vadd.f32 0.0, %v2368
        %2370 = vdwg.mxu0
        %2371 = vmatpush.msra.mxu0 0.0
        %2372 = vmatpush.msra.mxu0 0.0
        %2373 = vmatpush.msra.mxu0 0.0
        %2374 = vmatpush.msra.mxu0 0.0
        %2375 = vmatpush.msra.mxu0 0.0
        %2376 = vmatpush.msra.mxu0 0.0
        %2377 = vmatpush.msra.mxu0 0.0
        %2378 = vmatpush.msra.mxu0 0.0
        %2379 = vmatpush.msra.mxu0 0.0
        %2380 = vmatpush.msra.mxu0 0.0
        %2381 = vmatpush.msra.mxu0 0.0
        %2382 = vmatpush.msra.mxu0 0.0
        %2383 = vmatpush.msra.mxu0 0.0
        %2384 = vmatpush.msra.mxu0 0.0
        %2385 = vmatpush.msra.mxu0 0.0
        %2386 = vmatpush.msra.mxu0 %v2301
        %2387 = vmatmul.f32.gmra.mxu0 %v2293
        %v2388 = vpop.f32.mrf.mxu0
        %v2389 = vadd.f32 0.0, %v2388
        %2390 = vdwg.mxu0
        %2391 = vmatpush.msra.mxu0 0.0
        %2392 = vmatpush.msra.mxu0 0.0
        %2393 = vmatpush.msra.mxu0 0.0
        %2394 = vmatpush.msra.mxu0 0.0
        %2395 = vmatpush.msra.mxu0 0.0
        %2396 = vmatpush.msra.mxu0 0.0
        %2397 = vmatpush.msra.mxu0 0.0
        %2398 = vmatpush.msra.mxu0 0.0
        %2399 = vmatpush.msra.mxu0 0.0
        %2400 = vmatpush.msra.mxu0 0.0
        %2401 = vmatpush.msra.mxu0 0.0
        %2402 = vmatpush.msra.mxu0 0.0
        %2403 = vmatpush.msra.mxu0 0.0
        %2404 = vmatpush.msra.mxu0 0.0
        %2405 = vmatpush.msra.mxu0 0.0
        %2406 = vmatpush.msra.mxu0 %v2303
        %2407 = vmatmul.f32.gmra.mxu0 %v2293
        %v2408 = vpop.f32.mrf.mxu0
        %v2409 = vadd.f32 0.0, %v2408
        %2410 = vdwg.mxu0
        %2411 = vmatpush.msra.mxu0 0.0
        %2412 = vmatpush.msra.mxu0 0.0
        %2413 = vmatpush.msra.mxu0 0.0
        %2414 = vmatpush.msra.mxu0 0.0
        %2415 = vmatpush.msra.mxu0 0.0
        %2416 = vmatpush.msra.mxu0 0.0
        %2417 = vmatpush.msra.mxu0 0.0
        %2418 = vmatpush.msra.mxu0 0.0
        %2419 = vmatpush.msra.mxu0 0.0
        %2420 = vmatpush.msra.mxu0 0.0
        %2421 = vmatpush.msra.mxu0 0.0
        %2422 = vmatpush.msra.mxu0 0.0
        %2423 = vmatpush.msra.mxu0 0.0
        %2424 = vmatpush.msra.mxu0 0.0
        %2425 = vmatpush.msra.mxu0 0.0
        %2426 = vmatpush.msra.mxu0 %v2305
        %2427 = vmatmul.f32.gmra.mxu0 %v2293
        %v2428 = vpop.f32.mrf.mxu0
        %v2429 = vadd.f32 0.0, %v2428
        %2430 = vdwg.mxu0
        %2431 = vmatpush.msra.mxu0 0.0
        %2432 = vmatpush.msra.mxu0 0.0
        %2433 = vmatpush.msra.mxu0 0.0
        %2434 = vmatpush.msra.mxu0 0.0
        %2435 = vmatpush.msra.mxu0 0.0
        %2436 = vmatpush.msra.mxu0 0.0
        %2437 = vmatpush.msra.mxu0 0.0
        %2438 = vmatpush.msra.mxu0 0.0
        %2439 = vmatpush.msra.mxu0 0.0
        %2440 = vmatpush.msra.mxu0 0.0
        %2441 = vmatpush.msra.mxu0 0.0
        %2442 = vmatpush.msra.mxu0 0.0
        %2443 = vmatpush.msra.mxu0 0.0
        %2444 = vmatpush.msra.mxu0 0.0
        %2445 = vmatpush.msra.mxu0 0.0
        %2446 = vmatpush.msra.mxu0 %v2307
        %2447 = vmatmul.f32.gmra.mxu0 %v2293
        %v2448 = vpop.f32.mrf.mxu0
        %v2449 = vadd.f32 0.0, %v2448
        %2450 = vdwg.mxu0
        %2451 = vmatpush.msra.mxu0 0.0
        %2452 = vmatpush.msra.mxu0 0.0
        %2453 = vmatpush.msra.mxu0 0.0
        %2454 = vmatpush.msra.mxu0 0.0
        %2455 = vmatpush.msra.mxu0 0.0
        %2456 = vmatpush.msra.mxu0 0.0
        %2457 = vmatpush.msra.mxu0 0.0
        %2458 = vmatpush.msra.mxu0 0.0
        %2459 = vmatpush.msra.mxu0 0.0
        %2460 = vmatpush.msra.mxu0 0.0
        %2461 = vmatpush.msra.mxu0 0.0
        %2462 = vmatpush.msra.mxu0 0.0
        %2463 = vmatpush.msra.mxu0 0.0
        %2464 = vmatpush.msra.mxu0 0.0
        %2465 = vmatpush.msra.mxu0 0.0
        %2466 = vmatpush.msra.mxu0 %v2309
        %2467 = vmatmul.f32.gmra.mxu0 %v2293
        %v2468 = vpop.f32.mrf.mxu0
        %v2469 = vadd.f32 0.0, %v2468
        %2470 = vdwg.mxu0
        %v2471 = vsub.f32 %v2022, %v2329
        %v2472 = vsub.f32 %v2035, %v2349
        %v2473 = vsub.f32 %v2048, %v2369
        %v2474 = vsub.f32 %v2061, %v2389
        %v2475 = vsub.f32 %v2074, %v2409
        %v2476 = vsub.f32 %v2087, %v2429
        %v2477 = vsub.f32 %v2100, %v2449
        %v2478 = vsub.f32 %v2113, %v2469
        %v2479 = vmul.f32 %v2471, %v2471
        %v2480 = vmul.f32 %v2472, %v2472
        %v2481 = vmul.f32 %v2473, %v2473
        %v2482 = vmul.f32 %v2474, %v2474
        %v2483 = vmul.f32 %v2475, %v2475
        %v2484 = vmul.f32 %v2476, %v2476
        %v2485 = vmul.f32 %v2477, %v2477
        %v2486 = vmul.f32 %v2478, %v2478
        %2487 = vmatpush.msra.mxu0 %v285
        %2488 = vmatpush.msra.mxu0 %v284
        %2489 = vmatpush.msra.mxu0 %v283
        %2490 = vmatpush.msra.mxu0 %v282
        %2491 = vmatpush.msra.mxu0 %v281
        %2492 = vmatpush.msra.mxu0 %v280
        %2493 = vmatpush.msra.mxu0 %v279
        %2494 = vmatpush.msra.mxu0 %v278
        %2495 = vmatpush.msra.mxu0 %v277
        %2496 = vmatpush.msra.mxu0 %v276
        %2497 = vmatpush.msra.mxu0 %v275
        %2498 = vmatpush.msra.mxu0 %v274
        %2499 = vmatpush.msra.mxu0 %v273
        %2500 = vmatpush.msra.mxu0 %v272
        %2501 = vmatpush.msra.mxu0 %v271
        %2502 = vmatpush.msra.mxu0 %v270
        %2503 = vmatmul.f32.gmra.mxu0 %v2479
        %v2504 = vpop.f32.mrf.mxu0
        %v2505 = vadd.f32 0.0, %v2504
        %2506 = vdwg.mxu0
        %2507 = vmatpush.msra.mxu0 %v301
        %2508 = vmatpush.msra.mxu0 %v300
        %2509 = vmatpush.msra.mxu0 %v299
        %2510 = vmatpush.msra.mxu0 %v298
        %2511 = vmatpush.msra.mxu0 %v297
        %2512 = vmatpush.msra.mxu0 %v296
        %2513 = vmatpush.msra.mxu0 %v295
        %2514 = vmatpush.msra.mxu0 %v294
        %2515 = vmatpush.msra.mxu0 %v293
        %2516 = vmatpush.msra.mxu0 %v292
        %2517 = vmatpush.msra.mxu0 %v291
        %2518 = vmatpush.msra.mxu0 %v290
        %2519 = vmatpush.msra.mxu0 %v289
        %2520 = vmatpush.msra.mxu0 %v288
        %2521 = vmatpush.msra.mxu0 %v287
        %2522 = vmatpush.msra.mxu0 %v286
        %2523 = vmatmul.f32.gmra.mxu0 %v2480
        %v2524 = vpop.f32.mrf.mxu0
        %v2525 = vadd.f32 %v2505, %v2524
        %2526 = vdwg.mxu0
        %2527 = vmatpush.msra.mxu0 %v317
        %2528 = vmatpush.msra.mxu0 %v316
        %2529 = vmatpush.msra.mxu0 %v315
        %2530 = vmatpush.msra.mxu0 %v314
        %2531 = vmatpush.msra.mxu0 %v313
        %2532 = vmatpush.msra.mxu0 %v312
        %2533 = vmatpush.msra.mxu0 %v311
        %2534 = vmatpush.msra.mxu0 %v310
        %2535 = vmatpush.msra.mxu0 %v309
        %2536 = vmatpush.msra.mxu0 %v308
        %2537 = vmatpush.msra.mxu0 %v307
        %2538 = vmatpush.msra.mxu0 %v306
        %2539 = vmatpush.msra.mxu0 %v305
        %2540 = vmatpush.msra.mxu0 %v304
        %2541 = vmatpush.msra.mxu0 %v303
        %2542 = vmatpush.msra.mxu0 %v302
        %2543 = vmatmul.f32.gmra.mxu0 %v2481
        %v2544 = vpop.f32.mrf.mxu0
        %v2545 = vadd.f32 %v2525, %v2544
        %2546 = vdwg.mxu0
        %2547 = vmatpush.msra.mxu0 %v333
        %2548 = vmatpush.msra.mxu0 %v332
        %2549 = vmatpush.msra.mxu0 %v331
        %2550 = vmatpush.msra.mxu0 %v330
        %2551 = vmatpush.msra.mxu0 %v329
        %2552 = vmatpush.msra.mxu0 %v328
        %2553 = vmatpush.msra.mxu0 %v327
        %2554 = vmatpush.msra.mxu0 %v326
        %2555 = vmatpush.msra.mxu0 %v325
        %2556 = vmatpush.msra.mxu0 %v324
        %2557 = vmatpush.msra.mxu0 %v323
        %2558 = vmatpush.msra.mxu0 %v322
        %2559 = vmatpush.msra.mxu0 %v321
        %2560 = vmatpush.msra.mxu0 %v320
        %2561 = vmatpush.msra.mxu0 %v319
        %2562 = vmatpush.msra.mxu0 %v318
        %2563 = vmatmul.f32.gmra.mxu0 %v2482
        %v2564 = vpop.f32.mrf.mxu0
        %v2565 = vadd.f32 %v2545, %v2564
        %2566 = vdwg.mxu0
        %2567 = vmatpush.msra.mxu0 %v349
        %2568 = vmatpush.msra.mxu0 %v348
        %2569 = vmatpush.msra.mxu0 %v347
        %2570 = vmatpush.msra.mxu0 %v346
        %2571 = vmatpush.msra.mxu0 %v345
        %2572 = vmatpush.msra.mxu0 %v344
        %2573 = vmatpush.msra.mxu0 %v343
        %2574 = vmatpush.msra.mxu0 %v342
        %2575 = vmatpush.msra.mxu0 %v341
        %2576 = vmatpush.msra.mxu0 %v340
        %2577 = vmatpush.msra.mxu0 %v339
        %2578 = vmatpush.msra.mxu0 %v338
        %2579 = vmatpush.msra.mxu0 %v337
        %2580 = vmatpush.msra.mxu0 %v336
        %2581 = vmatpush.msra.mxu0 %v335
        %2582 = vmatpush.msra.mxu0 %v334
        %2583 = vmatmul.f32.gmra.mxu0 %v2483
        %v2584 = vpop.f32.mrf.mxu0
        %v2585 = vadd.f32 %v2565, %v2584
        %2586 = vdwg.mxu0
        %2587 = vmatpush.msra.mxu0 %v365
        %2588 = vmatpush.msra.mxu0 %v364
        %2589 = vmatpush.msra.mxu0 %v363
        %2590 = vmatpush.msra.mxu0 %v362
        %2591 = vmatpush.msra.mxu0 %v361
        %2592 = vmatpush.msra.mxu0 %v360
        %2593 = vmatpush.msra.mxu0 %v359
        %2594 = vmatpush.msra.mxu0 %v358
        %2595 = vmatpush.msra.mxu0 %v357
        %2596 = vmatpush.msra.mxu0 %v356
        %2597 = vmatpush.msra.mxu0 %v355
        %2598 = vmatpush.msra.mxu0 %v354
        %2599 = vmatpush.msra.mxu0 %v353
        %2600 = vmatpush.msra.mxu0 %v352
        %2601 = vmatpush.msra.mxu0 %v351
        %2602 = vmatpush.msra.mxu0 %v350
        %2603 = vmatmul.f32.gmra.mxu0 %v2484
        %v2604 = vpop.f32.mrf.mxu0
        %v2605 = vadd.f32 %v2585, %v2604
        %2606 = vdwg.mxu0
        %2607 = vmatpush.msra.mxu0 %v381
        %2608 = vmatpush.msra.mxu0 %v380
        %2609 = vmatpush.msra.mxu0 %v379
        %2610 = vmatpush.msra.mxu0 %v378
        %2611 = vmatpush.msra.mxu0 %v377
        %2612 = vmatpush.msra.mxu0 %v376
        %2613 = vmatpush.msra.mxu0 %v375
        %2614 = vmatpush.msra.mxu0 %v374
        %2615 = vmatpush.msra.mxu0 %v373
        %2616 = vmatpush.msra.mxu0 %v372
        %2617 = vmatpush.msra.mxu0 %v371
        %2618 = vmatpush.msra.mxu0 %v370
        %2619 = vmatpush.msra.mxu0 %v369
        %2620 = vmatpush.msra.mxu0 %v368
        %2621 = vmatpush.msra.mxu0 %v367
        %2622 = vmatpush.msra.mxu0 %v366
        %2623 = vmatmul.f32.gmra.mxu0 %v2485
        %v2624 = vpop.f32.mrf.mxu0
        %v2625 = vadd.f32 %v2605, %v2624
        %2626 = vdwg.mxu0
        %2627 = vmatpush.msra.mxu0 %v397
        %2628 = vmatpush.msra.mxu0 %v396
        %2629 = vmatpush.msra.mxu0 %v395
        %2630 = vmatpush.msra.mxu0 %v394
        %2631 = vmatpush.msra.mxu0 %v393
        %2632 = vmatpush.msra.mxu0 %v392
        %2633 = vmatpush.msra.mxu0 %v391
        %2634 = vmatpush.msra.mxu0 %v390
        %2635 = vmatpush.msra.mxu0 %v389
        %2636 = vmatpush.msra.mxu0 %v388
        %2637 = vmatpush.msra.mxu0 %v387
        %2638 = vmatpush.msra.mxu0 %v386
        %2639 = vmatpush.msra.mxu0 %v385
        %2640 = vmatpush.msra.mxu0 %v384
        %2641 = vmatpush.msra.mxu0 %v383
        %2642 = vmatpush.msra.mxu0 %v382
        %2643 = vmatmul.f32.gmra.mxu0 %v2486
        %v2644 = vpop.f32.mrf.mxu0
        %v2645 = vadd.f32 %v2625, %v2644
        %2646 = vdwg.mxu0
        %v2647 = vmul.f32 %v2645, 0.00390625
        %v2648 = vadd.f32 %v2647, 1e-05
        %v2649 = vrsqrt.pop %v2648
        %v2650 = vmul.f32 %v2649, %v2648
        %v2651 = vmul.f32 %v2650, %v2649
        %v2652 = vmul.f32 0.5, %v2651
        %v2653 = vsub.f32 1.5, %v2652
        %v2654 = vmul.f32 %v2649, %v2653
        %vm2655 = vweird.f32 %v2648
        %vm2656 = vweird.f32 %v2649
        %vm2657 = vmor %vm2655, %vm2656
        %v2658 = vsel %vm2657, %v2649, %v2654
        %2659 = vst [vmem:[#allocation1] ss:$2 sm:$0xff] %v398
        %s2660 = scalar_lea.vmem [#allocation1], 16
        %2661 = vst [vmem:[%s2660] ss:$2 sm:$0xff] %v399
        %s2662 = scalar_lea.vmem [#allocation1], 32
        %2663 = vst [vmem:[%s2662] ss:$2 sm:$0xff] %v400
        %s2664 = scalar_lea.vmem [#allocation1], 48
        %2665 = vst [vmem:[%s2664] ss:$2 sm:$0xff] %v401
        %v2666 = vld.sshfl [vmem:[#allocation1] sm:$0xff pattern:$0x75316420]
        %v2667 = vld.sshfl [vmem:[#allocation1 + $0x8] sm:$0xff pattern:$0x75316420]
        %v2668 = vld.sshfl [vmem:[#allocation1 + $0x10] sm:$0xff pattern:$0x75316420]
        %v2669 = vld.sshfl [vmem:[#allocation1 + $0x18] sm:$0xff pattern:$0x75316420]
        %v2670 = vld.sshfl [vmem:[#allocation1 + $0x20] sm:$0xff pattern:$0x75316420]
        %v2671 = vld.sshfl [vmem:[#allocation1 + $0x28] sm:$0xff pattern:$0x75316420]
        %v2672 = vld.sshfl [vmem:[#allocation1 + $0x30] sm:$0xff pattern:$0x75316420]
        %v2673 = vld.sshfl [vmem:[#allocation1 + $0x38] sm:$0xff pattern:$0x75316420]
        %v2675 = vsel %vm1094, %v2658, 0
        %v2677 = vsel %vm785, %v2666, 0
        %v2679 = vsel %vm785, %v2667, 0
        %v2681 = vsel %vm785, %v2668, 0
        %v2683 = vsel %vm785, %v2669, 0
        %v2685 = vsel %vm785, %v2670, 0
        %v2687 = vsel %vm785, %v2671, 0
        %v2689 = vsel %vm785, %v2672, 0
        %v2691 = vsel %vm785, %v2673, 0
        %2693 = vmatpush.msra.mxu0 0.0
        %2694 = vmatpush.msra.mxu0 0.0
        %2695 = vmatpush.msra.mxu0 0.0
        %2696 = vmatpush.msra.mxu0 0.0
        %2697 = vmatpush.msra.mxu0 0.0
        %2698 = vmatpush.msra.mxu0 0.0
        %2699 = vmatpush.msra.mxu0 0.0
        %2700 = vmatpush.msra.mxu0 0.0
        %2701 = vmatpush.msra.mxu0 0.0
        %2702 = vmatpush.msra.mxu0 0.0
        %2703 = vmatpush.msra.mxu0 0.0
        %2704 = vmatpush.msra.mxu0 0.0
        %2705 = vmatpush.msra.mxu0 0.0
        %2706 = vmatpush.msra.mxu0 0.0
        %2707 = vmatpush.msra.mxu0 0.0
        %2708 = vmatpush.msra.mxu0 %v2677
        %2709 = vmatmul.f32.gmra.mxu0 %v2675
        %v2710 = vpop.f32.mrf.mxu0
        %v2711 = vadd.f32 0.0, %v2710
        %2712 = vdwg.mxu0
        %2713 = vmatpush.msra.mxu0 0.0
        %2714 = vmatpush.msra.mxu0 0.0
        %2715 = vmatpush.msra.mxu0 0.0
        %2716 = vmatpush.msra.mxu0 0.0
        %2717 = vmatpush.msra.mxu0 0.0
        %2718 = vmatpush.msra.mxu0 0.0
        %2719 = vmatpush.msra.mxu0 0.0
        %2720 = vmatpush.msra.mxu0 0.0
        %2721 = vmatpush.msra.mxu0 0.0
        %2722 = vmatpush.msra.mxu0 0.0
        %2723 = vmatpush.msra.mxu0 0.0
        %2724 = vmatpush.msra.mxu0 0.0
        %2725 = vmatpush.msra.mxu0 0.0
        %2726 = vmatpush.msra.mxu0 0.0
        %2727 = vmatpush.msra.mxu0 0.0
        %2728 = vmatpush.msra.mxu0 %v2679
        %2729 = vmatmul.f32.gmra.mxu0 %v2675
        %v2730 = vpop.f32.mrf.mxu0
        %v2731 = vadd.f32 0.0, %v2730
        %2732 = vdwg.mxu0
        %2733 = vmatpush.msra.mxu0 0.0
        %2734 = vmatpush.msra.mxu0 0.0
        %2735 = vmatpush.msra.mxu0 0.0
        %2736 = vmatpush.msra.mxu0 0.0
        %2737 = vmatpush.msra.mxu0 0.0
        %2738 = vmatpush.msra.mxu0 0.0
        %2739 = vmatpush.msra.mxu0 0.0
        %2740 = vmatpush.msra.mxu0 0.0
        %2741 = vmatpush.msra.mxu0 0.0
        %2742 = vmatpush.msra.mxu0 0.0
        %2743 = vmatpush.msra.mxu0 0.0
        %2744 = vmatpush.msra.mxu0 0.0
        %2745 = vmatpush.msra.mxu0 0.0
        %2746 = vmatpush.msra.mxu0 0.0
        %2747 = vmatpush.msra.mxu0 0.0
        %2748 = vmatpush.msra.mxu0 %v2681
        %2749 = vmatmul.f32.gmra.mxu0 %v2675
        %v2750 = vpop.f32.mrf.mxu0
        %v2751 = vadd.f32 0.0, %v2750
        %2752 = vdwg.mxu0
        %2753 = vmatpush.msra.mxu0 0.0
        %2754 = vmatpush.msra.mxu0 0.0
        %2755 = vmatpush.msra.mxu0 0.0
        %2756 = vmatpush.msra.mxu0 0.0
        %2757 = vmatpush.msra.mxu0 0.0
        %2758 = vmatpush.msra.mxu0 0.0
        %2759 = vmatpush.msra.mxu0 0.0
        %2760 = vmatpush.msra.mxu0 0.0
        %2761 = vmatpush.msra.mxu0 0.0
        %2762 = vmatpush.msra.mxu0 0.0
        %2763 = vmatpush.msra.mxu0 0.0
        %2764 = vmatpush.msra.mxu0 0.0
        %2765 = vmatpush.msra.mxu0 0.0
        %2766 = vmatpush.msra.mxu0 0.0
        %2767 = vmatpush.msra.mxu0 0.0
        %2768 = vmatpush.msra.mxu0 %v2683
        %2769 = vmatmul.f32.gmra.mxu0 %v2675
        %v2770 = vpop.f32.mrf.mxu0
        %v2771 = vadd.f32 0.0, %v2770
        %2772 = vdwg.mxu0
        %2773 = vmatpush.msra.mxu0 0.0
        %2774 = vmatpush.msra.mxu0 0.0
        %2775 = vmatpush.msra.mxu0 0.0
        %2776 = vmatpush.msra.mxu0 0.0
        %2777 = vmatpush.msra.mxu0 0.0
        %2778 = vmatpush.msra.mxu0 0.0
        %2779 = vmatpush.msra.mxu0 0.0
        %2780 = vmatpush.msra.mxu0 0.0
        %2781 = vmatpush.msra.mxu0 0.0
        %2782 = vmatpush.msra.mxu0 0.0
        %2783 = vmatpush.msra.mxu0 0.0
        %2784 = vmatpush.msra.mxu0 0.0
        %2785 = vmatpush.msra.mxu0 0.0
        %2786 = vmatpush.msra.mxu0 0.0
        %2787 = vmatpush.msra.mxu0 0.0
        %2788 = vmatpush.msra.mxu0 %v2685
        %2789 = vmatmul.f32.gmra.mxu0 %v2675
        %v2790 = vpop.f32.mrf.mxu0
        %v2791 = vadd.f32 0.0, %v2790
        %2792 = vdwg.mxu0
        %2793 = vmatpush.msra.mxu0 0.0
        %2794 = vmatpush.msra.mxu0 0.0
        %2795 = vmatpush.msra.mxu0 0.0
        %2796 = vmatpush.msra.mxu0 0.0
        %2797 = vmatpush.msra.mxu0 0.0
        %2798 = vmatpush.msra.mxu0 0.0
        %2799 = vmatpush.msra.mxu0 0.0
        %2800 = vmatpush.msra.mxu0 0.0
        %2801 = vmatpush.msra.mxu0 0.0
        %2802 = vmatpush.msra.mxu0 0.0
        %2803 = vmatpush.msra.mxu0 0.0
        %2804 = vmatpush.msra.mxu0 0.0
        %2805 = vmatpush.msra.mxu0 0.0
        %2806 = vmatpush.msra.mxu0 0.0
        %2807 = vmatpush.msra.mxu0 0.0
        %2808 = vmatpush.msra.mxu0 %v2687
        %2809 = vmatmul.f32.gmra.mxu0 %v2675
        %v2810 = vpop.f32.mrf.mxu0
        %v2811 = vadd.f32 0.0, %v2810
        %2812 = vdwg.mxu0
        %2813 = vmatpush.msra.mxu0 0.0
        %2814 = vmatpush.msra.mxu0 0.0
        %2815 = vmatpush.msra.mxu0 0.0
        %2816 = vmatpush.msra.mxu0 0.0
        %2817 = vmatpush.msra.mxu0 0.0
        %2818 = vmatpush.msra.mxu0 0.0
        %2819 = vmatpush.msra.mxu0 0.0
        %2820 = vmatpush.msra.mxu0 0.0
        %2821 = vmatpush.msra.mxu0 0.0
        %2822 = vmatpush.msra.mxu0 0.0
        %2823 = vmatpush.msra.mxu0 0.0
        %2824 = vmatpush.msra.mxu0 0.0
        %2825 = vmatpush.msra.mxu0 0.0
        %2826 = vmatpush.msra.mxu0 0.0
        %2827 = vmatpush.msra.mxu0 0.0
        %2828 = vmatpush.msra.mxu0 %v2689
        %2829 = vmatmul.f32.gmra.mxu0 %v2675
        %v2830 = vpop.f32.mrf.mxu0
        %v2831 = vadd.f32 0.0, %v2830
        %2832 = vdwg.mxu0
        %2833 = vmatpush.msra.mxu0 0.0
        %2834 = vmatpush.msra.mxu0 0.0
        %2835 = vmatpush.msra.mxu0 0.0
        %2836 = vmatpush.msra.mxu0 0.0
        %2837 = vmatpush.msra.mxu0 0.0
        %2838 = vmatpush.msra.mxu0 0.0
        %2839 = vmatpush.msra.mxu0 0.0
        %2840 = vmatpush.msra.mxu0 0.0
        %2841 = vmatpush.msra.mxu0 0.0
        %2842 = vmatpush.msra.mxu0 0.0
        %2843 = vmatpush.msra.mxu0 0.0
        %2844 = vmatpush.msra.mxu0 0.0
        %2845 = vmatpush.msra.mxu0 0.0
        %2846 = vmatpush.msra.mxu0 0.0
        %2847 = vmatpush.msra.mxu0 0.0
        %2848 = vmatpush.msra.mxu0 %v2691
        %2849 = vmatmul.f32.gmra.mxu0 %v2675
        %v2850 = vpop.f32.mrf.mxu0
        %v2851 = vadd.f32 0.0, %v2850
        %2852 = vdwg.mxu0
        %v2853 = vmul.f32 %v2471, %v2711
        %v2854 = vmul.f32 %v2472, %v2731
        %v2855 = vmul.f32 %v2473, %v2751
        %v2856 = vmul.f32 %v2474, %v2771
        %v2857 = vmul.f32 %v2475, %v2791
        %v2858 = vmul.f32 %v2476, %v2811
        %v2859 = vmul.f32 %v2477, %v2831
        %v2860 = vmul.f32 %v2478, %v2851
        %vm2861 = vcmp.gt.f32.partialorder %v2853, 0.0
        %vm2862 = vcmp.gt.f32.partialorder %v2854, 0.0
        %vm2863 = vcmp.gt.f32.partialorder %v2855, 0.0
        %vm2864 = vcmp.gt.f32.partialorder %v2856, 0.0
        %vm2865 = vcmp.gt.f32.partialorder %v2857, 0.0
        %vm2866 = vcmp.gt.f32.partialorder %v2858, 0.0
        %vm2867 = vcmp.gt.f32.partialorder %v2859, 0.0
        %vm2868 = vcmp.gt.f32.partialorder %v2860, 0.0
        %v2869 = vmul.f32 %v2853, 0.2
        %v2870 = vmul.f32 %v2854, 0.2
        %v2871 = vmul.f32 %v2855, 0.2
        %v2872 = vmul.f32 %v2856, 0.2
        %v2873 = vmul.f32 %v2857, 0.2
        %v2874 = vmul.f32 %v2858, 0.2
        %v2875 = vmul.f32 %v2859, 0.2
        %v2876 = vmul.f32 %v2860, 0.2
        %v2877 = vsel %vm2861, %v2853, %v2869
        %v2878 = vsel %vm2862, %v2854, %v2870
        %v2879 = vsel %vm2863, %v2855, %v2871
        %v2880 = vsel %vm2864, %v2856, %v2872
        %v2881 = vsel %vm2865, %v2857, %v2873
        %v2882 = vsel %vm2866, %v2858, %v2874
        %v2883 = vsel %vm2867, %v2859, %v2875
        %v2884 = vsel %vm2868, %v2860, %v2876
        %2885 = vst [vmem:[%s245] sm:$0xff] %v2877
        %2886 = vst [vmem:[%s245 + $0x8] sm:$0xff] %v2878
        %2887 = vst [vmem:[%s245 + $0x10] sm:$0xff] %v2879
        %2888 = vst [vmem:[%s245 + $0x18] sm:$0xff] %v2880
        %2889 = vst [vmem:[%s245 + $0x20] sm:$0xff] %v2881
        %2890 = vst [vmem:[%s245 + $0x28] sm:$0xff] %v2882
        %2891 = vst [vmem:[%s245 + $0x30] sm:$0xff] %v2883
        %2892 = vst [vmem:[%s245 + $0x38] sm:$0xff] %v2884
        %s2893 = sand.u32 %s159, 1
        %s2894 = scalar_lea.sflag [#allocation3], %s2893
        %s2895 = sand.u32 %s159, 1
        %s2896 = smul.addr %s2895, 64
        %s2897 = scalar_lea.vmem [#allocation2], %s2896
        // Predicated region
        $region45: #{tpu_custom_call.1} parent=43 // pred_check
          %p2898 = pneg %p169
        $region46: #{tpu_custom_call.1} parent=43 // pred_check_branch
          %2900 = sbr.rel (%p2898) target = $region48
        $region47: #{tpu_custom_call.1} parent=43 // pred_region
          %s2901 = smul.u32 8, %s20
          %2903 = vsyncadd %s2894, 0
          %s2904 = smul.addr %s2901, 8
          %s2905 = scalar_lea.hbm %s6, %s2904
          %s2907 = sshll.u32 %s2897, 4
          %s2908 = int_to_ptr.vmem [resolvable:$true] %s2907
          %s2909 = sshll.u32 %s2905, 4
          %s2910 = int_to_ptr.hbm [resolvable:$true] %s2909
          %2912 = dma.vmem_to_hbm [thread:$0]  %s2908, 1024, %s2910, %s2894
        $region48: #{tpu_custom_call.1} parent=43 // pred_fallthru
          _
      $region44: #{tpu_custom_call.1} parent=5 // pred_fallthru
        _
      %p2913 = scmp.le.s32.totalorder 2, %s15
      // Predicated region
      $region49: #{tpu_custom_call.1} parent=5 // pred_check
        %p2914 = pneg %p2913
      $region50: #{tpu_custom_call.1} parent=5 // pred_check_branch
        %2916 = sbr.rel (%p2914) target = $region52
      $region51: #{tpu_custom_call.1} parent=5 // pred_region
        %s2917 = ssub.s32 %s15, 2
        // Predicated region
        $region53: #{tpu_custom_call.1} parent=51 // pred_check
          %p2918 = pneg %p175
        $region54: #{tpu_custom_call.1} parent=51 // pred_check_branch
          %2920 = sbr.rel (%p2918) target = $region56
        $region55: #{tpu_custom_call.1} parent=51 // pred_region
          %s2921 = sand.u32 %s160, 1
          %s2922 = scalar_lea.sflag [#allocation3], %s2921
          %s2923 = sand.u32 %s160, 1
          %s2924 = smul.addr %s2923, 64
          %s2925 = scalar_lea.vmem [#allocation2], %s2924
          %2927 = dma.done %s2922, 1024
        $region56: #{tpu_custom_call.1} parent=51 // pred_fallthru
          _
      $region52: #{tpu_custom_call.1} parent=5 // pred_fallthru
        _
    $region6: #{tpu_custom_call.1} parent=1 // loop_footer
      %s19 = sadd.s32 1, %s15
    $region7: #{tpu_custom_call.1} parent=1 // loop_footer_branch
      %14 = sbr.rel target = $region3
    $region8: #{tpu_custom_call.1} parent=1 // loop_exit
      _
    %2928 = vsyncpa [#allocation3], 1
    %s2929 = scalar_lea.sflag [#allocation3], 1
    %2930 = vsyncpa %s2929, 1

</llo_original>
